<compile_context>
chip_gen: v7x
topology: tpu7x:2x2x1
jax: 0.10.0
libtpu: 0.0.40
codegen_flags: <defaults>
</compile_context>

<pallas_src>
import functools
import math

import jax
import jax.numpy as jnp
from jax.experimental import pallas as pl
from jax.experimental.pallas import tpu as pltpu


# ---------------------------------------------------------------------------
# in-kernel math helpers (only Python-float constants -> safe inside kernels)
# ---------------------------------------------------------------------------

def _layernorm(x, g, b, eps=1e-5):
    mu = jnp.mean(x, axis=-1, keepdims=True)
    var = jnp.mean(jnp.square(x - mu), axis=-1, keepdims=True)
    return (x - mu) * jax.lax.rsqrt(var + eps) * g + b


def _gelu(x):
    # tanh-approximate GELU (max abs error ~3e-3 vs exact erf GELU); tanh -> EUP slot.
    c = 0.7978845608028654  # sqrt(2/pi)
    return 0.5 * x * (1.0 + jnp.tanh(c * (x + 0.044715 * x * x * x)))


# ---------------------------------------------------------------------------
# The fused ViT kernel: stem + all encoder layers + classification head
# ---------------------------------------------------------------------------

def _vit_kernel(words_ref, emb_w_ref, emb_b_ref, cls_ref, pos_ref,
                ln1g_ref, ln1b_ref,
                wq_ref, wk_ref, wv_ref, bq_ref, bk_ref, bv_ref,
                wo_ref, bo_ref,
                ln2g_ref, ln2b_ref,
                w1_ref, b1_ref, w2_ref, b2_ref,
                fcg_ref, fcb_ref, fcw_ref, fcbias_ref,
                o_ref, act_ref,
                *, head, hidden, n_tok, n_pad, use_cls):
    l = pl.program_id(1)
    last = pl.num_programs(1) - 1
    f32 = jnp.float32
    bf16 = jnp.bfloat16

    # ---- stem: patch embedding + cls token + positional embedding (layer step 0) ----
    @pl.when(l == 0)
    def _stem():
        emb = jnp.dot(words_ref[0], emb_w_ref[...],
                      preferred_element_type=f32) + emb_b_ref[...]        # (p2, hidden)
        parts = ([cls_ref[...]] if use_cls else []) + [emb]
        if n_pad > n_tok:
            parts.append(jnp.zeros((n_pad - n_tok, hidden), f32))
        tok = jnp.concatenate(parts, axis=0) if len(parts) > 1 else parts[0]
        act_ref[...] = tok + pos_ref[...]                                 # (n_pad, hidden)

    # ---- one transformer encoder layer (runs every grid step) ----
    xb = act_ref[...]                                                     # (n_pad, hidden) f32
    h1 = _layernorm(xb, ln1g_ref[0], ln1b_ref[0])
    h1b = h1.astype(bf16)

    if n_pad > n_tok:
        col = jax.lax.broadcasted_iota(jnp.int32, (n_pad, n_pad), 1)
        key_mask = jnp.where(col < n_tok, 0.0, -1e9).astype(f32)
    else:
        key_mask = None

    bq = bq_ref[0]                                                        # (head, dh) f32
    bk = bk_ref[0]
    bv = bv_ref[0]

    head_outs = []
    for hh in range(head):
        # per-head projections: direct (n_pad, hidden) x (hidden, dh) matmuls,
        # scale 1/sqrt(d) already folded into wq/bq at prepare time.
        q = jnp.dot(h1b, wq_ref[0, hh], preferred_element_type=f32) + bq[hh:hh + 1, :]
        k = jnp.dot(h1b, wk_ref[0, hh], preferred_element_type=f32) + bk[hh:hh + 1, :]
        v = jnp.dot(h1b, wv_ref[0, hh], preferred_element_type=f32) + bv[hh:hh + 1, :]

        s = jax.lax.dot_general(q, k, (((1,), (1,)), ((), ())),
                                preferred_element_type=f32)               # (n_pad, n_pad)
        if key_mask is not None:
            s = s + key_mask
        s = s - jnp.max(s, axis=-1, keepdims=True)
        e = jnp.exp(s)
        p = e * pl.reciprocal(jnp.sum(e, axis=-1, keepdims=True), approx=True)
        head_outs.append(jnp.dot(p, v, preferred_element_type=f32))       # (n_pad, dh)

    ctx = jnp.concatenate(head_outs, axis=-1) if head > 1 else head_outs[0]
    msa = jnp.dot(ctx.astype(bf16), wo_ref[0],
                  preferred_element_type=f32) + bo_ref[0] + xb            # residual

    h2 = _layernorm(msa, ln2g_ref[0], ln2b_ref[0])
    m1 = _gelu(jnp.dot(h2.astype(bf16), w1_ref[0],
                       preferred_element_type=f32) + b1_ref[0])
    out = _gelu(jnp.dot(m1.astype(bf16), w2_ref[0],
                        preferred_element_type=f32) + b2_ref[0]) + msa    # GELU after fc2 too
    act_ref[...] = out

    # ---- classification head: cls pooling + LN + classifier (last layer step) ----
    @pl.when(l == last)
    def _head():
        if use_cls:
            pooled = out[0:1, :]
        else:
            pooled = jnp.mean(out[:n_tok, :], axis=0, keepdims=True)
        hfin = _layernorm(pooled, fcg_ref[...], fcb_ref[...])
        o_ref[0] = jnp.dot(hfin, fcw_ref[...],
                           preferred_element_type=f32) + fcbias_ref[...]  # (1, ncls_pad)


# ---------------------------------------------------------------------------
# Parameter initialization (deterministic, torch-like shapes / layouts)
# ---------------------------------------------------------------------------

def _linear_init(key, fan_in, fan_out):
    kw, kb = jax.random.split(key)
    bound = 1.0 / math.sqrt(fan_in)
    w = jax.random.uniform(kw, (fan_in, fan_out), jnp.float32, -bound, bound)  # W^T layout
    b = jax.random.uniform(kb, (fan_out,), jnp.float32, -bound, bound)
    return w, b


def init_params(key, *, in_c, img_size, patch, hidden, mlp_hidden, head,
                num_layers, num_classes):
    ps = img_size // patch
    f = ps * ps * in_c
    num_tokens = patch * patch + 1  # cls token included
    keys = jax.random.split(key, 4 + num_layers)

    params = {}
    params["emb_w"], params["emb_b"] = _linear_init(keys[0], f, hidden)
    params["cls_token"] = jax.random.normal(keys[1], (1, 1, hidden), jnp.float32)
    params["pos_emb"] = jax.random.normal(keys[2], (1, num_tokens, hidden), jnp.float32)

    layers = []
    for li in range(num_layers):
        lk = jax.random.split(keys[3 + li], 6)
        lp = {}
        lp["ln1_g"] = jnp.ones((hidden,), jnp.float32)
        lp["ln1_b"] = jnp.zeros((hidden,), jnp.float32)
        lp["q_w"], lp["q_b"] = _linear_init(lk[0], hidden, hidden)
        lp["k_w"], lp["k_b"] = _linear_init(lk[1], hidden, hidden)
        lp["v_w"], lp["v_b"] = _linear_init(lk[2], hidden, hidden)
        lp["o_w"], lp["o_b"] = _linear_init(lk[3], hidden, hidden)
        lp["ln2_g"] = jnp.ones((hidden,), jnp.float32)
        lp["ln2_b"] = jnp.zeros((hidden,), jnp.float32)
        lp["fc1_w"], lp["fc1_b"] = _linear_init(lk[4], hidden, mlp_hidden)
        lp["fc2_w"], lp["fc2_b"] = _linear_init(lk[5], mlp_hidden, hidden)
        layers.append(lp)
    params["layers"] = layers

    params["fc_ln_g"] = jnp.ones((hidden,), jnp.float32)
    params["fc_ln_b"] = jnp.zeros((hidden,), jnp.float32)
    params["fc_w"], params["fc_b"] = _linear_init(keys[3 + num_layers], hidden, num_classes)
    return params


# ---------------------------------------------------------------------------
# One-time parameter preparation (hoisted out of the forward pass)
# ---------------------------------------------------------------------------

def prepare_params(params, *, head):
    """Stack per-layer weights on a leading layer axis, split per head, fold the
    1/sqrt(d) scale into Q, cast matmul weights to bf16, pad pos/classifier."""
    hidden = params["emb_w"].shape[1]
    dh = hidden // head
    sqrt_d = float(hidden) ** 0.5            # matches self.sqrt_d = feats ** 0.5
    n_tok = params["pos_emb"].shape[1]
    n_pad = ((n_tok + 7) // 8) * 8
    ncls = params["fc_w"].shape[1]
    ncls_pad = ((ncls + 127) // 128) * 128
    f32, bf16 = jnp.float32, jnp.bfloat16

    def row(v):
        return v.reshape(1, -1).astype(f32)

    def heads_w(w):                          # (hidden, hidden) -> (head, hidden, dh)
        return w.reshape(hidden, head, dh).transpose(1, 0, 2)

    layers = params["layers"]
    stack = lambda fn: jnp.stack([fn(lp) for lp in layers], axis=0)

    prep = dict(
        emb_w=params["emb_w"].astype(f32),
        emb_b=row(params["emb_b"]),
        cls=params["cls_token"].reshape(1, hidden).astype(f32),
        pos=jnp.pad(params["pos_emb"].reshape(n_tok, hidden).astype(f32),
                    ((0, n_pad - n_tok), (0, 0))),
        ln1_g=stack(lambda lp: lp["ln1_g"].reshape(1, hidden)),
        ln1_b=stack(lambda lp: lp["ln1_b"].reshape(1, hidden)),
        wq=stack(lambda lp: heads_w(lp["q_w"]) / sqrt_d).astype(bf16),
        wk=stack(lambda lp: heads_w(lp["k_w"])).astype(bf16),
        wv=stack(lambda lp: heads_w(lp["v_w"])).astype(bf16),
        bq=stack(lambda lp: lp["q_b"].reshape(head, dh) / sqrt_d),
        bk=stack(lambda lp: lp["k_b"].reshape(head, dh)),
        bv=stack(lambda lp: lp["v_b"].reshape(head, dh)),
        wo=stack(lambda lp: lp["o_w"]).astype(bf16),
        bo=stack(lambda lp: lp["o_b"].reshape(1, hidden)),
        ln2_g=stack(lambda lp: lp["ln2_g"].reshape(1, hidden)),
        ln2_b=stack(lambda lp: lp["ln2_b"].reshape(1, hidden)),
        w1=stack(lambda lp: lp["fc1_w"]).astype(bf16),
        b1=stack(lambda lp: lp["fc1_b"].reshape(1, -1)),
        w2=stack(lambda lp: lp["fc2_w"]).astype(bf16),
        b2=stack(lambda lp: lp["fc2_b"].reshape(1, hidden)),
        fc_ln_g=row(params["fc_ln_g"]),
        fc_ln_b=row(params["fc_ln_b"]),
        fc_w=jnp.pad(params["fc_w"].astype(f32), ((0, 0), (0, ncls_pad - ncls))),
        fc_b=jnp.pad(params["fc_b"].astype(f32), (0, ncls_pad - ncls)).reshape(1, ncls_pad),
    )
    return prep


# ---------------------------------------------------------------------------
# ViT forward (single fused Pallas call)
# ---------------------------------------------------------------------------

def vit_forward(x, prep, *, patch, head, num_classes, is_cls_token=True):
    B, C, H, W = x.shape
    ps = H // patch
    p2 = patch * patch
    f = ps * ps * C
    hidden = prep["emb_w"].shape[1]
    mlp_hidden = prep["w1"].shape[2]
    num_layers = prep["w1"].shape[0]
    dh = hidden // head
    n_tok = p2 + 1 if is_cls_token else p2
    n_pad = prep["pos"].shape[0]
    ncls_pad = prep["fc_w"].shape[1]

    # _to_words: torch unfold/permute -> (B, patch^2, ps*ps*C)  (pure-JAX layout glue)
    words = x.reshape(B, C, patch, ps, patch, ps).transpose(0, 2, 4, 3, 5, 1)
    words = words.reshape(B, p2, f)

    kernel = functools.partial(_vit_kernel, head=head, hidden=hidden,
                               n_tok=n_tok, n_pad=n_pad, use_cls=is_cls_token)

    in_specs = [
        pl.BlockSpec((1, p2, f), lambda b, l: (b, 0, 0)),                  # words (per batch)
        pl.BlockSpec((f, hidden), lambda b, l: (0, 0)),                    # emb_w
        pl.BlockSpec((1, hidden), lambda b, l: (0, 0)),                    # emb_b
        pl.BlockSpec((1, hidden), lambda b, l: (0, 0)),                    # cls token
        pl.BlockSpec((n_pad, hidden), lambda b, l: (0, 0)),                # pos emb (padded)
        pl.BlockSpec((1, 1, hidden), lambda b, l: (l, 0, 0)),              # ln1 gamma
        pl.BlockSpec((1, 1, hidden), lambda b, l: (l, 0, 0)),              # ln1 beta
        pl.BlockSpec((1, head, hidden, dh), lambda b, l: (l, 0, 0, 0)),    # Wq (scaled, per head)
        pl.BlockSpec((1, head, hidden, dh), lambda b, l: (l, 0, 0, 0)),    # Wk (per head)
        pl.BlockSpec((1, head, hidden, dh), lambda b, l: (l, 0, 0, 0)),    # Wv (per head)
        pl.BlockSpec((1, head, dh), lambda b, l: (l, 0, 0)),               # bq (scaled)
        pl.BlockSpec((1, head, dh), lambda b, l: (l, 0, 0)),               # bk
        pl.BlockSpec((1, head, dh), lambda b, l: (l, 0, 0)),               # bv
        pl.BlockSpec((1, hidden, hidden), lambda b, l: (l, 0, 0)),         # Wo
        pl.BlockSpec((1, 1, hidden), lambda b, l: (l, 0, 0)),              # bo
        pl.BlockSpec((1, 1, hidden), lambda b, l: (l, 0, 0)),              # ln2 gamma
        pl.BlockSpec((1, 1, hidden), lambda b, l: (l, 0, 0)),              # ln2 beta
        pl.BlockSpec((1, hidden, mlp_hidden), lambda b, l: (l, 0, 0)),     # W_fc1
        pl.BlockSpec((1, 1, mlp_hidden), lambda b, l: (l, 0, 0)),          # b_fc1
        pl.BlockSpec((1, mlp_hidden, hidden), lambda b, l: (l, 0, 0)),     # W_fc2
        pl.BlockSpec((1, 1, hidden), lambda b, l: (l, 0, 0)),              # b_fc2
        pl.BlockSpec((1, hidden), lambda b, l: (0, 0)),                    # head LN gamma
        pl.BlockSpec((1, hidden), lambda b, l: (0, 0)),                    # head LN beta
        pl.BlockSpec((hidden, ncls_pad), lambda b, l: (0, 0)),             # classifier W (padded)
        pl.BlockSpec((1, ncls_pad), lambda b, l: (0, 0)),                  # classifier b (padded)
    ]

    logits_p = pl.pallas_call(
        kernel,
        out_shape=jax.ShapeDtypeStruct((B, 1, ncls_pad), jnp.float32),
        grid=(B, num_layers),
        in_specs=in_specs,
        out_specs=pl.BlockSpec((1, 1, ncls_pad), lambda b, l: (b, 0, 0)),
        scratch_shapes=[pltpu.VMEM((n_pad, hidden), jnp.float32)],
        compiler_params=pltpu.CompilerParams(
            dimension_semantics=("parallel", "arbitrary")),
    )(words, prep["emb_w"], prep["emb_b"], prep["cls"], prep["pos"],
      prep["ln1_g"], prep["ln1_b"],
      prep["wq"], prep["wk"], prep["wv"], prep["bq"], prep["bk"], prep["bv"],
      prep["wo"], prep["bo"], prep["ln2_g"], prep["ln2_b"],
      prep["w1"], prep["b1"], prep["w2"], prep["b2"],
      prep["fc_ln_g"], prep["fc_ln_b"], prep["fc_w"], prep["fc_b"])

    return logits_p[:, 0, :num_classes]


# ---------------------------------------------------------------------------
# Pure-JAX reference (exact f32, for correctness check)
# ---------------------------------------------------------------------------

def vit_reference(x, params, *, patch, head, is_cls_token=True):
    HI = jax.lax.Precision.HIGHEST
    B, C, H, W = x.shape
    ps = H // patch
    hidden = params["emb_w"].shape[1]

    def lin(t, w, b):
        return jnp.dot(t, w, precision=HI) + b

    def ln(t, g, bt, eps=1e-5):
        mu = t.mean(-1, keepdims=True)
        var = ((t - mu) ** 2).mean(-1, keepdims=True)
        return (t - mu) / jnp.sqrt(var + eps) * g + bt

    words = x.reshape(B, C, patch, ps, patch, ps).transpose(0, 2, 4, 3, 5, 1)
    words = words.reshape(B, patch * patch, ps * ps * C)
    out = lin(words, params["emb_w"], params["emb_b"])
    if is_cls_token:
        cls = jnp.broadcast_to(params["cls_token"], (B, 1, hidden))
        out = jnp.concatenate([cls, out], axis=1)
    out = out + params["pos_emb"]

    N = out.shape[1]
    dh = hidden // head
    sqrt_d = float(hidden) ** 0.5

    for lp in params["layers"]:
        h1 = ln(out, lp["ln1_g"], lp["ln1_b"])
        q = lin(h1, lp["q_w"], lp["q_b"]).reshape(B, N, head, dh).transpose(0, 2, 1, 3)
        k = lin(h1, lp["k_w"], lp["k_b"]).reshape(B, N, head, dh).transpose(0, 2, 1, 3)
        v = lin(h1, lp["v_w"], lp["v_b"]).reshape(B, N, head, dh).transpose(0, 2, 1, 3)
        score = jax.nn.softmax(
            jnp.einsum("bhif,bhjf->bhij", q, k, precision=HI) / sqrt_d, axis=-1)
        attn = jnp.einsum("bhij,bhjf->bihf", score, v, precision=HI).reshape(B, N, hidden)
        msa = lin(attn, lp["o_w"], lp["o_b"]) + out
        h2 = ln(msa, lp["ln2_g"], lp["ln2_b"])
        m = jax.nn.gelu(lin(h2, lp["fc1_w"], lp["fc1_b"]), approximate=False)
        out = jax.nn.gelu(lin(m, lp["fc2_w"], lp["fc2_b"]), approximate=False) + msa

    pooled = out[:, 0] if is_cls_token else out.mean(1)
    hfin = ln(pooled, params["fc_ln_g"], params["fc_ln_b"])
    return lin(hfin, params["fc_w"], params["fc_b"])


# ---------------------------------------------------------------------------
# main
# ---------------------------------------------------------------------------

if __name__ == "__main__":
    # Small-but-consistent ViT config:
    #   img_size=16, patch=4 -> patch_size=4, f = 4*4*3 = 48, num_tokens = 17 (padded to 24)
    B, C, IMG, PATCH = 2, 3, 16, 4
    HIDDEN, MLP_HIDDEN, HEAD, LAYERS, NUM_CLASSES = 64, 128, 4, 2, 10

    key = jax.random.PRNGKey(0)
    kx, kp = jax.random.split(key)
    x = jax.random.normal(kx, (B, C, IMG, IMG), jnp.float32)
    params = init_params(
        kp, in_c=C, img_size=IMG, patch=PATCH, hidden=HIDDEN,
        mlp_hidden=MLP_HIDDEN, head=HEAD, num_layers=LAYERS,
        num_classes=NUM_CLASSES)

    prep = prepare_params(params, head=HEAD)   # one-time weight re-layout / bf16 cast

    fwd = jax.jit(functools.partial(vit_forward, patch=PATCH, head=HEAD,
                                    num_classes=NUM_CLASSES))
    logits = jax.block_until_ready(fwd(x, prep))

    ref = vit_reference(x, params, patch=PATCH, head=HEAD)
    assert logits.shape == (B, NUM_CLASSES)
    # bf16 weights + tanh-GELU + approx reciprocal -> slightly looser tolerance than f32.
    assert bool(jnp.allclose(logits, ref, rtol=2e-2, atol=2e-2)), "mismatch vs reference"

    print("KERNEL_OK")
</pallas_src>

<mosaic_0001>
module attributes {stable_mosaic.version = 11 : i64} {
  func.func @_vit_kernel(%arg0: i32, %arg1: i32, %arg2: memref<1x16x48xf32, #tpu.memory_space<vmem>>, %arg3: memref<48x64xf32, #tpu.memory_space<vmem>>, %arg4: memref<1x64xf32, #tpu.memory_space<vmem>>, %arg5: memref<1x64xf32, #tpu.memory_space<vmem>>, %arg6: memref<24x64xf32, #tpu.memory_space<vmem>>, %arg7: memref<1x1x64xf32, #tpu.memory_space<vmem>>, %arg8: memref<1x1x64xf32, #tpu.memory_space<vmem>>, %arg9: memref<1x4x64x16xbf16, #tpu.memory_space<vmem>>, %arg10: memref<1x4x64x16xbf16, #tpu.memory_space<vmem>>, %arg11: memref<1x4x64x16xbf16, #tpu.memory_space<vmem>>, %arg12: memref<1x4x16xf32, #tpu.memory_space<vmem>>, %arg13: memref<1x4x16xf32, #tpu.memory_space<vmem>>, %arg14: memref<1x4x16xf32, #tpu.memory_space<vmem>>, %arg15: memref<1x64x64xbf16, #tpu.memory_space<vmem>>, %arg16: memref<1x1x64xf32, #tpu.memory_space<vmem>>, %arg17: memref<1x1x64xf32, #tpu.memory_space<vmem>>, %arg18: memref<1x1x64xf32, #tpu.memory_space<vmem>>, %arg19: memref<1x64x128xbf16, #tpu.memory_space<vmem>>, %arg20: memref<1x1x128xf32, #tpu.memory_space<vmem>>, %arg21: memref<1x128x64xbf16, #tpu.memory_space<vmem>>, %arg22: memref<1x1x64xf32, #tpu.memory_space<vmem>>, %arg23: memref<1x64xf32, #tpu.memory_space<vmem>>, %arg24: memref<1x64xf32, #tpu.memory_space<vmem>>, %arg25: memref<64x128xf32, #tpu.memory_space<vmem>>, %arg26: memref<1x128xf32, #tpu.memory_space<vmem>>, %arg27: memref<1x1x128xf32, #tpu.memory_space<vmem>>, %arg28: memref<24x64xf32, #tpu.memory_space<vmem>>) attributes {dimension_semantics = [#tpu.dimension_semantics<parallel>, #tpu.dimension_semantics<arbitrary>], iteration_bounds = array<i64: 2, 2>, scalar_prefetch = 0 : i64, scratch_operands = 1 : i64, tpu.core_type = #tpu.core_type<tc>, window_params = [{transform_indices = @transform_0, window_bounds = array<i64: 1, 16, 48>}, {pipeline_mode = #tpu.pipeline_mode<synchronous>, transform_indices = @transform_1, window_bounds = array<i64: 48, 64>}, {pipeline_mode = #tpu.pipeline_mode<synchronous>, transform_indices = @transform_2, window_bounds = array<i64: 1, 64>}, {pipeline_mode = #tpu.pipeline_mode<synchronous>, transform_indices = @transform_3, window_bounds = array<i64: 1, 64>}, {pipeline_mode = #tpu.pipeline_mode<synchronous>, transform_indices = @transform_4, window_bounds = array<i64: 24, 64>}, {transform_indices = @transform_5, window_bounds = array<i64: 1, 1, 64>}, {transform_indices = @transform_6, window_bounds = array<i64: 1, 1, 64>}, {transform_indices = @transform_7, window_bounds = array<i64: 1, 4, 64, 16>}, {transform_indices = @transform_8, window_bounds = array<i64: 1, 4, 64, 16>}, {transform_indices = @transform_9, window_bounds = array<i64: 1, 4, 64, 16>}, {transform_indices = @transform_10, window_bounds = array<i64: 1, 4, 16>}, {transform_indices = @transform_11, window_bounds = array<i64: 1, 4, 16>}, {transform_indices = @transform_12, window_bounds = array<i64: 1, 4, 16>}, {transform_indices = @transform_13, window_bounds = array<i64: 1, 64, 64>}, {transform_indices = @transform_14, window_bounds = array<i64: 1, 1, 64>}, {transform_indices = @transform_15, window_bounds = array<i64: 1, 1, 64>}, {transform_indices = @transform_16, window_bounds = array<i64: 1, 1, 64>}, {transform_indices = @transform_17, window_bounds = array<i64: 1, 64, 128>}, {transform_indices = @transform_18, window_bounds = array<i64: 1, 1, 128>}, {transform_indices = @transform_19, window_bounds = array<i64: 1, 128, 64>}, {transform_indices = @transform_20, window_bounds = array<i64: 1, 1, 64>}, {pipeline_mode = #tpu.pipeline_mode<synchronous>, transform_indices = @transform_21, window_bounds = array<i64: 1, 64>}, {pipeline_mode = #tpu.pipeline_mode<synchronous>, transform_indices = @transform_22, window_bounds = array<i64: 1, 64>}, {pipeline_mode = #tpu.pipeline_mode<synchronous>, transform_indices = @transform_23, window_bounds = array<i64: 64, 128>}, {pipeline_mode = #tpu.pipeline_mode<synchronous>, transform_indices = @transform_24, window_bounds = array<i64: 1, 128>}, {transform_indices = @transform_25, window_bounds = array<i64: 1, 1, 128>}]} {
    %c0_i32 = arith.constant 0 : i32
    %0 = arith.cmpi eq, %arg1, %c0_i32 : i32
    %1 = arith.extui %0 : i1 to i32
    %c0_i32_0 = arith.constant 0 : i32
    %2 = arith.cmpi ne, %1, %c0_i32_0 : i32
    scf.if %2 {
      %c0_139 = arith.constant 0 : index
      %c0_140 = arith.constant 0 : index
      %c0_141 = arith.constant 0 : index
      %250 = vector.load %arg2[%c0_139, %c0_140, %c0_141] : memref<1x16x48xf32, #tpu.memory_space<vmem>>, vector<1x16x48xf32>
      %251 = vector.shape_cast %250 : vector<1x16x48xf32> to vector<16x48xf32>
      %c0_142 = arith.constant 0 : index
      %c0_143 = arith.constant 0 : index
      %252 = vector.load %arg3[%c0_142, %c0_143] : memref<48x64xf32, #tpu.memory_space<vmem>>, vector<48x64xf32>
      %cst_144 = arith.constant dense<0.000000e+00> : vector<16x64xf32>
      %253 = tpu.matmul %251, %252, %cst_144 {dimension_numbers = #tpu.dot_dimension_numbers<[1], [0], [0], [1], [0, 0, 1, 1], [], []>} : vector<16x48xf32>, vector<48x64xf32>, vector<16x64xf32> -> vector<16x64xf32>
      %c0_145 = arith.constant 0 : index
      %c0_146 = arith.constant 0 : index
      %254 = vector.load %arg4[%c0_145, %c0_146] : memref<1x64xf32, #tpu.memory_space<vmem>>, vector<1x64xf32>
      %255 = vector.broadcast %254 : vector<1x64xf32> to vector<16x64xf32>
      %256 = arith.addf %253, %255 : vector<16x64xf32>
      %c0_147 = arith.constant 0 : index
      %c0_148 = arith.constant 0 : index
      %257 = vector.load %arg5[%c0_147, %c0_148] : memref<1x64xf32, #tpu.memory_space<vmem>>, vector<1x64xf32>
      %cst_149 = arith.constant 0.000000e+00 : f32
      %258 = vector.broadcast %cst_149 : f32 to vector<7x64xf32>
      %259 = tpu.concatenate %257, %256, %258 in 0 : vector<1x64xf32>, vector<16x64xf32>, vector<7x64xf32> -> vector<24x64xf32>
      %c0_150 = arith.constant 0 : index
      %c0_151 = arith.constant 0 : index
      %260 = vector.load %arg6[%c0_150, %c0_151] : memref<24x64xf32, #tpu.memory_space<vmem>>, vector<24x64xf32>
      %261 = arith.addf %259, %260 : vector<24x64xf32>
      %c0_152 = arith.constant 0 : index
      %c0_153 = arith.constant 0 : index
      %262 = vector.load %arg28[%c0_152, %c0_153] : memref<24x64xf32, #tpu.memory_space<vmem>>, vector<24x64xf32>
      tpu.vector_store %arg28[%c0_152, %c0_153], %261 {strides = array<i32>} : memref<24x64xf32, #tpu.memory_space<vmem>>, vector<24x64xf32>,
    } else {
    }
    %c0 = arith.constant 0 : index
    %c0_1 = arith.constant 0 : index
    %3 = vector.load %arg28[%c0, %c0_1] : memref<24x64xf32, #tpu.memory_space<vmem>>, vector<24x64xf32>
    %c0_2 = arith.constant 0 : index
    %c0_3 = arith.constant 0 : index
    %c0_4 = arith.constant 0 : index
    %4 = vector.load %arg7[%c0_2, %c0_3, %c0_4] : memref<1x1x64xf32, #tpu.memory_space<vmem>>, vector<1x1x64xf32>
    %5 = vector.shape_cast %4 : vector<1x1x64xf32> to vector<1x64xf32>
    %c0_5 = arith.constant 0 : index
    %c0_6 = arith.constant 0 : index
    %c0_7 = arith.constant 0 : index
    %6 = vector.load %arg8[%c0_5, %c0_6, %c0_7] : memref<1x1x64xf32, #tpu.memory_space<vmem>>, vector<1x1x64xf32>
    %7 = vector.shape_cast %6 : vector<1x1x64xf32> to vector<1x64xf32>
    %cst = arith.constant dense<0.000000e+00> : vector<24xf32>
    %8 = vector.multi_reduction <add>, %3, %cst [1] : vector<24x64xf32> to vector<24xf32>
    %9 = vector.shape_cast %8 : vector<24xf32> to vector<24x1xf32>
    %cst_8 = arith.constant 6.400000e+01 : f32
    %10 = vector.broadcast %cst_8 : f32 to vector<24x1xf32>
    %11 = arith.divf %9, %10 : vector<24x1xf32>
    %12 = vector.broadcast %11 : vector<24x1xf32> to vector<24x64xf32>
    %13 = arith.subf %3, %12 : vector<24x64xf32>
    %14 = arith.mulf %13, %13 : vector<24x64xf32>
    %cst_9 = arith.constant dense<0.000000e+00> : vector<24xf32>
    %15 = vector.multi_reduction <add>, %14, %cst_9 [1] : vector<24x64xf32> to vector<24xf32>
    %16 = vector.shape_cast %15 : vector<24xf32> to vector<24x1xf32>
    %cst_10 = arith.constant 6.400000e+01 : f32
    %17 = vector.broadcast %cst_10 : f32 to vector<24x1xf32>
    %18 = arith.divf %16, %17 : vector<24x1xf32>
    %19 = vector.broadcast %11 : vector<24x1xf32> to vector<24x64xf32>
    %20 = arith.subf %3, %19 : vector<24x64xf32>
    %cst_11 = arith.constant 9.99999974E-6 : f32
    %21 = vector.broadcast %cst_11 : f32 to vector<24x1xf32>
    %22 = arith.addf %18, %21 : vector<24x1xf32>
    %23 = math.rsqrt %22 : vector<24x1xf32>
    %24 = vector.broadcast %23 : vector<24x1xf32> to vector<24x64xf32>
    %25 = arith.mulf %20, %24 : vector<24x64xf32>
    %26 = vector.broadcast %5 : vector<1x64xf32> to vector<24x64xf32>
    %27 = arith.mulf %25, %26 : vector<24x64xf32>
    %28 = vector.broadcast %7 : vector<1x64xf32> to vector<24x64xf32>
    %29 = arith.addf %27, %28 : vector<24x64xf32>
    %30 = arith.truncf %29 : vector<24x64xf32> to vector<24x64xbf16>
    %31 = tpu.iota {dimensions = array<i32: 1>} : vector<24x24xi32>
    %c17_i32 = arith.constant 17 : i32
    %32 = vector.broadcast %c17_i32 : i32 to vector<24x24xi32>
    %33 = arith.cmpi slt, %31, %32 : vector<24x24xi32>
    %cst_12 = arith.constant 0.000000e+00 : f32
    %cst_13 = arith.constant -1.000000e+09 : f32
    %34 = vector.broadcast %cst_12 : f32 to vector<24x24xf32>
    %35 = vector.broadcast %cst_13 : f32 to vector<24x24xf32>
    %36 = arith.select %33, %34, %35 : vector<24x24xi1>, vector<24x24xf32>
    %c0_14 = arith.constant 0 : index
    %c0_15 = arith.constant 0 : index
    %c0_16 = arith.constant 0 : index
    %37 = vector.load %arg12[%c0_14, %c0_15, %c0_16] : memref<1x4x16xf32, #tpu.memory_space<vmem>>, vector<1x4x16xf32>
    %38 = vector.shape_cast %37 : vector<1x4x16xf32> to vector<4x16xf32>
    %c0_17 = arith.constant 0 : index
    %c0_18 = arith.constant 0 : index
    %c0_19 = arith.constant 0 : index
    %39 = vector.load %arg13[%c0_17, %c0_18, %c0_19] : memref<1x4x16xf32, #tpu.memory_space<vmem>>, vector<1x4x16xf32>
    %40 = vector.shape_cast %39 : vector<1x4x16xf32> to vector<4x16xf32>
    %c0_20 = arith.constant 0 : index
    %c0_21 = arith.constant 0 : index
    %c0_22 = arith.constant 0 : index
    %41 = vector.load %arg14[%c0_20, %c0_21, %c0_22] : memref<1x4x16xf32, #tpu.memory_space<vmem>>, vector<1x4x16xf32>
    %42 = vector.shape_cast %41 : vector<1x4x16xf32> to vector<4x16xf32>
    %c0_23 = arith.constant 0 : index
    %c0_24 = arith.constant 0 : index
    %c0_25 = arith.constant 0 : index
    %c0_26 = arith.constant 0 : index
    %43 = vector.load %arg9[%c0_23, %c0_24, %c0_25, %c0_26] : memref<1x4x64x16xbf16, #tpu.memory_space<vmem>>, vector<1x1x64x16xbf16>
    %44 = vector.shape_cast %43 : vector<1x1x64x16xbf16> to vector<64x16xbf16>
    %cst_27 = arith.constant dense<0.000000e+00> : vector<24x16xf32>
    %45 = tpu.matmul %30, %44, %cst_27 {dimension_numbers = #tpu.dot_dimension_numbers<[1], [0], [0], [1], [0, 0, 1, 1], [], []>} : vector<24x64xbf16>, vector<64x16xbf16>, vector<24x16xf32> -> vector<24x16xf32>
    %46 = vector.extract_strided_slice %38 {offsets = [0, 0], sizes = [1, 16], strides = [1, 1]} : vector<4x16xf32> to vector<1x16xf32>
    %47 = vector.broadcast %46 : vector<1x16xf32> to vector<24x16xf32>
    %48 = arith.addf %45, %47 : vector<24x16xf32>
    %c0_28 = arith.constant 0 : index
    %c0_29 = arith.constant 0 : index
    %c0_30 = arith.constant 0 : index
    %c0_31 = arith.constant 0 : index
    %49 = vector.load %arg10[%c0_28, %c0_29, %c0_30, %c0_31] : memref<1x4x64x16xbf16, #tpu.memory_space<vmem>>, vector<1x1x64x16xbf16>
    %50 = vector.shape_cast %49 : vector<1x1x64x16xbf16> to vector<64x16xbf16>
    %cst_32 = arith.constant dense<0.000000e+00> : vector<24x16xf32>
    %51 = tpu.matmul %30, %50, %cst_32 {dimension_numbers = #tpu.dot_dimension_numbers<[1], [0], [0], [1], [0, 0, 1, 1], [], []>} : vector<24x64xbf16>, vector<64x16xbf16>, vector<24x16xf32> -> vector<24x16xf32>
    %52 = vector.extract_strided_slice %40 {offsets = [0, 0], sizes = [1, 16], strides = [1, 1]} : vector<4x16xf32> to vector<1x16xf32>
    %53 = vector.broadcast %52 : vector<1x16xf32> to vector<24x16xf32>
    %54 = arith.addf %51, %53 : vector<24x16xf32>
    %c0_33 = arith.constant 0 : index
    %c0_34 = arith.constant 0 : index
    %c0_35 = arith.constant 0 : index
    %c0_36 = arith.constant 0 : index
    %55 = vector.load %arg11[%c0_33, %c0_34, %c0_35, %c0_36] : memref<1x4x64x16xbf16, #tpu.memory_space<vmem>>, vector<1x1x64x16xbf16>
    %56 = vector.shape_cast %55 : vector<1x1x64x16xbf16> to vector<64x16xbf16>
    %cst_37 = arith.constant dense<0.000000e+00> : vector<24x16xf32>
    %57 = tpu.matmul %30, %56, %cst_37 {dimension_numbers = #tpu.dot_dimension_numbers<[1], [0], [0], [1], [0, 0, 1, 1], [], []>} : vector<24x64xbf16>, vector<64x16xbf16>, vector<24x16xf32> -> vector<24x16xf32>
    %58 = vector.extract_strided_slice %42 {offsets = [0, 0], sizes = [1, 16], strides = [1, 1]} : vector<4x16xf32> to vector<1x16xf32>
    %59 = vector.broadcast %58 : vector<1x16xf32> to vector<24x16xf32>
    %60 = arith.addf %57, %59 : vector<24x16xf32>
    %cst_38 = arith.constant dense<0.000000e+00> : vector<24x24xf32>
    %61 = tpu.matmul %48, %54, %cst_38 {dimension_numbers = #tpu.dot_dimension_numbers<[1], [1], [0], [0], [0, 0, 1, 0], [], []>} : vector<24x16xf32>, vector<24x16xf32>, vector<24x24xf32> -> vector<24x24xf32>
    %62 = arith.addf %61, %36 : vector<24x24xf32>
    %cst_39 = arith.constant dense<0xFF800000> : vector<24xf32>
    %63 = vector.multi_reduction <maximumf>, %62, %cst_39 [1] : vector<24x24xf32> to vector<24xf32>
    %64 = vector.shape_cast %63 : vector<24xf32> to vector<24x1xf32>
    %65 = vector.broadcast %64 : vector<24x1xf32> to vector<24x24xf32>
    %66 = arith.subf %62, %65 : vector<24x24xf32>
    %67 = math.exp %66 : vector<24x24xf32>
    %cst_40 = arith.constant dense<0.000000e+00> : vector<24xf32>
    %68 = vector.multi_reduction <add>, %67, %cst_40 [1] : vector<24x24xf32> to vector<24xf32>
    %69 = vector.shape_cast %68 : vector<24xf32> to vector<24x1xf32>
    %70 = tpu.reciprocal %69 {approx = true} : vector<24x1xf32> -> vector<24x1xf32>
    %71 = vector.broadcast %70 : vector<24x1xf32> to vector<24x24xf32>
    %72 = arith.mulf %67, %71 : vector<24x24xf32>
    %cst_41 = arith.constant dense<0.000000e+00> : vector<24x16xf32>
    %73 = tpu.matmul %72, %60, %cst_41 {dimension_numbers = #tpu.dot_dimension_numbers<[1], [0], [0], [1], [0, 0, 1, 1], [], []>} : vector<24x24xf32>, vector<24x16xf32>, vector<24x16xf32> -> vector<24x16xf32>
    %c0_42 = arith.constant 0 : index
    %c1 = arith.constant 1 : index
    %c0_43 = arith.constant 0 : index
    %c0_44 = arith.constant 0 : index
    %74 = vector.load %arg9[%c0_42, %c1, %c0_43, %c0_44] : memref<1x4x64x16xbf16, #tpu.memory_space<vmem>>, vector<1x1x64x16xbf16>
    %75 = vector.shape_cast %74 : vector<1x1x64x16xbf16> to vector<64x16xbf16>
    %cst_45 = arith.constant dense<0.000000e+00> : vector<24x16xf32>
    %76 = tpu.matmul %30, %75, %cst_45 {dimension_numbers = #tpu.dot_dimension_numbers<[1], [0], [0], [1], [0, 0, 1, 1], [], []>} : vector<24x64xbf16>, vector<64x16xbf16>, vector<24x16xf32> -> vector<24x16xf32>
    %77 = vector.extract_strided_slice %38 {offsets = [1, 0], sizes = [1, 16], strides = [1, 1]} : vector<4x16xf32> to vector<1x16xf32>
    %78 = vector.broadcast %77 : vector<1x16xf32> to vector<24x16xf32>
    %79 = arith.addf %76, %78 : vector<24x16xf32>
    %c0_46 = arith.constant 0 : index
    %c1_47 = arith.constant 1 : index
    %c0_48 = arith.constant 0 : index
    %c0_49 = arith.constant 0 : index
    %80 = vector.load %arg10[%c0_46, %c1_47, %c0_48, %c0_49] : memref<1x4x64x16xbf16, #tpu.memory_space<vmem>>, vector<1x1x64x16xbf16>
    %81 = vector.shape_cast %80 : vector<1x1x64x16xbf16> to vector<64x16xbf16>
    %cst_50 = arith.constant dense<0.000000e+00> : vector<24x16xf32>
    %82 = tpu.matmul %30, %81, %cst_50 {dimension_numbers = #tpu.dot_dimension_numbers<[1], [0], [0], [1], [0, 0, 1, 1], [], []>} : vector<24x64xbf16>, vector<64x16xbf16>, vector<24x16xf32> -> vector<24x16xf32>
    %83 = vector.extract_strided_slice %40 {offsets = [1, 0], sizes = [1, 16], strides = [1, 1]} : vector<4x16xf32> to vector<1x16xf32>
    %84 = vector.broadcast %83 : vector<1x16xf32> to vector<24x16xf32>
    %85 = arith.addf %82, %84 : vector<24x16xf32>
    %c0_51 = arith.constant 0 : index
    %c1_52 = arith.constant 1 : index
    %c0_53 = arith.constant 0 : index
    %c0_54 = arith.constant 0 : index
    %86 = vector.load %arg11[%c0_51, %c1_52, %c0_53, %c0_54] : memref<1x4x64x16xbf16, #tpu.memory_space<vmem>>, vector<1x1x64x16xbf16>
    %87 = vector.shape_cast %86 : vector<1x1x64x16xbf16> to vector<64x16xbf16>
    %cst_55 = arith.constant dense<0.000000e+00> : vector<24x16xf32>
    %88 = tpu.matmul %30, %87, %cst_55 {dimension_numbers = #tpu.dot_dimension_numbers<[1], [0], [0], [1], [0, 0, 1, 1], [], []>} : vector<24x64xbf16>, vector<64x16xbf16>, vector<24x16xf32> -> vector<24x16xf32>
    %89 = vector.extract_strided_slice %42 {offsets = [1, 0], sizes = [1, 16], strides = [1, 1]} : vector<4x16xf32> to vector<1x16xf32>
    %90 = vector.broadcast %89 : vector<1x16xf32> to vector<24x16xf32>
    %91 = arith.addf %88, %90 : vector<24x16xf32>
    %cst_56 = arith.constant dense<0.000000e+00> : vector<24x24xf32>
    %92 = tpu.matmul %79, %85, %cst_56 {dimension_numbers = #tpu.dot_dimension_numbers<[1], [1], [0], [0], [0, 0, 1, 0], [], []>} : vector<24x16xf32>, vector<24x16xf32>, vector<24x24xf32> -> vector<24x24xf32>
    %93 = arith.addf %92, %36 : vector<24x24xf32>
    %cst_57 = arith.constant dense<0xFF800000> : vector<24xf32>
    %94 = vector.multi_reduction <maximumf>, %93, %cst_57 [1] : vector<24x24xf32> to vector<24xf32>
    %95 = vector.shape_cast %94 : vector<24xf32> to vector<24x1xf32>
    %96 = vector.broadcast %95 : vector<24x1xf32> to vector<24x24xf32>
    %97 = arith.subf %93, %96 : vector<24x24xf32>
    %98 = math.exp %97 : vector<24x24xf32>
    %cst_58 = arith.constant dense<0.000000e+00> : vector<24xf32>
    %99 = vector.multi_reduction <add>, %98, %cst_58 [1] : vector<24x24xf32> to vector<24xf32>
    %100 = vector.shape_cast %99 : vector<24xf32> to vector<24x1xf32>
    %101 = tpu.reciprocal %100 {approx = true} : vector<24x1xf32> -> vector<24x1xf32>
    %102 = vector.broadcast %101 : vector<24x1xf32> to vector<24x24xf32>
    %103 = arith.mulf %98, %102 : vector<24x24xf32>
    %cst_59 = arith.constant dense<0.000000e+00> : vector<24x16xf32>
    %104 = tpu.matmul %103, %91, %cst_59 {dimension_numbers = #tpu.dot_dimension_numbers<[1], [0], [0], [1], [0, 0, 1, 1], [], []>} : vector<24x24xf32>, vector<24x16xf32>, vector<24x16xf32> -> vector<24x16xf32>
    %c0_60 = arith.constant 0 : index
    %c2 = arith.constant 2 : index
    %c0_61 = arith.constant 0 : index
    %c0_62 = arith.constant 0 : index
    %105 = vector.load %arg9[%c0_60, %c2, %c0_61, %c0_62] : memref<1x4x64x16xbf16, #tpu.memory_space<vmem>>, vector<1x1x64x16xbf16>
    %106 = vector.shape_cast %105 : vector<1x1x64x16xbf16> to vector<64x16xbf16>
    %cst_63 = arith.constant dense<0.000000e+00> : vector<24x16xf32>
    %107 = tpu.matmul %30, %106, %cst_63 {dimension_numbers = #tpu.dot_dimension_numbers<[1], [0], [0], [1], [0, 0, 1, 1], [], []>} : vector<24x64xbf16>, vector<64x16xbf16>, vector<24x16xf32> -> vector<24x16xf32>
    %108 = vector.extract_strided_slice %38 {offsets = [2, 0], sizes = [1, 16], strides = [1, 1]} : vector<4x16xf32> to vector<1x16xf32>
    %109 = vector.broadcast %108 : vector<1x16xf32> to vector<24x16xf32>
    %110 = arith.addf %107, %109 : vector<24x16xf32>
    %c0_64 = arith.constant 0 : index
    %c2_65 = arith.constant 2 : index
    %c0_66 = arith.constant 0 : index
    %c0_67 = arith.constant 0 : index
    %111 = vector.load %arg10[%c0_64, %c2_65, %c0_66, %c0_67] : memref<1x4x64x16xbf16, #tpu.memory_space<vmem>>, vector<1x1x64x16xbf16>
    %112 = vector.shape_cast %111 : vector<1x1x64x16xbf16> to vector<64x16xbf16>
    %cst_68 = arith.constant dense<0.000000e+00> : vector<24x16xf32>
    %113 = tpu.matmul %30, %112, %cst_68 {dimension_numbers = #tpu.dot_dimension_numbers<[1], [0], [0], [1], [0, 0, 1, 1], [], []>} : vector<24x64xbf16>, vector<64x16xbf16>, vector<24x16xf32> -> vector<24x16xf32>
    %114 = vector.extract_strided_slice %40 {offsets = [2, 0], sizes = [1, 16], strides = [1, 1]} : vector<4x16xf32> to vector<1x16xf32>
    %115 = vector.broadcast %114 : vector<1x16xf32> to vector<24x16xf32>
    %116 = arith.addf %113, %115 : vector<24x16xf32>
    %c0_69 = arith.constant 0 : index
    %c2_70 = arith.constant 2 : index
    %c0_71 = arith.constant 0 : index
    %c0_72 = arith.constant 0 : index
    %117 = vector.load %arg11[%c0_69, %c2_70, %c0_71, %c0_72] : memref<1x4x64x16xbf16, #tpu.memory_space<vmem>>, vector<1x1x64x16xbf16>
    %118 = vector.shape_cast %117 : vector<1x1x64x16xbf16> to vector<64x16xbf16>
    %cst_73 = arith.constant dense<0.000000e+00> : vector<24x16xf32>
    %119 = tpu.matmul %30, %118, %cst_73 {dimension_numbers = #tpu.dot_dimension_numbers<[1], [0], [0], [1], [0, 0, 1, 1], [], []>} : vector<24x64xbf16>, vector<64x16xbf16>, vector<24x16xf32> -> vector<24x16xf32>
    %120 = vector.extract_strided_slice %42 {offsets = [2, 0], sizes = [1, 16], strides = [1, 1]} : vector<4x16xf32> to vector<1x16xf32>
    %121 = vector.broadcast %120 : vector<1x16xf32> to vector<24x16xf32>
    %122 = arith.addf %119, %121 : vector<24x16xf32>
    %cst_74 = arith.constant dense<0.000000e+00> : vector<24x24xf32>
    %123 = tpu.matmul %110, %116, %cst_74 {dimension_numbers = #tpu.dot_dimension_numbers<[1], [1], [0], [0], [0, 0, 1, 0], [], []>} : vector<24x16xf32>, vector<24x16xf32>, vector<24x24xf32> -> vector<24x24xf32>
    %124 = arith.addf %123, %36 : vector<24x24xf32>
    %cst_75 = arith.constant dense<0xFF800000> : vector<24xf32>
    %125 = vector.multi_reduction <maximumf>, %124, %cst_75 [1] : vector<24x24xf32> to vector<24xf32>
    %126 = vector.shape_cast %125 : vector<24xf32> to vector<24x1xf32>
    %127 = vector.broadcast %126 : vector<24x1xf32> to vector<24x24xf32>
    %128 = arith.subf %124, %127 : vector<24x24xf32>
    %129 = math.exp %128 : vector<24x24xf32>
    %cst_76 = arith.constant dense<0.000000e+00> : vector<24xf32>
    %130 = vector.multi_reduction <add>, %129, %cst_76 [1] : vector<24x24xf32> to vector<24xf32>
    %131 = vector.shape_cast %130 : vector<24xf32> to vector<24x1xf32>
    %132 = tpu.reciprocal %131 {approx = true} : vector<24x1xf32> -> vector<24x1xf32>
    %133 = vector.broadcast %132 : vector<24x1xf32> to vector<24x24xf32>
    %134 = arith.mulf %129, %133 : vector<24x24xf32>
    %cst_77 = arith.constant dense<0.000000e+00> : vector<24x16xf32>
    %135 = tpu.matmul %134, %122, %cst_77 {dimension_numbers = #tpu.dot_dimension_numbers<[1], [0], [0], [1], [0, 0, 1, 1], [], []>} : vector<24x24xf32>, vector<24x16xf32>, vector<24x16xf32> -> vector<24x16xf32>
    %c0_78 = arith.constant 0 : index
    %c3 = arith.constant 3 : index
    %c0_79 = arith.constant 0 : index
    %c0_80 = arith.constant 0 : index
    %136 = vector.load %arg9[%c0_78, %c3, %c0_79, %c0_80] : memref<1x4x64x16xbf16, #tpu.memory_space<vmem>>, vector<1x1x64x16xbf16>
    %137 = vector.shape_cast %136 : vector<1x1x64x16xbf16> to vector<64x16xbf16>
    %cst_81 = arith.constant dense<0.000000e+00> : vector<24x16xf32>
    %138 = tpu.matmul %30, %137, %cst_81 {dimension_numbers = #tpu.dot_dimension_numbers<[1], [0], [0], [1], [0, 0, 1, 1], [], []>} : vector<24x64xbf16>, vector<64x16xbf16>, vector<24x16xf32> -> vector<24x16xf32>
    %139 = vector.extract_strided_slice %38 {offsets = [3, 0], sizes = [1, 16], strides = [1, 1]} : vector<4x16xf32> to vector<1x16xf32>
    %140 = vector.broadcast %139 : vector<1x16xf32> to vector<24x16xf32>
    %141 = arith.addf %138, %140 : vector<24x16xf32>
    %c0_82 = arith.constant 0 : index
    %c3_83 = arith.constant 3 : index
    %c0_84 = arith.constant 0 : index
    %c0_85 = arith.constant 0 : index
    %142 = vector.load %arg10[%c0_82, %c3_83, %c0_84, %c0_85] : memref<1x4x64x16xbf16, #tpu.memory_space<vmem>>, vector<1x1x64x16xbf16>
    %143 = vector.shape_cast %142 : vector<1x1x64x16xbf16> to vector<64x16xbf16>
    %cst_86 = arith.constant dense<0.000000e+00> : vector<24x16xf32>
    %144 = tpu.matmul %30, %143, %cst_86 {dimension_numbers = #tpu.dot_dimension_numbers<[1], [0], [0], [1], [0, 0, 1, 1], [], []>} : vector<24x64xbf16>, vector<64x16xbf16>, vector<24x16xf32> -> vector<24x16xf32>
    %145 = vector.extract_strided_slice %40 {offsets = [3, 0], sizes = [1, 16], strides = [1, 1]} : vector<4x16xf32> to vector<1x16xf32>
    %146 = vector.broadcast %145 : vector<1x16xf32> to vector<24x16xf32>
    %147 = arith.addf %144, %146 : vector<24x16xf32>
    %c0_87 = arith.constant 0 : index
    %c3_88 = arith.constant 3 : index
    %c0_89 = arith.constant 0 : index
    %c0_90 = arith.constant 0 : index
    %148 = vector.load %arg11[%c0_87, %c3_88, %c0_89, %c0_90] : memref<1x4x64x16xbf16, #tpu.memory_space<vmem>>, vector<1x1x64x16xbf16>
    %149 = vector.shape_cast %148 : vector<1x1x64x16xbf16> to vector<64x16xbf16>
    %cst_91 = arith.constant dense<0.000000e+00> : vector<24x16xf32>
    %150 = tpu.matmul %30, %149, %cst_91 {dimension_numbers = #tpu.dot_dimension_numbers<[1], [0], [0], [1], [0, 0, 1, 1], [], []>} : vector<24x64xbf16>, vector<64x16xbf16>, vector<24x16xf32> -> vector<24x16xf32>
    %151 = vector.extract_strided_slice %42 {offsets = [3, 0], sizes = [1, 16], strides = [1, 1]} : vector<4x16xf32> to vector<1x16xf32>
    %152 = vector.broadcast %151 : vector<1x16xf32> to vector<24x16xf32>
    %153 = arith.addf %150, %152 : vector<24x16xf32>
    %cst_92 = arith.constant dense<0.000000e+00> : vector<24x24xf32>
    %154 = tpu.matmul %141, %147, %cst_92 {dimension_numbers = #tpu.dot_dimension_numbers<[1], [1], [0], [0], [0, 0, 1, 0], [], []>} : vector<24x16xf32>, vector<24x16xf32>, vector<24x24xf32> -> vector<24x24xf32>
    %155 = arith.addf %154, %36 : vector<24x24xf32>
    %cst_93 = arith.constant dense<0xFF800000> : vector<24xf32>
    %156 = vector.multi_reduction <maximumf>, %155, %cst_93 [1] : vector<24x24xf32> to vector<24xf32>
    %157 = vector.shape_cast %156 : vector<24xf32> to vector<24x1xf32>
    %158 = vector.broadcast %157 : vector<24x1xf32> to vector<24x24xf32>
    %159 = arith.subf %155, %158 : vector<24x24xf32>
    %160 = math.exp %159 : vector<24x24xf32>
    %cst_94 = arith.constant dense<0.000000e+00> : vector<24xf32>
    %161 = vector.multi_reduction <add>, %160, %cst_94 [1] : vector<24x24xf32> to vector<24xf32>
    %162 = vector.shape_cast %161 : vector<24xf32> to vector<24x1xf32>
    %163 = tpu.reciprocal %162 {approx = true} : vector<24x1xf32> -> vector<24x1xf32>
    %164 = vector.broadcast %163 : vector<24x1xf32> to vector<24x24xf32>
    %165 = arith.mulf %160, %164 : vector<24x24xf32>
    %cst_95 = arith.constant dense<0.000000e+00> : vector<24x16xf32>
    %166 = tpu.matmul %165, %153, %cst_95 {dimension_numbers = #tpu.dot_dimension_numbers<[1], [0], [0], [1], [0, 0, 1, 1], [], []>} : vector<24x24xf32>, vector<24x16xf32>, vector<24x16xf32> -> vector<24x16xf32>
    %167 = tpu.concatenate %73, %104, %135, %166 in 1 : vector<24x16xf32>, vector<24x16xf32>, vector<24x16xf32>, vector<24x16xf32> -> vector<24x64xf32>
    %168 = arith.truncf %167 : vector<24x64xf32> to vector<24x64xbf16>
    %c0_96 = arith.constant 0 : index
    %c0_97 = arith.constant 0 : index
    %c0_98 = arith.constant 0 : index
    %169 = vector.load %arg15[%c0_96, %c0_97, %c0_98] : memref<1x64x64xbf16, #tpu.memory_space<vmem>>, vector<1x64x64xbf16>
    %170 = vector.shape_cast %169 : vector<1x64x64xbf16> to vector<64x64xbf16>
    %cst_99 = arith.constant dense<0.000000e+00> : vector<24x64xf32>
    %171 = tpu.matmul %168, %170, %cst_99 {dimension_numbers = #tpu.dot_dimension_numbers<[1], [0], [0], [1], [0, 0, 1, 1], [], []>} : vector<24x64xbf16>, vector<64x64xbf16>, vector<24x64xf32> -> vector<24x64xf32>
    %c0_100 = arith.constant 0 : index
    %c0_101 = arith.constant 0 : index
    %c0_102 = arith.constant 0 : index
    %172 = vector.load %arg16[%c0_100, %c0_101, %c0_102] : memref<1x1x64xf32, #tpu.memory_space<vmem>>, vector<1x1x64xf32>
    %173 = vector.shape_cast %172 : vector<1x1x64xf32> to vector<1x64xf32>
    %174 = vector.broadcast %173 : vector<1x64xf32> to vector<24x64xf32>
    %175 = arith.addf %171, %174 : vector<24x64xf32>
    %176 = arith.addf %175, %3 : vector<24x64xf32>
    %c0_103 = arith.constant 0 : index
    %c0_104 = arith.constant 0 : index
    %c0_105 = arith.constant 0 : index
    %177 = vector.load %arg17[%c0_103, %c0_104, %c0_105] : memref<1x1x64xf32, #tpu.memory_space<vmem>>, vector<1x1x64xf32>
    %178 = vector.shape_cast %177 : vector<1x1x64xf32> to vector<1x64xf32>
    %c0_106 = arith.constant 0 : index
    %c0_107 = arith.constant 0 : index
    %c0_108 = arith.constant 0 : index
    %179 = vector.load %arg18[%c0_106, %c0_107, %c0_108] : memref<1x1x64xf32, #tpu.memory_space<vmem>>, vector<1x1x64xf32>
    %180 = vector.shape_cast %179 : vector<1x1x64xf32> to vector<1x64xf32>
    %cst_109 = arith.constant dense<0.000000e+00> : vector<24xf32>
    %181 = vector.multi_reduction <add>, %176, %cst_109 [1] : vector<24x64xf32> to vector<24xf32>
    %182 = vector.shape_cast %181 : vector<24xf32> to vector<24x1xf32>
    %cst_110 = arith.constant 6.400000e+01 : f32
    %183 = vector.broadcast %cst_110 : f32 to vector<24x1xf32>
    %184 = arith.divf %182, %183 : vector<24x1xf32>
    %185 = vector.broadcast %184 : vector<24x1xf32> to vector<24x64xf32>
    %186 = arith.subf %176, %185 : vector<24x64xf32>
    %187 = arith.mulf %186, %186 : vector<24x64xf32>
    %cst_111 = arith.constant dense<0.000000e+00> : vector<24xf32>
    %188 = vector.multi_reduction <add>, %187, %cst_111 [1] : vector<24x64xf32> to vector<24xf32>
    %189 = vector.shape_cast %188 : vector<24xf32> to vector<24x1xf32>
    %cst_112 = arith.constant 6.400000e+01 : f32
    %190 = vector.broadcast %cst_112 : f32 to vector<24x1xf32>
    %191 = arith.divf %189, %190 : vector<24x1xf32>
    %192 = vector.broadcast %184 : vector<24x1xf32> to vector<24x64xf32>
    %193 = arith.subf %176, %192 : vector<24x64xf32>
    %cst_113 = arith.constant 9.99999974E-6 : f32
    %194 = vector.broadcast %cst_113 : f32 to vector<24x1xf32>
    %195 = arith.addf %191, %194 : vector<24x1xf32>
    %196 = math.rsqrt %195 : vector<24x1xf32>
    %197 = vector.broadcast %196 : vector<24x1xf32> to vector<24x64xf32>
    %198 = arith.mulf %193, %197 : vector<24x64xf32>
    %199 = vector.broadcast %178 : vector<1x64xf32> to vector<24x64xf32>
    %200 = arith.mulf %198, %199 : vector<24x64xf32>
    %201 = vector.broadcast %180 : vector<1x64xf32> to vector<24x64xf32>
    %202 = arith.addf %200, %201 : vector<24x64xf32>
    %203 = arith.truncf %202 : vector<24x64xf32> to vector<24x64xbf16>
    %c0_114 = arith.constant 0 : index
    %c0_115 = arith.constant 0 : index
    %c0_116 = arith.constant 0 : index
    %204 = vector.load %arg19[%c0_114, %c0_115, %c0_116] : memref<1x64x128xbf16, #tpu.memory_space<vmem>>, vector<1x64x128xbf16>
    %205 = vector.shape_cast %204 : vector<1x64x128xbf16> to vector<64x128xbf16>
    %cst_117 = arith.constant dense<0.000000e+00> : vector<24x128xf32>
    %206 = tpu.matmul %203, %205, %cst_117 {dimension_numbers = #tpu.dot_dimension_numbers<[1], [0], [0], [1], [0, 0, 1, 1], [], []>} : vector<24x64xbf16>, vector<64x128xbf16>, vector<24x128xf32> -> vector<24x128xf32>
    %c0_118 = arith.constant 0 : index
    %c0_119 = arith.constant 0 : index
    %c0_120 = arith.constant 0 : index
    %207 = vector.load %arg20[%c0_118, %c0_119, %c0_120] : memref<1x1x128xf32, #tpu.memory_space<vmem>>, vector<1x1x128xf32>
    %208 = vector.shape_cast %207 : vector<1x1x128xf32> to vector<1x128xf32>
    %209 = vector.broadcast %208 : vector<1x128xf32> to vector<24x128xf32>
    %210 = arith.addf %206, %209 : vector<24x128xf32>
    %cst_121 = arith.constant 5.000000e-01 : f32
    %211 = vector.broadcast %cst_121 : f32 to vector<24x128xf32>
    %212 = arith.mulf %211, %210 : vector<24x128xf32>
    %cst_122 = arith.constant 4.471500e-02 : f32
    %213 = vector.broadcast %cst_122 : f32 to vector<24x128xf32>
    %214 = arith.mulf %213, %210 : vector<24x128xf32>
    %215 = arith.mulf %214, %210 : vector<24x128xf32>
    %216 = arith.mulf %215, %210 : vector<24x128xf32>
    %217 = arith.addf %210, %216 : vector<24x128xf32>
    %cst_123 = arith.constant 0.797884583 : f32
    %218 = vector.broadcast %cst_123 : f32 to vector<24x128xf32>
    %219 = arith.mulf %218, %217 : vector<24x128xf32>
    %220 = math.tanh %219 : vector<24x128xf32>
    %cst_124 = arith.constant 1.000000e+00 : f32
    %221 = vector.broadcast %cst_124 : f32 to vector<24x128xf32>
    %222 = arith.addf %221, %220 : vector<24x128xf32>
    %223 = arith.mulf %212, %222 : vector<24x128xf32>
    %224 = arith.truncf %223 : vector<24x128xf32> to vector<24x128xbf16>
    %c0_125 = arith.constant 0 : index
    %c0_126 = arith.constant 0 : index
    %c0_127 = arith.constant 0 : index
    %225 = vector.load %arg21[%c0_125, %c0_126, %c0_127] : memref<1x128x64xbf16, #tpu.memory_space<vmem>>, vector<1x128x64xbf16>
    %226 = vector.shape_cast %225 : vector<1x128x64xbf16> to vector<128x64xbf16>
    %cst_128 = arith.constant dense<0.000000e+00> : vector<24x64xf32>
    %227 = tpu.matmul %224, %226, %cst_128 {dimension_numbers = #tpu.dot_dimension_numbers<[1], [0], [0], [1], [0, 0, 1, 1], [], []>} : vector<24x128xbf16>, vector<128x64xbf16>, vector<24x64xf32> -> vector<24x64xf32>
    %c0_129 = arith.constant 0 : index
    %c0_130 = arith.constant 0 : index
    %c0_131 = arith.constant 0 : index
    %228 = vector.load %arg22[%c0_129, %c0_130, %c0_131] : memref<1x1x64xf32, #tpu.memory_space<vmem>>, vector<1x1x64xf32>
    %229 = vector.shape_cast %228 : vector<1x1x64xf32> to vector<1x64xf32>
    %230 = vector.broadcast %229 : vector<1x64xf32> to vector<24x64xf32>
    %231 = arith.addf %227, %230 : vector<24x64xf32>
    %cst_132 = arith.constant 5.000000e-01 : f32
    %232 = vector.broadcast %cst_132 : f32 to vector<24x64xf32>
    %233 = arith.mulf %232, %231 : vector<24x64xf32>
    %cst_133 = arith.constant 4.471500e-02 : f32
    %234 = vector.broadcast %cst_133 : f32 to vector<24x64xf32>
    %235 = arith.mulf %234, %231 : vector<24x64xf32>
    %236 = arith.mulf %235, %231 : vector<24x64xf32>
    %237 = arith.mulf %236, %231 : vector<24x64xf32>
    %238 = arith.addf %231, %237 : vector<24x64xf32>
    %cst_134 = arith.constant 0.797884583 : f32
    %239 = vector.broadcast %cst_134 : f32 to vector<24x64xf32>
    %240 = arith.mulf %239, %238 : vector<24x64xf32>
    %241 = math.tanh %240 : vector<24x64xf32>
    %cst_135 = arith.constant 1.000000e+00 : f32
    %242 = vector.broadcast %cst_135 : f32 to vector<24x64xf32>
    %243 = arith.addf %242, %241 : vector<24x64xf32>
    %244 = arith.mulf %233, %243 : vector<24x64xf32>
    %245 = arith.addf %244, %176 : vector<24x64xf32>
    %c0_136 = arith.constant 0 : index
    %c0_137 = arith.constant 0 : index
    %246 = vector.load %arg28[%c0_136, %c0_137] : memref<24x64xf32, #tpu.memory_space<vmem>>, vector<24x64xf32>
    tpu.vector_store %arg28[%c0_136, %c0_137], %245 {strides = array<i32>} : memref<24x64xf32, #tpu.memory_space<vmem>>, vector<24x64xf32>,
    %c1_i32 = arith.constant 1 : i32
    %247 = arith.cmpi eq, %arg1, %c1_i32 : i32
    %248 = arith.extui %247 : i1 to i32
    %c0_i32_138 = arith.constant 0 : i32
    %249 = arith.cmpi ne, %248, %c0_i32_138 : i32
    scf.if %249 {
      %250 = vector.extract_strided_slice %245 {offsets = [0, 0], sizes = [1, 64], strides = [1, 1]} : vector<24x64xf32> to vector<1x64xf32>
      %c0_139 = arith.constant 0 : index
      %c0_140 = arith.constant 0 : index
      %251 = vector.load %arg23[%c0_139, %c0_140] : memref<1x64xf32, #tpu.memory_space<vmem>>, vector<1x64xf32>
      %c0_141 = arith.constant 0 : index
      %c0_142 = arith.constant 0 : index
      %252 = vector.load %arg24[%c0_141, %c0_142] : memref<1x64xf32, #tpu.memory_space<vmem>>, vector<1x64xf32>
      %cst_143 = arith.constant dense<0.000000e+00> : vector<1xf32>
      %253 = vector.multi_reduction <add>, %250, %cst_143 [1] : vector<1x64xf32> to vector<1xf32>
      %254 = vector.shape_cast %253 : vector<1xf32> to vector<1x1xf32>
      %cst_144 = arith.constant 6.400000e+01 : f32
      %255 = vector.broadcast %cst_144 : f32 to vector<1x1xf32>
      %256 = arith.divf %254, %255 : vector<1x1xf32>
      %257 = vector.broadcast %256 : vector<1x1xf32> to vector<1x64xf32>
      %258 = arith.subf %250, %257 : vector<1x64xf32>
      %259 = arith.mulf %258, %258 : vector<1x64xf32>
      %cst_145 = arith.constant dense<0.000000e+00> : vector<1xf32>
      %260 = vector.multi_reduction <add>, %259, %cst_145 [1] : vector<1x64xf32> to vector<1xf32>
      %261 = vector.shape_cast %260 : vector<1xf32> to vector<1x1xf32>
      %cst_146 = arith.constant 6.400000e+01 : f32
      %262 = vector.broadcast %cst_146 : f32 to vector<1x1xf32>
      %263 = arith.divf %261, %262 : vector<1x1xf32>
      %264 = vector.broadcast %256 : vector<1x1xf32> to vector<1x64xf32>
      %265 = arith.subf %250, %264 : vector<1x64xf32>
      %cst_147 = arith.constant 9.99999974E-6 : f32
      %266 = vector.broadcast %cst_147 : f32 to vector<1x1xf32>
      %267 = arith.addf %263, %266 : vector<1x1xf32>
      %268 = math.rsqrt %267 : vector<1x1xf32>
      %269 = vector.broadcast %268 : vector<1x1xf32> to vector<1x64xf32>
      %270 = arith.mulf %265, %269 : vector<1x64xf32>
      %271 = arith.mulf %270, %251 : vector<1x64xf32>
      %272 = arith.addf %271, %252 : vector<1x64xf32>
      %c0_148 = arith.constant 0 : index
      %c0_149 = arith.constant 0 : index
      %273 = vector.load %arg25[%c0_148, %c0_149] : memref<64x128xf32, #tpu.memory_space<vmem>>, vector<64x128xf32>
      %cst_150 = arith.constant dense<0.000000e+00> : vector<1x128xf32>
      %274 = tpu.matmul %272, %273, %cst_150 {dimension_numbers = #tpu.dot_dimension_numbers<[1], [0], [0], [1], [0, 0, 1, 1], [], []>} : vector<1x64xf32>, vector<64x128xf32>, vector<1x128xf32> -> vector<1x128xf32>
      %c0_151 = arith.constant 0 : index
      %c0_152 = arith.constant 0 : index
      %275 = vector.load %arg26[%c0_151, %c0_152] : memref<1x128xf32, #tpu.memory_space<vmem>>, vector<1x128xf32>
      %276 = arith.addf %274, %275 : vector<1x128xf32>
      %c0_153 = arith.constant 0 : index
      %c0_154 = arith.constant 0 : index
      %c0_155 = arith.constant 0 : index
      %277 = vector.load %arg27[%c0_153, %c0_154, %c0_155] : memref<1x1x128xf32, #tpu.memory_space<vmem>>, vector<1x1x128xf32>
      %278 = vector.shape_cast %277 : vector<1x1x128xf32> to vector<1x128xf32>
      %279 = vector.shape_cast %276 : vector<1x128xf32> to vector<1x1x128xf32>
      tpu.vector_store %arg27[%c0_153, %c0_154, %c0_155], %279 {strides = array<i32>} : memref<1x1x128xf32, #tpu.memory_space<vmem>>, vector<1x1x128xf32>,
    } else {
    }
    return
  }
  func.func @transform_0(%arg0: i32, %arg1: i32) -> (i32, i32, i32) {
    %c0_i32 = arith.constant 0 : i32
    %c0_i32_0 = arith.constant 0 : i32
    %c0_i32_1 = arith.constant 0 : i32
    return %arg0, %c0_i32, %c0_i32_0 : i32, i32, i32
  }
  func.func @transform_1(%arg0: i32, %arg1: i32) -> (i32, i32) {
    %c0_i32 = arith.constant 0 : i32
    %c0_i32_0 = arith.constant 0 : i32
    %c0_i32_1 = arith.constant 0 : i32
    return %c0_i32, %c0_i32_0 : i32, i32
  }
  func.func @transform_2(%arg0: i32, %arg1: i32) -> (i32, i32) {
    %c0_i32 = arith.constant 0 : i32
    %c0_i32_0 = arith.constant 0 : i32
    %c0_i32_1 = arith.constant 0 : i32
    return %c0_i32, %c0_i32_0 : i32, i32
  }
  func.func @transform_3(%arg0: i32, %arg1: i32) -> (i32, i32) {
    %c0_i32 = arith.constant 0 : i32
    %c0_i32_0 = arith.constant 0 : i32
    %c0_i32_1 = arith.constant 0 : i32
    return %c0_i32, %c0_i32_0 : i32, i32
  }
  func.func @transform_4(%arg0: i32, %arg1: i32) -> (i32, i32) {
    %c0_i32 = arith.constant 0 : i32
    %c0_i32_0 = arith.constant 0 : i32
    %c0_i32_1 = arith.constant 0 : i32
    return %c0_i32, %c0_i32_0 : i32, i32
  }
  func.func @transform_5(%arg0: i32, %arg1: i32) -> (i32, i32, i32) {
    %c0_i32 = arith.constant 0 : i32
    %c0_i32_0 = arith.constant 0 : i32
    %c0_i32_1 = arith.constant 0 : i32
    return %arg1, %c0_i32, %c0_i32_0 : i32, i32, i32
  }
  func.func @transform_6(%arg0: i32, %arg1: i32) -> (i32, i32, i32) {
    %c0_i32 = arith.constant 0 : i32
    %c0_i32_0 = arith.constant 0 : i32
    %c0_i32_1 = arith.constant 0 : i32
    return %arg1, %c0_i32, %c0_i32_0 : i32, i32, i32
  }
  func.func @transform_7(%arg0: i32, %arg1: i32) -> (i32, i32, i32, i32) {
    %c0_i32 = arith.constant 0 : i32
    %c0_i32_0 = arith.constant 0 : i32
    %c0_i32_1 = arith.constant 0 : i32
    %c0_i32_2 = arith.constant 0 : i32
    return %arg1, %c0_i32, %c0_i32_0, %c0_i32_1 : i32, i32, i32, i32
  }
  func.func @transform_8(%arg0: i32, %arg1: i32) -> (i32, i32, i32, i32) {
    %c0_i32 = arith.constant 0 : i32
    %c0_i32_0 = arith.constant 0 : i32
    %c0_i32_1 = arith.constant 0 : i32
    %c0_i32_2 = arith.constant 0 : i32
    return %arg1, %c0_i32, %c0_i32_0, %c0_i32_1 : i32, i32, i32, i32
  }
  func.func @transform_9(%arg0: i32, %arg1: i32) -> (i32, i32, i32, i32) {
    %c0_i32 = arith.constant 0 : i32
    %c0_i32_0 = arith.constant 0 : i32
    %c0_i32_1 = arith.constant 0 : i32
    %c0_i32_2 = arith.constant 0 : i32
    return %arg1, %c0_i32, %c0_i32_0, %c0_i32_1 : i32, i32, i32, i32
  }
  func.func @transform_10(%arg0: i32, %arg1: i32) -> (i32, i32, i32) {
    %c0_i32 = arith.constant 0 : i32
    %c0_i32_0 = arith.constant 0 : i32
    %c0_i32_1 = arith.constant 0 : i32
    return %arg1, %c0_i32, %c0_i32_0 : i32, i32, i32
  }
  func.func @transform_11(%arg0: i32, %arg1: i32) -> (i32, i32, i32) {
    %c0_i32 = arith.constant 0 : i32
    %c0_i32_0 = arith.constant 0 : i32
    %c0_i32_1 = arith.constant 0 : i32
    return %arg1, %c0_i32, %c0_i32_0 : i32, i32, i32
  }
  func.func @transform_12(%arg0: i32, %arg1: i32) -> (i32, i32, i32) {
    %c0_i32 = arith.constant 0 : i32
    %c0_i32_0 = arith.constant 0 : i32
    %c0_i32_1 = arith.constant 0 : i32
    return %arg1, %c0_i32, %c0_i32_0 : i32, i32, i32
  }
  func.func @transform_13(%arg0: i32, %arg1: i32) -> (i32, i32, i32) {
    %c0_i32 = arith.constant 0 : i32
    %c0_i32_0 = arith.constant 0 : i32
    %c0_i32_1 = arith.constant 0 : i32
    return %arg1, %c0_i32, %c0_i32_0 : i32, i32, i32
  }
  func.func @transform_14(%arg0: i32, %arg1: i32) -> (i32, i32, i32) {
    %c0_i32 = arith.constant 0 : i32
    %c0_i32_0 = arith.constant 0 : i32
    %c0_i32_1 = arith.constant 0 : i32
    return %arg1, %c0_i32, %c0_i32_0 : i32, i32, i32
  }
  func.func @transform_15(%arg0: i32, %arg1: i32) -> (i32, i32, i32) {
    %c0_i32 = arith.constant 0 : i32
    %c0_i32_0 = arith.constant 0 : i32
    %c0_i32_1 = arith.constant 0 : i32
    return %arg1, %c0_i32, %c0_i32_0 : i32, i32, i32
  }
  func.func @transform_16(%arg0: i32, %arg1: i32) -> (i32, i32, i32) {
    %c0_i32 = arith.constant 0 : i32
    %c0_i32_0 = arith.constant 0 : i32
    %c0_i32_1 = arith.constant 0 : i32
    return %arg1, %c0_i32, %c0_i32_0 : i32, i32, i32
  }
  func.func @transform_17(%arg0: i32, %arg1: i32) -> (i32, i32, i32) {
    %c0_i32 = arith.constant 0 : i32
    %c0_i32_0 = arith.constant 0 : i32
    %c0_i32_1 = arith.constant 0 : i32
    return %arg1, %c0_i32, %c0_i32_0 : i32, i32, i32
  }
  func.func @transform_18(%arg0: i32, %arg1: i32) -> (i32, i32, i32) {
    %c0_i32 = arith.constant 0 : i32
    %c0_i32_0 = arith.constant 0 : i32
    %c0_i32_1 = arith.constant 0 : i32
    return %arg1, %c0_i32, %c0_i32_0 : i32, i32, i32
  }
  func.func @transform_19(%arg0: i32, %arg1: i32) -> (i32, i32, i32) {
    %c0_i32 = arith.constant 0 : i32
    %c0_i32_0 = arith.constant 0 : i32
    %c0_i32_1 = arith.constant 0 : i32
    return %arg1, %c0_i32, %c0_i32_0 : i32, i32, i32
  }
  func.func @transform_20(%arg0: i32, %arg1: i32) -> (i32, i32, i32) {
    %c0_i32 = arith.constant 0 : i32
    %c0_i32_0 = arith.constant 0 : i32
    %c0_i32_1 = arith.constant 0 : i32
    return %arg1, %c0_i32, %c0_i32_0 : i32, i32, i32
  }
  func.func @transform_21(%arg0: i32, %arg1: i32) -> (i32, i32) {
    %c0_i32 = arith.constant 0 : i32
    %c0_i32_0 = arith.constant 0 : i32
    %c0_i32_1 = arith.constant 0 : i32
    return %c0_i32, %c0_i32_0 : i32, i32
  }
  func.func @transform_22(%arg0: i32, %arg1: i32) -> (i32, i32) {
    %c0_i32 = arith.constant 0 : i32
    %c0_i32_0 = arith.constant 0 : i32
    %c0_i32_1 = arith.constant 0 : i32
    return %c0_i32, %c0_i32_0 : i32, i32
  }
  func.func @transform_23(%arg0: i32, %arg1: i32) -> (i32, i32) {
    %c0_i32 = arith.constant 0 : i32
    %c0_i32_0 = arith.constant 0 : i32
    %c0_i32_1 = arith.constant 0 : i32
    return %c0_i32, %c0_i32_0 : i32, i32
  }
  func.func @transform_24(%arg0: i32, %arg1: i32) -> (i32, i32) {
    %c0_i32 = arith.constant 0 : i32
    %c0_i32_0 = arith.constant 0 : i32
    %c0_i32_1 = arith.constant 0 : i32
    return %c0_i32, %c0_i32_0 : i32, i32
  }
  func.func @transform_25(%arg0: i32, %arg1: i32) -> (i32, i32, i32) {
    %c0_i32 = arith.constant 0 : i32
    %c0_i32_0 = arith.constant 0 : i32
    %c0_i32_1 = arith.constant 0 : i32
    return %arg0, %c0_i32, %c0_i32_0 : i32, i32, i32
  }
}

</mosaic_0001>

<llo_original>
// kernel: vit_forward.1
$region0: #{vit_forward.1}
  #allocation0 [shape = 'u32[]', space=smem, size = 0x4, offset = 0x4, fixed_abs, tag = 'smem constant byte address 0x4 - core index']
  #allocation1 [shape = 'u32[144,128]{1,0:T(1,128)}', space=vmem, size = 0x12000, scoped, tag = 'internal scratch']
  #allocation2 [shape = 'f32[24,64]{1,0:T(8,128)}', space=vmem, size = 0x3000, scoped, tag = 'scratch operand']
  %s0 = inlined_call_operand.vmem [shape: f32[2,16,48], index: 0, kind: input, shape index: {}]
  %s1 = inlined_call_operand.vmem [shape: f32[48,64], index: 1, kind: input, shape index: {}]
  %s2 = inlined_call_operand.vmem [shape: f32[1,64], index: 2, kind: input, shape index: {}]
  %s3 = inlined_call_operand.vmem [shape: f32[1,64], index: 3, kind: input, shape index: {}]
  %s4 = inlined_call_operand.vmem [shape: f32[24,64], index: 4, kind: input, shape index: {}]
  %s5 = inlined_call_operand.vmem [shape: f32[2,1,64], index: 5, kind: input, shape index: {}]
  %s6 = inlined_call_operand.vmem [shape: f32[2,1,64], index: 6, kind: input, shape index: {}]
  %s7 = inlined_call_operand.vmem [shape: bf16[2,4,64,16], index: 7, kind: input, shape index: {}]
  %s8 = inlined_call_operand.vmem [shape: bf16[2,4,64,16], index: 8, kind: input, shape index: {}]
  %s9 = inlined_call_operand.vmem [shape: bf16[2,4,64,16], index: 9, kind: input, shape index: {}]
  %s10 = inlined_call_operand.vmem [shape: f32[2,4,16], index: 10, kind: input, shape index: {}]
  %s11 = inlined_call_operand.vmem [shape: f32[2,4,16], index: 11, kind: input, shape index: {}]
  %s12 = inlined_call_operand.vmem [shape: f32[2,4,16], index: 12, kind: input, shape index: {}]
  %s13 = inlined_call_operand.vmem [shape: bf16[2,64,64], index: 13, kind: input, shape index: {}]
  %s14 = inlined_call_operand.vmem [shape: f32[2,1,64], index: 14, kind: input, shape index: {}]
  %s15 = inlined_call_operand.vmem [shape: f32[2,1,64], index: 15, kind: input, shape index: {}]
  %s16 = inlined_call_operand.vmem [shape: f32[2,1,64], index: 16, kind: input, shape index: {}]
  %s17 = inlined_call_operand.vmem [shape: bf16[2,64,128], index: 17, kind: input, shape index: {}]
  %s18 = inlined_call_operand.vmem [shape: f32[2,1,128], index: 18, kind: input, shape index: {}]
  %s19 = inlined_call_operand.vmem [shape: bf16[2,128,64], index: 19, kind: input, shape index: {}]
  %s20 = inlined_call_operand.vmem [shape: f32[2,1,64], index: 20, kind: input, shape index: {}]
  %s21 = inlined_call_operand.vmem [shape: f32[1,64], index: 21, kind: input, shape index: {}]
  %s22 = inlined_call_operand.vmem [shape: f32[1,64], index: 22, kind: input, shape index: {}]
  %s23 = inlined_call_operand.vmem [shape: f32[64,128], index: 23, kind: input, shape index: {}]
  %s24 = inlined_call_operand.vmem [shape: f32[1,128], index: 24, kind: input, shape index: {}]
  %s25 = inlined_call_operand.hbm [shape: f32[2,1,128], index: 25, kind: output, shape index: {}]
  %s26 = sld [smem:[#allocation0]]
  $region141: #{vit_forward.1} parent=0
    _
  %s28 = ssub.s32 1, %s26
  %s29 = scalar_select 0, %s28, %s26
  $region1: #{vit_forward.1} parent=0
    #allocation3 [shape = 'u8[1024]{0}', space=vmem, size = 0x400, scoped, tag = 'output window, operand 0']
    #allocation4 [shape = 's32[2]{0}', space=sflag, size = 0x8, scoped, tag = 'scoped memory for vit_forward.1']
    %30 = vsyncpa [#allocation4], 0
    %s31 = scalar_lea.sflag [#allocation4], 1
    %32 = vsyncpa %s31, 0
    loop: start=0, step=1, limit=6
    $region2: #{vit_forward.1} parent=1 // loop_pre_header
      _
    $region3: #{vit_forward.1} parent=1 // loop_header
      %s34 = sphi 0, %s38
      %p35 = scmp.ge.s32.totalorder %s34, 6
      %s41 = sphi 0, %s53
      %s42 = sphi 0, %s49
      %s43 = sphi 0, %s41
      %s44 = sphi 0, %s42
      %s45 = sphi 0, %s43
      %s46 = sphi 0, %s44
      %s56 = sphi 0, %s58
      %s59 = sphi 0, %s56
      %s60 = sphi 0, %s59
      %s76 = sphi 0, %s60
      %s80 = sphi 0, %s80
      %s82 = sphi 0, %s80
      %s83 = sphi 0, %s82
      %s97 = sphi 0, %s83
      %s101 = sphi 0, %s101
      %s103 = sphi 0, %s101
      %s104 = sphi 0, %s103
      %s118 = sphi 0, %s104
      %s122 = sphi 0, %s122
      %s124 = sphi 0, %s122
      %s125 = sphi 0, %s124
      %s139 = sphi 0, %s125
      %s143 = sphi 0, %s143
      %s145 = sphi 0, %s143
      %s146 = sphi 0, %s145
      %s160 = sphi 0, %s146
      %s166 = sphi 0, %s168
      %s169 = sphi 0, %s166
      %s170 = sphi 0, %s169
      %s186 = sphi 0, %s170
      %s192 = sphi 0, %s194
      %s195 = sphi 0, %s192
      %s196 = sphi 0, %s195
      %s212 = sphi 0, %s196
      %s218 = sphi 0, %s220
      %s221 = sphi 0, %s218
      %s222 = sphi 0, %s221
      %s238 = sphi 0, %s222
      %s244 = sphi 0, %s246
      %s247 = sphi 0, %s244
      %s248 = sphi 0, %s247
      %s264 = sphi 0, %s248
      %s270 = sphi 0, %s272
      %s273 = sphi 0, %s270
      %s274 = sphi 0, %s273
      %s290 = sphi 0, %s274
      %s296 = sphi 0, %s298
      %s299 = sphi 0, %s296
      %s300 = sphi 0, %s299
      %s316 = sphi 0, %s300
      %s322 = sphi 0, %s324
      %s325 = sphi 0, %s322
      %s326 = sphi 0, %s325
      %s342 = sphi 0, %s326
      %s348 = sphi 0, %s350
      %s351 = sphi 0, %s348
      %s352 = sphi 0, %s351
      %s368 = sphi 0, %s352
      %s374 = sphi 0, %s376
      %s377 = sphi 0, %s374
      %s378 = sphi 0, %s377
      %s394 = sphi 0, %s378
      %s400 = sphi 0, %s402
      %s403 = sphi 0, %s400
      %s404 = sphi 0, %s403
      %s420 = sphi 0, %s404
      %s426 = sphi 0, %s428
      %s429 = sphi 0, %s426
      %s430 = sphi 0, %s429
      %s446 = sphi 0, %s430
      %s452 = sphi 0, %s454
      %s455 = sphi 0, %s452
      %s456 = sphi 0, %s455
      %s472 = sphi 0, %s456
      %s478 = sphi 0, %s480
      %s481 = sphi 0, %s478
      %s482 = sphi 0, %s481
      %s498 = sphi 0, %s482
      %s504 = sphi 0, %s506
      %s507 = sphi 0, %s504
      %s508 = sphi 0, %s507
      %s524 = sphi 0, %s508
      %s530 = sphi 0, %s532
      %s533 = sphi 0, %s530
      %s534 = sphi 0, %s533
      %s550 = sphi 0, %s534
      %s556 = sphi 0, %s558
      %s559 = sphi 0, %s556
      %s560 = sphi 0, %s559
      %s576 = sphi 0, %s560
      %s580 = sphi 0, %s580
      %s582 = sphi 0, %s580
      %s583 = sphi 0, %s582
      %s597 = sphi 0, %s583
      %s601 = sphi 0, %s601
      %s603 = sphi 0, %s601
      %s604 = sphi 0, %s603
      %s618 = sphi 0, %s604
      %s622 = sphi 0, %s622
      %s624 = sphi 0, %s622
      %s625 = sphi 0, %s624
      %s639 = sphi 0, %s625
      %s643 = sphi 0, %s643
      %s645 = sphi 0, %s643
      %s646 = sphi 0, %s645
      %s660 = sphi 0, %s646
      %s666 = sphi 0, %s668
      %s669 = sphi 0, %s666
      %s670 = sphi 0, %s669
      %s686 = sphi 0, %s670
    $region4: #{vit_forward.1} parent=1 // loop_header_branch
      %37 = sbr.rel (%p35) target = $region8
    $region5: #{vit_forward.1} parent=1 // loop_body
      %s39 = ssub.s32 %s34, 1
      %s40 = ssub.s32 %s34, 2
      %s47 = sadd.s32 1, %s42
      %p48 = scmp.ge.s32.totalorder %s47, 2
      %s49 = scalar_select %p48, 0, %s47
      %s50 = sadd.s32 1, %s41
      %s51 = scalar_select %p48, %s50, %s41
      %p52 = scmp.ge.s32.totalorder %s51, 2
      %s53 = scalar_select %p52, 0, %s51
      %s54 = ssub.s32 %s41, %s53
      %p55 = scmp.eq.s32.totalorder %s54, 0
      %s57 = sadd.s32 %s56, 1
      %s58 = scalar_select %p55, %s56, %s57
      %p61 = pneg %p55
      %p62 = scmp.eq.s32.totalorder %s34, 3
      %p63 = por %p61, %p62
      %p64 = scmp.ne.s32.totalorder %s56, %s59
      %p65 = scmp.eq.s32.totalorder %s34, 0
      %p66 = por %p64, %p65
      %p67 = scmp.ne.s32.totalorder %s56, %s59
      %p68 = scmp.eq.s32.totalorder %s39, 3
      %p69 = por %p67, %p68
      %p70 = scmp.ne.s32.totalorder %s59, %s60
      %p71 = scmp.eq.s32.totalorder %s39, 0
      %p72 = por %p70, %p71
      %p73 = scmp.ne.s32.totalorder %s59, %s60
      %p74 = scmp.eq.s32.totalorder %s40, 3
      %p75 = por %p73, %p74
      %p77 = scmp.ne.s32.totalorder %s60, %s76
      %p78 = scmp.eq.s32.totalorder %s40, 0
      %p79 = por %p77, %p78
      %s81 = sadd.s32 %s80, 1
      %p84 = scmp.eq.s32.totalorder %s34, 3
      %p85 = scmp.ne.s32.totalorder %s80, %s82
      %p86 = scmp.eq.s32.totalorder %s34, 0
      %p87 = por %p85, %p86
      %p88 = scmp.ne.s32.totalorder %s80, %s82
      %p89 = scmp.eq.s32.totalorder %s39, 3
      %p90 = por %p88, %p89
      %p91 = scmp.ne.s32.totalorder %s82, %s83
      %p92 = scmp.eq.s32.totalorder %s39, 0
      %p93 = por %p91, %p92
      %p94 = scmp.ne.s32.totalorder %s82, %s83
      %p95 = scmp.eq.s32.totalorder %s40, 3
      %p96 = por %p94, %p95
      %p98 = scmp.ne.s32.totalorder %s83, %s97
      %p99 = scmp.eq.s32.totalorder %s40, 0
      %p100 = por %p98, %p99
      %s102 = sadd.s32 %s101, 1
      %p105 = scmp.eq.s32.totalorder %s34, 3
      %p106 = scmp.ne.s32.totalorder %s101, %s103
      %p107 = scmp.eq.s32.totalorder %s34, 0
      %p108 = por %p106, %p107
      %p109 = scmp.ne.s32.totalorder %s101, %s103
      %p110 = scmp.eq.s32.totalorder %s39, 3
      %p111 = por %p109, %p110
      %p112 = scmp.ne.s32.totalorder %s103, %s104
      %p113 = scmp.eq.s32.totalorder %s39, 0
      %p114 = por %p112, %p113
      %p115 = scmp.ne.s32.totalorder %s103, %s104
      %p116 = scmp.eq.s32.totalorder %s40, 3
      %p117 = por %p115, %p116
      %p119 = scmp.ne.s32.totalorder %s104, %s118
      %p120 = scmp.eq.s32.totalorder %s40, 0
      %p121 = por %p119, %p120
      %s123 = sadd.s32 %s122, 1
      %p126 = scmp.eq.s32.totalorder %s34, 3
      %p127 = scmp.ne.s32.totalorder %s122, %s124
      %p128 = scmp.eq.s32.totalorder %s34, 0
      %p129 = por %p127, %p128
      %p130 = scmp.ne.s32.totalorder %s122, %s124
      %p131 = scmp.eq.s32.totalorder %s39, 3
      %p132 = por %p130, %p131
      %p133 = scmp.ne.s32.totalorder %s124, %s125
      %p134 = scmp.eq.s32.totalorder %s39, 0
      %p135 = por %p133, %p134
      %p136 = scmp.ne.s32.totalorder %s124, %s125
      %p137 = scmp.eq.s32.totalorder %s40, 3
      %p138 = por %p136, %p137
      %p140 = scmp.ne.s32.totalorder %s125, %s139
      %p141 = scmp.eq.s32.totalorder %s40, 0
      %p142 = por %p140, %p141
      %s144 = sadd.s32 %s143, 1
      %p147 = scmp.eq.s32.totalorder %s34, 3
      %p148 = scmp.ne.s32.totalorder %s143, %s145
      %p149 = scmp.eq.s32.totalorder %s34, 0
      %p150 = por %p148, %p149
      %p151 = scmp.ne.s32.totalorder %s143, %s145
      %p152 = scmp.eq.s32.totalorder %s39, 3
      %p153 = por %p151, %p152
      %p154 = scmp.ne.s32.totalorder %s145, %s146
      %p155 = scmp.eq.s32.totalorder %s39, 0
      %p156 = por %p154, %p155
      %p157 = scmp.ne.s32.totalorder %s145, %s146
      %p158 = scmp.eq.s32.totalorder %s40, 3
      %p159 = por %p157, %p158
      %p161 = scmp.ne.s32.totalorder %s146, %s160
      %p162 = scmp.eq.s32.totalorder %s40, 0
      %p163 = por %p161, %p162
      %s164 = ssub.s32 %s42, %s49
      %p165 = scmp.eq.s32.totalorder %s164, 0
      %s167 = sadd.s32 %s166, 1
      %s168 = scalar_select %p165, %s166, %s167
      %p171 = pneg %p165
      %p172 = scmp.eq.s32.totalorder %s34, 3
      %p173 = por %p171, %p172
      %p174 = scmp.ne.s32.totalorder %s166, %s169
      %p175 = scmp.eq.s32.totalorder %s34, 0
      %p176 = por %p174, %p175
      %p177 = scmp.ne.s32.totalorder %s166, %s169
      %p178 = scmp.eq.s32.totalorder %s39, 3
      %p179 = por %p177, %p178
      %p180 = scmp.ne.s32.totalorder %s169, %s170
      %p181 = scmp.eq.s32.totalorder %s39, 0
      %p182 = por %p180, %p181
      %p183 = scmp.ne.s32.totalorder %s169, %s170
      %p184 = scmp.eq.s32.totalorder %s40, 3
      %p185 = por %p183, %p184
      %p187 = scmp.ne.s32.totalorder %s170, %s186
      %p188 = scmp.eq.s32.totalorder %s40, 0
      %p189 = por %p187, %p188
      %s190 = ssub.s32 %s42, %s49
      %p191 = scmp.eq.s32.totalorder %s190, 0
      %s193 = sadd.s32 %s192, 1
      %s194 = scalar_select %p191, %s192, %s193
      %p197 = pneg %p191
      %p198 = scmp.eq.s32.totalorder %s34, 3
      %p199 = por %p197, %p198
      %p200 = scmp.ne.s32.totalorder %s192, %s195
      %p201 = scmp.eq.s32.totalorder %s34, 0
      %p202 = por %p200, %p201
      %p203 = scmp.ne.s32.totalorder %s192, %s195
      %p204 = scmp.eq.s32.totalorder %s39, 3
      %p205 = por %p203, %p204
      %p206 = scmp.ne.s32.totalorder %s195, %s196
      %p207 = scmp.eq.s32.totalorder %s39, 0
      %p208 = por %p206, %p207
      %p209 = scmp.ne.s32.totalorder %s195, %s196
      %p210 = scmp.eq.s32.totalorder %s40, 3
      %p211 = por %p209, %p210
      %p213 = scmp.ne.s32.totalorder %s196, %s212
      %p214 = scmp.eq.s32.totalorder %s40, 0
      %p215 = por %p213, %p214
      %s216 = ssub.s32 %s42, %s49
      %p217 = scmp.eq.s32.totalorder %s216, 0
      %s219 = sadd.s32 %s218, 1
      %s220 = scalar_select %p217, %s218, %s219
      %p223 = pneg %p217
      %p224 = scmp.eq.s32.totalorder %s34, 3
      %p225 = por %p223, %p224
      %p226 = scmp.ne.s32.totalorder %s218, %s221
      %p227 = scmp.eq.s32.totalorder %s34, 0
      %p228 = por %p226, %p227
      %p229 = scmp.ne.s32.totalorder %s218, %s221
      %p230 = scmp.eq.s32.totalorder %s39, 3
      %p231 = por %p229, %p230
      %p232 = scmp.ne.s32.totalorder %s221, %s222
      %p233 = scmp.eq.s32.totalorder %s39, 0
      %p234 = por %p232, %p233
      %p235 = scmp.ne.s32.totalorder %s221, %s222
      %p236 = scmp.eq.s32.totalorder %s40, 3
      %p237 = por %p235, %p236
      %p239 = scmp.ne.s32.totalorder %s222, %s238
      %p240 = scmp.eq.s32.totalorder %s40, 0
      %p241 = por %p239, %p240
      %s242 = ssub.s32 %s42, %s49
      %p243 = scmp.eq.s32.totalorder %s242, 0
      %s245 = sadd.s32 %s244, 1
      %s246 = scalar_select %p243, %s244, %s245
      %p249 = pneg %p243
      %p250 = scmp.eq.s32.totalorder %s34, 3
      %p251 = por %p249, %p250
      %p252 = scmp.ne.s32.totalorder %s244, %s247
      %p253 = scmp.eq.s32.totalorder %s34, 0
      %p254 = por %p252, %p253
      %p255 = scmp.ne.s32.totalorder %s244, %s247
      %p256 = scmp.eq.s32.totalorder %s39, 3
      %p257 = por %p255, %p256
      %p258 = scmp.ne.s32.totalorder %s247, %s248
      %p259 = scmp.eq.s32.totalorder %s39, 0
      %p260 = por %p258, %p259
      %p261 = scmp.ne.s32.totalorder %s247, %s248
      %p262 = scmp.eq.s32.totalorder %s40, 3
      %p263 = por %p261, %p262
      %p265 = scmp.ne.s32.totalorder %s248, %s264
      %p266 = scmp.eq.s32.totalorder %s40, 0
      %p267 = por %p265, %p266
      %s268 = ssub.s32 %s42, %s49
      %p269 = scmp.eq.s32.totalorder %s268, 0
      %s271 = sadd.s32 %s270, 1
      %s272 = scalar_select %p269, %s270, %s271
      %p275 = pneg %p269
      %p276 = scmp.eq.s32.totalorder %s34, 3
      %p277 = por %p275, %p276
      %p278 = scmp.ne.s32.totalorder %s270, %s273
      %p279 = scmp.eq.s32.totalorder %s34, 0
      %p280 = por %p278, %p279
      %p281 = scmp.ne.s32.totalorder %s270, %s273
      %p282 = scmp.eq.s32.totalorder %s39, 3
      %p283 = por %p281, %p282
      %p284 = scmp.ne.s32.totalorder %s273, %s274
      %p285 = scmp.eq.s32.totalorder %s39, 0
      %p286 = por %p284, %p285
      %p287 = scmp.ne.s32.totalorder %s273, %s274
      %p288 = scmp.eq.s32.totalorder %s40, 3
      %p289 = por %p287, %p288
      %p291 = scmp.ne.s32.totalorder %s274, %s290
      %p292 = scmp.eq.s32.totalorder %s40, 0
      %p293 = por %p291, %p292
      %s294 = ssub.s32 %s42, %s49
      %p295 = scmp.eq.s32.totalorder %s294, 0
      %s297 = sadd.s32 %s296, 1
      %s298 = scalar_select %p295, %s296, %s297
      %p301 = pneg %p295
      %p302 = scmp.eq.s32.totalorder %s34, 3
      %p303 = por %p301, %p302
      %p304 = scmp.ne.s32.totalorder %s296, %s299
      %p305 = scmp.eq.s32.totalorder %s34, 0
      %p306 = por %p304, %p305
      %p307 = scmp.ne.s32.totalorder %s296, %s299
      %p308 = scmp.eq.s32.totalorder %s39, 3
      %p309 = por %p307, %p308
      %p310 = scmp.ne.s32.totalorder %s299, %s300
      %p311 = scmp.eq.s32.totalorder %s39, 0
      %p312 = por %p310, %p311
      %p313 = scmp.ne.s32.totalorder %s299, %s300
      %p314 = scmp.eq.s32.totalorder %s40, 3
      %p315 = por %p313, %p314
      %p317 = scmp.ne.s32.totalorder %s300, %s316
      %p318 = scmp.eq.s32.totalorder %s40, 0
      %p319 = por %p317, %p318
      %s320 = ssub.s32 %s42, %s49
      %p321 = scmp.eq.s32.totalorder %s320, 0
      %s323 = sadd.s32 %s322, 1
      %s324 = scalar_select %p321, %s322, %s323
      %p327 = pneg %p321
      %p328 = scmp.eq.s32.totalorder %s34, 3
      %p329 = por %p327, %p328
      %p330 = scmp.ne.s32.totalorder %s322, %s325
      %p331 = scmp.eq.s32.totalorder %s34, 0
      %p332 = por %p330, %p331
      %p333 = scmp.ne.s32.totalorder %s322, %s325
      %p334 = scmp.eq.s32.totalorder %s39, 3
      %p335 = por %p333, %p334
      %p336 = scmp.ne.s32.totalorder %s325, %s326
      %p337 = scmp.eq.s32.totalorder %s39, 0
      %p338 = por %p336, %p337
      %p339 = scmp.ne.s32.totalorder %s325, %s326
      %p340 = scmp.eq.s32.totalorder %s40, 3
      %p341 = por %p339, %p340
      %p343 = scmp.ne.s32.totalorder %s326, %s342
      %p344 = scmp.eq.s32.totalorder %s40, 0
      %p345 = por %p343, %p344
      %s346 = ssub.s32 %s42, %s49
      %p347 = scmp.eq.s32.totalorder %s346, 0
      %s349 = sadd.s32 %s348, 1
      %s350 = scalar_select %p347, %s348, %s349
      %p353 = pneg %p347
      %p354 = scmp.eq.s32.totalorder %s34, 3
      %p355 = por %p353, %p354
      %p356 = scmp.ne.s32.totalorder %s348, %s351
      %p357 = scmp.eq.s32.totalorder %s34, 0
      %p358 = por %p356, %p357
      %p359 = scmp.ne.s32.totalorder %s348, %s351
      %p360 = scmp.eq.s32.totalorder %s39, 3
      %p361 = por %p359, %p360
      %p362 = scmp.ne.s32.totalorder %s351, %s352
      %p363 = scmp.eq.s32.totalorder %s39, 0
      %p364 = por %p362, %p363
      %p365 = scmp.ne.s32.totalorder %s351, %s352
      %p366 = scmp.eq.s32.totalorder %s40, 3
      %p367 = por %p365, %p366
      %p369 = scmp.ne.s32.totalorder %s352, %s368
      %p370 = scmp.eq.s32.totalorder %s40, 0
      %p371 = por %p369, %p370
      %s372 = ssub.s32 %s42, %s49
      %p373 = scmp.eq.s32.totalorder %s372, 0
      %s375 = sadd.s32 %s374, 1
      %s376 = scalar_select %p373, %s374, %s375
      %p379 = pneg %p373
      %p380 = scmp.eq.s32.totalorder %s34, 3
      %p381 = por %p379, %p380
      %p382 = scmp.ne.s32.totalorder %s374, %s377
      %p383 = scmp.eq.s32.totalorder %s34, 0
      %p384 = por %p382, %p383
      %p385 = scmp.ne.s32.totalorder %s374, %s377
      %p386 = scmp.eq.s32.totalorder %s39, 3
      %p387 = por %p385, %p386
      %p388 = scmp.ne.s32.totalorder %s377, %s378
      %p389 = scmp.eq.s32.totalorder %s39, 0
      %p390 = por %p388, %p389
      %p391 = scmp.ne.s32.totalorder %s377, %s378
      %p392 = scmp.eq.s32.totalorder %s40, 3
      %p393 = por %p391, %p392
      %p395 = scmp.ne.s32.totalorder %s378, %s394
      %p396 = scmp.eq.s32.totalorder %s40, 0
      %p397 = por %p395, %p396
      %s398 = ssub.s32 %s42, %s49
      %p399 = scmp.eq.s32.totalorder %s398, 0
      %s401 = sadd.s32 %s400, 1
      %s402 = scalar_select %p399, %s400, %s401
      %p405 = pneg %p399
      %p406 = scmp.eq.s32.totalorder %s34, 3
      %p407 = por %p405, %p406
      %p408 = scmp.ne.s32.totalorder %s400, %s403
      %p409 = scmp.eq.s32.totalorder %s34, 0
      %p410 = por %p408, %p409
      %p411 = scmp.ne.s32.totalorder %s400, %s403
      %p412 = scmp.eq.s32.totalorder %s39, 3
      %p413 = por %p411, %p412
      %p414 = scmp.ne.s32.totalorder %s403, %s404
      %p415 = scmp.eq.s32.totalorder %s39, 0
      %p416 = por %p414, %p415
      %p417 = scmp.ne.s32.totalorder %s403, %s404
      %p418 = scmp.eq.s32.totalorder %s40, 3
      %p419 = por %p417, %p418
      %p421 = scmp.ne.s32.totalorder %s404, %s420
      %p422 = scmp.eq.s32.totalorder %s40, 0
      %p423 = por %p421, %p422
      %s424 = ssub.s32 %s42, %s49
      %p425 = scmp.eq.s32.totalorder %s424, 0
      %s427 = sadd.s32 %s426, 1
      %s428 = scalar_select %p425, %s426, %s427
      %p431 = pneg %p425
      %p432 = scmp.eq.s32.totalorder %s34, 3
      %p433 = por %p431, %p432
      %p434 = scmp.ne.s32.totalorder %s426, %s429
      %p435 = scmp.eq.s32.totalorder %s34, 0
      %p436 = por %p434, %p435
      %p437 = scmp.ne.s32.totalorder %s426, %s429
      %p438 = scmp.eq.s32.totalorder %s39, 3
      %p439 = por %p437, %p438
      %p440 = scmp.ne.s32.totalorder %s429, %s430
      %p441 = scmp.eq.s32.totalorder %s39, 0
      %p442 = por %p440, %p441
      %p443 = scmp.ne.s32.totalorder %s429, %s430
      %p444 = scmp.eq.s32.totalorder %s40, 3
      %p445 = por %p443, %p444
      %p447 = scmp.ne.s32.totalorder %s430, %s446
      %p448 = scmp.eq.s32.totalorder %s40, 0
      %p449 = por %p447, %p448
      %s450 = ssub.s32 %s42, %s49
      %p451 = scmp.eq.s32.totalorder %s450, 0
      %s453 = sadd.s32 %s452, 1
      %s454 = scalar_select %p451, %s452, %s453
      %p457 = pneg %p451
      %p458 = scmp.eq.s32.totalorder %s34, 3
      %p459 = por %p457, %p458
      %p460 = scmp.ne.s32.totalorder %s452, %s455
      %p461 = scmp.eq.s32.totalorder %s34, 0
      %p462 = por %p460, %p461
      %p463 = scmp.ne.s32.totalorder %s452, %s455
      %p464 = scmp.eq.s32.totalorder %s39, 3
      %p465 = por %p463, %p464
      %p466 = scmp.ne.s32.totalorder %s455, %s456
      %p467 = scmp.eq.s32.totalorder %s39, 0
      %p468 = por %p466, %p467
      %p469 = scmp.ne.s32.totalorder %s455, %s456
      %p470 = scmp.eq.s32.totalorder %s40, 3
      %p471 = por %p469, %p470
      %p473 = scmp.ne.s32.totalorder %s456, %s472
      %p474 = scmp.eq.s32.totalorder %s40, 0
      %p475 = por %p473, %p474
      %s476 = ssub.s32 %s42, %s49
      %p477 = scmp.eq.s32.totalorder %s476, 0
      %s479 = sadd.s32 %s478, 1
      %s480 = scalar_select %p477, %s478, %s479
      %p483 = pneg %p477
      %p484 = scmp.eq.s32.totalorder %s34, 3
      %p485 = por %p483, %p484
      %p486 = scmp.ne.s32.totalorder %s478, %s481
      %p487 = scmp.eq.s32.totalorder %s34, 0
      %p488 = por %p486, %p487
      %p489 = scmp.ne.s32.totalorder %s478, %s481
      %p490 = scmp.eq.s32.totalorder %s39, 3
      %p491 = por %p489, %p490
      %p492 = scmp.ne.s32.totalorder %s481, %s482
      %p493 = scmp.eq.s32.totalorder %s39, 0
      %p494 = por %p492, %p493
      %p495 = scmp.ne.s32.totalorder %s481, %s482
      %p496 = scmp.eq.s32.totalorder %s40, 3
      %p497 = por %p495, %p496
      %p499 = scmp.ne.s32.totalorder %s482, %s498
      %p500 = scmp.eq.s32.totalorder %s40, 0
      %p501 = por %p499, %p500
      %s502 = ssub.s32 %s42, %s49
      %p503 = scmp.eq.s32.totalorder %s502, 0
      %s505 = sadd.s32 %s504, 1
      %s506 = scalar_select %p503, %s504, %s505
      %p509 = pneg %p503
      %p510 = scmp.eq.s32.totalorder %s34, 3
      %p511 = por %p509, %p510
      %p512 = scmp.ne.s32.totalorder %s504, %s507
      %p513 = scmp.eq.s32.totalorder %s34, 0
      %p514 = por %p512, %p513
      %p515 = scmp.ne.s32.totalorder %s504, %s507
      %p516 = scmp.eq.s32.totalorder %s39, 3
      %p517 = por %p515, %p516
      %p518 = scmp.ne.s32.totalorder %s507, %s508
      %p519 = scmp.eq.s32.totalorder %s39, 0
      %p520 = por %p518, %p519
      %p521 = scmp.ne.s32.totalorder %s507, %s508
      %p522 = scmp.eq.s32.totalorder %s40, 3
      %p523 = por %p521, %p522
      %p525 = scmp.ne.s32.totalorder %s508, %s524
      %p526 = scmp.eq.s32.totalorder %s40, 0
      %p527 = por %p525, %p526
      %s528 = ssub.s32 %s42, %s49
      %p529 = scmp.eq.s32.totalorder %s528, 0
      %s531 = sadd.s32 %s530, 1
      %s532 = scalar_select %p529, %s530, %s531
      %p535 = pneg %p529
      %p536 = scmp.eq.s32.totalorder %s34, 3
      %p537 = por %p535, %p536
      %p538 = scmp.ne.s32.totalorder %s530, %s533
      %p539 = scmp.eq.s32.totalorder %s34, 0
      %p540 = por %p538, %p539
      %p541 = scmp.ne.s32.totalorder %s530, %s533
      %p542 = scmp.eq.s32.totalorder %s39, 3
      %p543 = por %p541, %p542
      %p544 = scmp.ne.s32.totalorder %s533, %s534
      %p545 = scmp.eq.s32.totalorder %s39, 0
      %p546 = por %p544, %p545
      %p547 = scmp.ne.s32.totalorder %s533, %s534
      %p548 = scmp.eq.s32.totalorder %s40, 3
      %p549 = por %p547, %p548
      %p551 = scmp.ne.s32.totalorder %s534, %s550
      %p552 = scmp.eq.s32.totalorder %s40, 0
      %p553 = por %p551, %p552
      %s554 = ssub.s32 %s42, %s49
      %p555 = scmp.eq.s32.totalorder %s554, 0
      %s557 = sadd.s32 %s556, 1
      %s558 = scalar_select %p555, %s556, %s557
      %p561 = pneg %p555
      %p562 = scmp.eq.s32.totalorder %s34, 3
      %p563 = por %p561, %p562
      %p564 = scmp.ne.s32.totalorder %s556, %s559
      %p565 = scmp.eq.s32.totalorder %s34, 0
      %p566 = por %p564, %p565
      %p567 = scmp.ne.s32.totalorder %s556, %s559
      %p568 = scmp.eq.s32.totalorder %s39, 3
      %p569 = por %p567, %p568
      %p570 = scmp.ne.s32.totalorder %s559, %s560
      %p571 = scmp.eq.s32.totalorder %s39, 0
      %p572 = por %p570, %p571
      %p573 = scmp.ne.s32.totalorder %s559, %s560
      %p574 = scmp.eq.s32.totalorder %s40, 3
      %p575 = por %p573, %p574
      %p577 = scmp.ne.s32.totalorder %s560, %s576
      %p578 = scmp.eq.s32.totalorder %s40, 0
      %p579 = por %p577, %p578
      %s581 = sadd.s32 %s580, 1
      %p584 = scmp.eq.s32.totalorder %s34, 3
      %p585 = scmp.ne.s32.totalorder %s580, %s582
      %p586 = scmp.eq.s32.totalorder %s34, 0
      %p587 = por %p585, %p586
      %p588 = scmp.ne.s32.totalorder %s580, %s582
      %p589 = scmp.eq.s32.totalorder %s39, 3
      %p590 = por %p588, %p589
      %p591 = scmp.ne.s32.totalorder %s582, %s583
      %p592 = scmp.eq.s32.totalorder %s39, 0
      %p593 = por %p591, %p592
      %p594 = scmp.ne.s32.totalorder %s582, %s583
      %p595 = scmp.eq.s32.totalorder %s40, 3
      %p596 = por %p594, %p595
      %p598 = scmp.ne.s32.totalorder %s583, %s597
      %p599 = scmp.eq.s32.totalorder %s40, 0
      %p600 = por %p598, %p599
      %s602 = sadd.s32 %s601, 1
      %p605 = scmp.eq.s32.totalorder %s34, 3
      %p606 = scmp.ne.s32.totalorder %s601, %s603
      %p607 = scmp.eq.s32.totalorder %s34, 0
      %p608 = por %p606, %p607
      %p609 = scmp.ne.s32.totalorder %s601, %s603
      %p610 = scmp.eq.s32.totalorder %s39, 3
      %p611 = por %p609, %p610
      %p612 = scmp.ne.s32.totalorder %s603, %s604
      %p613 = scmp.eq.s32.totalorder %s39, 0
      %p614 = por %p612, %p613
      %p615 = scmp.ne.s32.totalorder %s603, %s604
      %p616 = scmp.eq.s32.totalorder %s40, 3
      %p617 = por %p615, %p616
      %p619 = scmp.ne.s32.totalorder %s604, %s618
      %p620 = scmp.eq.s32.totalorder %s40, 0
      %p621 = por %p619, %p620
      %s623 = sadd.s32 %s622, 1
      %p626 = scmp.eq.s32.totalorder %s34, 3
      %p627 = scmp.ne.s32.totalorder %s622, %s624
      %p628 = scmp.eq.s32.totalorder %s34, 0
      %p629 = por %p627, %p628
      %p630 = scmp.ne.s32.totalorder %s622, %s624
      %p631 = scmp.eq.s32.totalorder %s39, 3
      %p632 = por %p630, %p631
      %p633 = scmp.ne.s32.totalorder %s624, %s625
      %p634 = scmp.eq.s32.totalorder %s39, 0
      %p635 = por %p633, %p634
      %p636 = scmp.ne.s32.totalorder %s624, %s625
      %p637 = scmp.eq.s32.totalorder %s40, 3
      %p638 = por %p636, %p637
      %p640 = scmp.ne.s32.totalorder %s625, %s639
      %p641 = scmp.eq.s32.totalorder %s40, 0
      %p642 = por %p640, %p641
      %s644 = sadd.s32 %s643, 1
      %p647 = scmp.eq.s32.totalorder %s34, 3
      %p648 = scmp.ne.s32.totalorder %s643, %s645
      %p649 = scmp.eq.s32.totalorder %s34, 0
      %p650 = por %p648, %p649
      %p651 = scmp.ne.s32.totalorder %s643, %s645
      %p652 = scmp.eq.s32.totalorder %s39, 3
      %p653 = por %p651, %p652
      %p654 = scmp.ne.s32.totalorder %s645, %s646
      %p655 = scmp.eq.s32.totalorder %s39, 0
      %p656 = por %p654, %p655
      %p657 = scmp.ne.s32.totalorder %s645, %s646
      %p658 = scmp.eq.s32.totalorder %s40, 3
      %p659 = por %p657, %p658
      %p661 = scmp.ne.s32.totalorder %s646, %s660
      %p662 = scmp.eq.s32.totalorder %s40, 0
      %p663 = por %p661, %p662
      %s664 = ssub.s32 %s41, %s53
      %p665 = scmp.eq.s32.totalorder %s664, 0
      %s667 = sadd.s32 %s666, 1
      %s668 = scalar_select %p665, %s666, %s667
      %p671 = pneg %p665
      %p672 = scmp.eq.s32.totalorder %s34, 3
      %p673 = por %p671, %p672
      %p674 = scmp.ne.s32.totalorder %s666, %s669
      %p675 = scmp.eq.s32.totalorder %s34, 0
      %p676 = por %p674, %p675
      %p677 = scmp.ne.s32.totalorder %s666, %s669
      %p678 = scmp.eq.s32.totalorder %s39, 3
      %p679 = por %p677, %p678
      %p680 = scmp.ne.s32.totalorder %s669, %s670
      %p681 = scmp.eq.s32.totalorder %s39, 0
      %p682 = por %p680, %p681
      %p683 = scmp.ne.s32.totalorder %s669, %s670
      %p684 = scmp.eq.s32.totalorder %s40, 3
      %p685 = por %p683, %p684
      %p687 = scmp.ne.s32.totalorder %s670, %s686
      %p688 = scmp.eq.s32.totalorder %s40, 0
      %p689 = por %p687, %p688
      %p690 = scmp.le.s32.totalorder 1, %s34
      %p691 = scmp.lt.s32.totalorder %s34, 5
      %p692 = pnand %p690, %p691
      %p693 = pneg %p692
      // Predicated region
      $region9: #{vit_forward.1} parent=5 // pred_check
        _
      $region10: #{vit_forward.1} parent=5 // pred_check_branch
        %695 = sbr.rel (%p692) target = $region12
      $region11: #{vit_forward.1} parent=5 // pred_region
        %s696 = ssub.s32 %s34, 1
        // Predicated region
        $region13: #{vit_forward.1} parent=11 // pred_check
          %p697 = pneg %p93
        $region14: #{vit_forward.1} parent=11 // pred_check_branch
          %699 = sbr.rel (%p697) target = $region16
        $region15: #{vit_forward.1} parent=11 // pred_region
          _
        $region16: #{vit_forward.1} parent=11 // pred_fallthru
          _
        // Predicated region
        $region17: #{vit_forward.1} parent=11 // pred_check
          %p700 = pneg %p114
        $region18: #{vit_forward.1} parent=11 // pred_check_branch
          %702 = sbr.rel (%p700) target = $region20
        $region19: #{vit_forward.1} parent=11 // pred_region
          _
        $region20: #{vit_forward.1} parent=11 // pred_fallthru
          _
        // Predicated region
        $region21: #{vit_forward.1} parent=11 // pred_check
          %p703 = pneg %p135
        $region22: #{vit_forward.1} parent=11 // pred_check_branch
          %705 = sbr.rel (%p703) target = $region24
        $region23: #{vit_forward.1} parent=11 // pred_region
          _
        $region24: #{vit_forward.1} parent=11 // pred_fallthru
          _
        // Predicated region
        $region25: #{vit_forward.1} parent=11 // pred_check
          %p706 = pneg %p156
        $region26: #{vit_forward.1} parent=11 // pred_check_branch
          %708 = sbr.rel (%p706) target = $region28
        $region27: #{vit_forward.1} parent=11 // pred_region
          _
        $region28: #{vit_forward.1} parent=11 // pred_fallthru
          _
        // Predicated region
        $region29: #{vit_forward.1} parent=11 // pred_check
          %p709 = pneg %p593
        $region30: #{vit_forward.1} parent=11 // pred_check_branch
          %711 = sbr.rel (%p709) target = $region32
        $region31: #{vit_forward.1} parent=11 // pred_region
          _
        $region32: #{vit_forward.1} parent=11 // pred_fallthru
          _
        // Predicated region
        $region33: #{vit_forward.1} parent=11 // pred_check
          %p712 = pneg %p614
        $region34: #{vit_forward.1} parent=11 // pred_check_branch
          %714 = sbr.rel (%p712) target = $region36
        $region35: #{vit_forward.1} parent=11 // pred_region
          _
        $region36: #{vit_forward.1} parent=11 // pred_fallthru
          _
        // Predicated region
        $region37: #{vit_forward.1} parent=11 // pred_check
          %p715 = pneg %p635
        $region38: #{vit_forward.1} parent=11 // pred_check_branch
          %717 = sbr.rel (%p715) target = $region40
        $region39: #{vit_forward.1} parent=11 // pred_region
          _
        $region40: #{vit_forward.1} parent=11 // pred_fallthru
          _
        // Predicated region
        $region41: #{vit_forward.1} parent=11 // pred_check
          %p718 = pneg %p656
        $region42: #{vit_forward.1} parent=11 // pred_check_branch
          %720 = sbr.rel (%p718) target = $region44
        $region43: #{vit_forward.1} parent=11 // pred_region
          _
        $region44: #{vit_forward.1} parent=11 // pred_fallthru
          _
      $region12: #{vit_forward.1} parent=5 // pred_fallthru
        _
      %p721 = scmp.lt.s32.totalorder %s34, 4
      // Predicated region
      $region45: #{vit_forward.1} parent=5 // pred_check
        %p722 = pneg %p721
      $region46: #{vit_forward.1} parent=5 // pred_check_branch
        %724 = sbr.rel (%p722) target = $region48
      $region47: #{vit_forward.1} parent=5 // pred_region
        // Predicated region
        $region49: #{vit_forward.1} parent=47 // pred_check
          %p725 = pneg %p66
        $region50: #{vit_forward.1} parent=47 // pred_check_branch
          %727 = sbr.rel (%p725) target = $region52
        $region51: #{vit_forward.1} parent=47 // pred_region
          %p728 = scmp.lt.s32.totalorder %s41, 1
          %s729 = scalar_select %p728, %s41, 1
          %s730 = smul.addr %s729, 2
          %s731 = smul.addr %s730, 8
          %s732 = scalar_lea.vmem %s0, %s731
        $region52: #{vit_forward.1} parent=47 // pred_fallthru
          _
        // Predicated region
        $region53: #{vit_forward.1} parent=47 // pred_check
          %p733 = pneg %p176
        $region54: #{vit_forward.1} parent=47 // pred_check_branch
          %735 = sbr.rel (%p733) target = $region56
        $region55: #{vit_forward.1} parent=47 // pred_region
          %p736 = scmp.lt.s32.totalorder %s42, 1
          %s737 = scalar_select %p736, %s42, 1
          %s738 = scalar_lea.vmem %s5, %s737
        $region56: #{vit_forward.1} parent=47 // pred_fallthru
          _
        // Predicated region
        $region57: #{vit_forward.1} parent=47 // pred_check
          %p739 = pneg %p202
        $region58: #{vit_forward.1} parent=47 // pred_check_branch
          %741 = sbr.rel (%p739) target = $region60
        $region59: #{vit_forward.1} parent=47 // pred_region
          %p742 = scmp.lt.s32.totalorder %s42, 1
          %s743 = scalar_select %p742, %s42, 1
          %s744 = scalar_lea.vmem %s6, %s743
        $region60: #{vit_forward.1} parent=47 // pred_fallthru
          _
        // Predicated region
        $region61: #{vit_forward.1} parent=47 // pred_check
          %p745 = pneg %p228
        $region62: #{vit_forward.1} parent=47 // pred_check_branch
          %747 = sbr.rel (%p745) target = $region64
        $region63: #{vit_forward.1} parent=47 // pred_region
          %p748 = scmp.lt.s32.totalorder %s42, 1
          %s749 = scalar_select %p748, %s42, 1
          %s750 = smul.addr %s749, 32
          %s751 = smul.addr %s750, 4
          %s752 = scalar_lea.vmem %s7, %s751
        $region64: #{vit_forward.1} parent=47 // pred_fallthru
          _
        // Predicated region
        $region65: #{vit_forward.1} parent=47 // pred_check
          %p753 = pneg %p254
        $region66: #{vit_forward.1} parent=47 // pred_check_branch
          %755 = sbr.rel (%p753) target = $region68
        $region67: #{vit_forward.1} parent=47 // pred_region
          %p756 = scmp.lt.s32.totalorder %s42, 1
          %s757 = scalar_select %p756, %s42, 1
          %s758 = smul.addr %s757, 32
          %s759 = smul.addr %s758, 4
          %s760 = scalar_lea.vmem %s8, %s759
        $region68: #{vit_forward.1} parent=47 // pred_fallthru
          _
        // Predicated region
        $region69: #{vit_forward.1} parent=47 // pred_check
          %p761 = pneg %p280
        $region70: #{vit_forward.1} parent=47 // pred_check_branch
          %763 = sbr.rel (%p761) target = $region72
        $region71: #{vit_forward.1} parent=47 // pred_region
          %p764 = scmp.lt.s32.totalorder %s42, 1
          %s765 = scalar_select %p764, %s42, 1
          %s766 = smul.addr %s765, 32
          %s767 = smul.addr %s766, 4
          %s768 = scalar_lea.vmem %s9, %s767
        $region72: #{vit_forward.1} parent=47 // pred_fallthru
          _
        // Predicated region
        $region73: #{vit_forward.1} parent=47 // pred_check
          %p769 = pneg %p306
        $region74: #{vit_forward.1} parent=47 // pred_check_branch
          %771 = sbr.rel (%p769) target = $region76
        $region75: #{vit_forward.1} parent=47 // pred_region
          %p772 = scmp.lt.s32.totalorder %s42, 1
          %s773 = scalar_select %p772, %s42, 1
          %s774 = smul.addr %s773, 4
          %s775 = scalar_lea.vmem %s10, %s774
        $region76: #{vit_forward.1} parent=47 // pred_fallthru
          _
        // Predicated region
        $region77: #{vit_forward.1} parent=47 // pred_check
          %p776 = pneg %p332
        $region78: #{vit_forward.1} parent=47 // pred_check_branch
          %778 = sbr.rel (%p776) target = $region80
        $region79: #{vit_forward.1} parent=47 // pred_region
          %p779 = scmp.lt.s32.totalorder %s42, 1
          %s780 = scalar_select %p779, %s42, 1
          %s781 = smul.addr %s780, 4
          %s782 = scalar_lea.vmem %s11, %s781
        $region80: #{vit_forward.1} parent=47 // pred_fallthru
          _
        // Predicated region
        $region81: #{vit_forward.1} parent=47 // pred_check
          %p783 = pneg %p358
        $region82: #{vit_forward.1} parent=47 // pred_check_branch
          %785 = sbr.rel (%p783) target = $region84
        $region83: #{vit_forward.1} parent=47 // pred_region
          %p786 = scmp.lt.s32.totalorder %s42, 1
          %s787 = scalar_select %p786, %s42, 1
          %s788 = smul.addr %s787, 4
          %s789 = scalar_lea.vmem %s12, %s788
        $region84: #{vit_forward.1} parent=47 // pred_fallthru
          _
        // Predicated region
        $region85: #{vit_forward.1} parent=47 // pred_check
          %p790 = pneg %p384
        $region86: #{vit_forward.1} parent=47 // pred_check_branch
          %792 = sbr.rel (%p790) target = $region88
        $region87: #{vit_forward.1} parent=47 // pred_region
          %p793 = scmp.lt.s32.totalorder %s42, 1
          %s794 = scalar_select %p793, %s42, 1
          %s795 = smul.addr %s794, 8
          %s796 = smul.addr %s795, 4
          %s797 = scalar_lea.vmem %s13, %s796
        $region88: #{vit_forward.1} parent=47 // pred_fallthru
          _
        // Predicated region
        $region89: #{vit_forward.1} parent=47 // pred_check
          %p798 = pneg %p410
        $region90: #{vit_forward.1} parent=47 // pred_check_branch
          %800 = sbr.rel (%p798) target = $region92
        $region91: #{vit_forward.1} parent=47 // pred_region
          %p801 = scmp.lt.s32.totalorder %s42, 1
          %s802 = scalar_select %p801, %s42, 1
          %s803 = scalar_lea.vmem %s14, %s802
        $region92: #{vit_forward.1} parent=47 // pred_fallthru
          _
        // Predicated region
        $region93: #{vit_forward.1} parent=47 // pred_check
          %p804 = pneg %p436
        $region94: #{vit_forward.1} parent=47 // pred_check_branch
          %806 = sbr.rel (%p804) target = $region96
        $region95: #{vit_forward.1} parent=47 // pred_region
          %p807 = scmp.lt.s32.totalorder %s42, 1
          %s808 = scalar_select %p807, %s42, 1
          %s809 = scalar_lea.vmem %s15, %s808
        $region96: #{vit_forward.1} parent=47 // pred_fallthru
          _
        // Predicated region
        $region97: #{vit_forward.1} parent=47 // pred_check
          %p810 = pneg %p462
        $region98: #{vit_forward.1} parent=47 // pred_check_branch
          %812 = sbr.rel (%p810) target = $region100
        $region99: #{vit_forward.1} parent=47 // pred_region
          %p813 = scmp.lt.s32.totalorder %s42, 1
          %s814 = scalar_select %p813, %s42, 1
          %s815 = scalar_lea.vmem %s16, %s814
        $region100: #{vit_forward.1} parent=47 // pred_fallthru
          _
        // Predicated region
        $region101: #{vit_forward.1} parent=47 // pred_check
          %p816 = pneg %p488
        $region102: #{vit_forward.1} parent=47 // pred_check_branch
          %818 = sbr.rel (%p816) target = $region104
        $region103: #{vit_forward.1} parent=47 // pred_region
          %p819 = scmp.lt.s32.totalorder %s42, 1
          %s820 = scalar_select %p819, %s42, 1
          %s821 = smul.addr %s820, 8
          %s822 = smul.addr %s821, 4
          %s823 = scalar_lea.vmem %s17, %s822
        $region104: #{vit_forward.1} parent=47 // pred_fallthru
          _
        // Predicated region
        $region105: #{vit_forward.1} parent=47 // pred_check
          %p824 = pneg %p514
        $region106: #{vit_forward.1} parent=47 // pred_check_branch
          %826 = sbr.rel (%p824) target = $region108
        $region107: #{vit_forward.1} parent=47 // pred_region
          %p827 = scmp.lt.s32.totalorder %s42, 1
          %s828 = scalar_select %p827, %s42, 1
          %s829 = scalar_lea.vmem %s18, %s828
        $region108: #{vit_forward.1} parent=47 // pred_fallthru
          _
        // Predicated region
        $region109: #{vit_forward.1} parent=47 // pred_check
          %p830 = pneg %p540
        $region110: #{vit_forward.1} parent=47 // pred_check_branch
          %832 = sbr.rel (%p830) target = $region112
        $region111: #{vit_forward.1} parent=47 // pred_region
          %p833 = scmp.lt.s32.totalorder %s42, 1
          %s834 = scalar_select %p833, %s42, 1
          %s835 = smul.addr %s834, 16
          %s836 = smul.addr %s835, 4
          %s837 = scalar_lea.vmem %s19, %s836
        $region112: #{vit_forward.1} parent=47 // pred_fallthru
          _
        // Predicated region
        $region113: #{vit_forward.1} parent=47 // pred_check
          %p838 = pneg %p566
        $region114: #{vit_forward.1} parent=47 // pred_check_branch
          %840 = sbr.rel (%p838) target = $region116
        $region115: #{vit_forward.1} parent=47 // pred_region
          %p841 = scmp.lt.s32.totalorder %s42, 1
          %s842 = scalar_select %p841, %s42, 1
          %s843 = scalar_lea.vmem %s20, %s842
        $region116: #{vit_forward.1} parent=47 // pred_fallthru
          _
      $region48: #{vit_forward.1} parent=5 // pred_fallthru
        _
      %p844 = scmp.le.s32.totalorder 1, %s34
      %p845 = scmp.lt.s32.totalorder %s34, 5
      %p846 = pnand %p844, %p845
      %p847 = pneg %p846
      // Predicated region
      $region117: #{vit_forward.1} parent=5 // pred_check
        _
      $region118: #{vit_forward.1} parent=5 // pred_check_branch
        %849 = sbr.rel (%p846) target = $region120
      $region119: #{vit_forward.1} parent=5 // pred_region
        %s850 = ssub.s32 %s34, 1
        %p851 = scmp.lt.s32.totalorder %s43, 1
        %s852 = scalar_select %p851, %s43, 1
        %s853 = smul.addr %s852, 2
        %s854 = smul.addr %s853, 8
        %s855 = scalar_lea.vmem %s0, %s854
        %p856 = pneg %p72
        %p857 = pneg %p69
        %p858 = pneg %p93
        %p859 = pneg %p90
        %p860 = pneg %p114
        %p861 = pneg %p111
        %p862 = pneg %p135
        %p863 = pneg %p132
        %p864 = pneg %p156
        %p865 = pneg %p153
        %p866 = scmp.lt.s32.totalorder %s44, 1
        %s867 = scalar_select %p866, %s44, 1
        %s868 = scalar_lea.vmem %s5, %s867
        %p869 = pneg %p182
        %p870 = pneg %p179
        %p871 = scmp.lt.s32.totalorder %s44, 1
        %s872 = scalar_select %p871, %s44, 1
        %s873 = scalar_lea.vmem %s6, %s872
        %p874 = pneg %p208
        %p875 = pneg %p205
        %p876 = scmp.lt.s32.totalorder %s44, 1
        %s877 = scalar_select %p876, %s44, 1
        %s878 = smul.addr %s877, 32
        %s879 = smul.addr %s878, 4
        %s880 = scalar_lea.vmem %s7, %s879
        %p881 = pneg %p234
        %p882 = pneg %p231
        %p883 = scmp.lt.s32.totalorder %s44, 1
        %s884 = scalar_select %p883, %s44, 1
        %s885 = smul.addr %s884, 32
        %s886 = smul.addr %s885, 4
        %s887 = scalar_lea.vmem %s8, %s886
        %p888 = pneg %p260
        %p889 = pneg %p257
        %p890 = scmp.lt.s32.totalorder %s44, 1
        %s891 = scalar_select %p890, %s44, 1
        %s892 = smul.addr %s891, 32
        %s893 = smul.addr %s892, 4
        %s894 = scalar_lea.vmem %s9, %s893
        %p895 = pneg %p286
        %p896 = pneg %p283
        %p897 = scmp.lt.s32.totalorder %s44, 1
        %s898 = scalar_select %p897, %s44, 1
        %s899 = smul.addr %s898, 4
        %s900 = scalar_lea.vmem %s10, %s899
        %p901 = pneg %p312
        %p902 = pneg %p309
        %p903 = scmp.lt.s32.totalorder %s44, 1
        %s904 = scalar_select %p903, %s44, 1
        %s905 = smul.addr %s904, 4
        %s906 = scalar_lea.vmem %s11, %s905
        %p907 = pneg %p338
        %p908 = pneg %p335
        %p909 = scmp.lt.s32.totalorder %s44, 1
        %s910 = scalar_select %p909, %s44, 1
        %s911 = smul.addr %s910, 4
        %s912 = scalar_lea.vmem %s12, %s911
        %p913 = pneg %p364
        %p914 = pneg %p361
        %p915 = scmp.lt.s32.totalorder %s44, 1
        %s916 = scalar_select %p915, %s44, 1
        %s917 = smul.addr %s916, 8
        %s918 = smul.addr %s917, 4
        %s919 = scalar_lea.vmem %s13, %s918
        %p920 = pneg %p390
        %p921 = pneg %p387
        %p922 = scmp.lt.s32.totalorder %s44, 1
        %s923 = scalar_select %p922, %s44, 1
        %s924 = scalar_lea.vmem %s14, %s923
        %p925 = pneg %p416
        %p926 = pneg %p413
        %p927 = scmp.lt.s32.totalorder %s44, 1
        %s928 = scalar_select %p927, %s44, 1
        %s929 = scalar_lea.vmem %s15, %s928
        %p930 = pneg %p442
        %p931 = pneg %p439
        %p932 = scmp.lt.s32.totalorder %s44, 1
        %s933 = scalar_select %p932, %s44, 1
        %s934 = scalar_lea.vmem %s16, %s933
        %p935 = pneg %p468
        %p936 = pneg %p465
        %p937 = scmp.lt.s32.totalorder %s44, 1
        %s938 = scalar_select %p937, %s44, 1
        %s939 = smul.addr %s938, 8
        %s940 = smul.addr %s939, 4
        %s941 = scalar_lea.vmem %s17, %s940
        %p942 = pneg %p494
        %p943 = pneg %p491
        %p944 = scmp.lt.s32.totalorder %s44, 1
        %s945 = scalar_select %p944, %s44, 1
        %s946 = scalar_lea.vmem %s18, %s945
        %p947 = pneg %p520
        %p948 = pneg %p517
        %p949 = scmp.lt.s32.totalorder %s44, 1
        %s950 = scalar_select %p949, %s44, 1
        %s951 = smul.addr %s950, 16
        %s952 = smul.addr %s951, 4
        %s953 = scalar_lea.vmem %s19, %s952
        %p954 = pneg %p546
        %p955 = pneg %p543
        %p956 = scmp.lt.s32.totalorder %s44, 1
        %s957 = scalar_select %p956, %s44, 1
        %s958 = scalar_lea.vmem %s20, %s957
        %p959 = pneg %p572
        %p960 = pneg %p569
        %p961 = pneg %p593
        %p962 = pneg %p590
        %p963 = pneg %p614
        %p964 = pneg %p611
        %p965 = pneg %p635
        %p966 = pneg %p632
        %p967 = pneg %p656
        %p968 = pneg %p653
        %p969 = pneg %p682
        %p970 = pneg %p679
        %s971 = sand.u32 %s669, 1
        %s972 = scalar_lea.sflag [#allocation4], %s971
        %s973 = sand.u32 %s669, 1
        %s974 = scalar_lea.vmem [#allocation3], %s973
        %p975 = scmp.lt.s32.totalorder %s43, 1
        %s976 = scalar_select %p975, %s43, 1
        %s977 = smul.addr %s976, 2
        %s978 = smul.addr %s977, 8
        %s979 = scalar_lea.vmem %s0, %s978
        %p980 = scmp.lt.s32.totalorder %s44, 1
        %s981 = scalar_select %p980, %s44, 1
        %s982 = scalar_lea.vmem %s5, %s981
        %p983 = scmp.lt.s32.totalorder %s44, 1
        %s984 = scalar_select %p983, %s44, 1
        %s985 = scalar_lea.vmem %s6, %s984
        %p986 = scmp.lt.s32.totalorder %s44, 1
        %s987 = scalar_select %p986, %s44, 1
        %s988 = smul.addr %s987, 32
        %s989 = smul.addr %s988, 4
        %s990 = scalar_lea.vmem %s7, %s989
        %p991 = scmp.lt.s32.totalorder %s44, 1
        %s992 = scalar_select %p991, %s44, 1
        %s993 = smul.addr %s992, 32
        %s994 = smul.addr %s993, 4
        %s995 = scalar_lea.vmem %s8, %s994
        %p996 = scmp.lt.s32.totalorder %s44, 1
        %s997 = scalar_select %p996, %s44, 1
        %s998 = smul.addr %s997, 32
        %s999 = smul.addr %s998, 4
        %s1000 = scalar_lea.vmem %s9, %s999
        %p1001 = scmp.lt.s32.totalorder %s44, 1
        %s1002 = scalar_select %p1001, %s44, 1
        %s1003 = smul.addr %s1002, 4
        %s1004 = scalar_lea.vmem %s10, %s1003
        %p1005 = scmp.lt.s32.totalorder %s44, 1
        %s1006 = scalar_select %p1005, %s44, 1
        %s1007 = smul.addr %s1006, 4
        %s1008 = scalar_lea.vmem %s11, %s1007
        %p1009 = scmp.lt.s32.totalorder %s44, 1
        %s1010 = scalar_select %p1009, %s44, 1
        %s1011 = smul.addr %s1010, 4
        %s1012 = scalar_lea.vmem %s12, %s1011
        %p1013 = scmp.lt.s32.totalorder %s44, 1
        %s1014 = scalar_select %p1013, %s44, 1
        %s1015 = smul.addr %s1014, 8
        %s1016 = smul.addr %s1015, 4
        %s1017 = scalar_lea.vmem %s13, %s1016
        %p1018 = scmp.lt.s32.totalorder %s44, 1
        %s1019 = scalar_select %p1018, %s44, 1
        %s1020 = scalar_lea.vmem %s14, %s1019
        %p1021 = scmp.lt.s32.totalorder %s44, 1
        %s1022 = scalar_select %p1021, %s44, 1
        %s1023 = scalar_lea.vmem %s15, %s1022
        %p1024 = scmp.lt.s32.totalorder %s44, 1
        %s1025 = scalar_select %p1024, %s44, 1
        %s1026 = scalar_lea.vmem %s16, %s1025
        %p1027 = scmp.lt.s32.totalorder %s44, 1
        %s1028 = scalar_select %p1027, %s44, 1
        %s1029 = smul.addr %s1028, 8
        %s1030 = smul.addr %s1029, 4
        %s1031 = scalar_lea.vmem %s17, %s1030
        %p1032 = scmp.lt.s32.totalorder %s44, 1
        %s1033 = scalar_select %p1032, %s44, 1
        %s1034 = scalar_lea.vmem %s18, %s1033
        %p1035 = scmp.lt.s32.totalorder %s44, 1
        %s1036 = scalar_select %p1035, %s44, 1
        %s1037 = smul.addr %s1036, 16
        %s1038 = smul.addr %s1037, 4
        %s1039 = scalar_lea.vmem %s19, %s1038
        %p1040 = scmp.lt.s32.totalorder %s44, 1
        %s1041 = scalar_select %p1040, %s44, 1
        %s1042 = scalar_lea.vmem %s20, %s1041
        %p1044 = scmp.eq.s32.totalorder %s44, 0
        // Predicated region
        $region121: #{vit_forward.1} parent=119 // pred_check
          %p1045 = pneg %p1044
        $region122: #{vit_forward.1} parent=119 // pred_check_branch
          %1047 = sbr.rel (%p1045) target = $region124
        $region123: #{vit_forward.1} parent=119 // pred_region
          %v1048 = vld [vmem:[%s979] sm:$0xff]
          %v1049 = vld [vmem:[%s979 + $0x8] sm:$0xff]
          %v1050 = vld [vmem:[%s1] sm:$0xff]
          %v1051 = vld [vmem:[%s1 + $0x8] sm:$0xff]
          %v1052 = vld [vmem:[%s1 + $0x10] sm:$0xff]
          %v1053 = vld [vmem:[%s1 + $0x18] sm:$0xff]
          %v1054 = vld [vmem:[%s1 + $0x20] sm:$0xff]
          %v1055 = vld [vmem:[%s1 + $0x28] sm:$0xff]
          %v1056 = vld [vmem:[%s2] sm:$0x1]
          %v1058 = vlaneseq
          %v1059 = vshrl.u32 %v1058, 7
          %v1060 = vsub.s32 0, %v1059
          %v1061 = vrot.slane %v1056, %v1060
          %vm1063 = vcmask 392192
          %v1065 = vsel %vm1063, %v1048, 0
          %v1068 = vsel %vm1063, %v1049, 0
          %1070 = vmatprep.subr.mxu0 0.0
          %1071 = vmatpush1.msra.mxu0 %v1050
          %1072 = vmatprep.subr.mxu0 0.0
          %1073 = vmatpush1.msra.mxu0 %v1051
          %1074 = vmatprep.subr.mxu0 0.0
          %1075 = vmatpush1.msra.mxu0 %v1052
          %1076 = vmatprep.subr.mxu0 0.0
          %1077 = vmatpush1.msra.mxu0 %v1053
          %1078 = vmatprep.subr.mxu0 0.0
          %1079 = vmatpush1.msra.mxu0 %v1054
          %1080 = vmatprep.subr.mxu0 0.0
          %1081 = vmatpush1.msra.mxu0 %v1055
          %1082 = vmatprep.subr.mxu0 0.0
          %1083 = vmatpush1.msra.mxu0 0.0
          %1084 = vmatprep.subr.mxu0 0.0
          %1085 = vmatpush1.msra.mxu0 0.0
          %1086 = vmatprep.subr.mxu0 0.0
          %1087 = vmatpush1.msra.mxu0 0.0
          %1088 = vmatprep.subr.mxu0 0.0
          %1089 = vmatpush1.msra.mxu0 0.0
          %1090 = vmatprep.subr.mxu0 0.0
          %1091 = vmatpush1.msra.mxu0 0.0
          %1092 = vmatprep.subr.mxu0 0.0
          %1093 = vmatpush1.msra.mxu0 0.0
          %1094 = vmatprep.subr.mxu0 0.0
          %1095 = vmatpush1.msra.mxu0 0.0
          %1096 = vmatprep.subr.mxu0 0.0
          %1097 = vmatpush1.msra.mxu0 0.0
          %1098 = vmatprep.subr.mxu0 0.0
          %1099 = vmatpush1.msra.mxu0 0.0
          %1100 = vmatprep.subr.mxu0 0.0
          %1101 = vmatpush1.msra.mxu0 0.0
          %1102 = vmatprep.subr.mxu0 0.0
          %1103 = vmatpush1.msra.mxu0 0.0
          %1104 = vmatprep.subr.mxu0 0.0
          %1105 = vmatpush1.msra.mxu0 0.0
          %1106 = vmatprep.subr.mxu0 0.0
          %1107 = vmatpush1.msra.mxu0 0.0
          %1108 = vmatprep.subr.mxu0 0.0
          %1109 = vmatpush1.msra.mxu0 0.0
          %1110 = vmatprep.subr.mxu0 0.0
          %1111 = vmatpush1.msra.mxu0 0.0
          %1112 = vmatprep.subr.mxu0 0.0
          %1113 = vmatpush1.msra.mxu0 0.0
          %1114 = vmatprep.subr.mxu0 0.0
          %1115 = vmatpush1.msra.mxu0 0.0
          %1116 = vmatprep.subr.mxu0 0.0
          %1117 = vmatpush1.msra.mxu0 0.0
          %1118 = vmatprep.subr.mxu0 0.0
          %1119 = vmatpush1.msra.mxu0 0.0
          %1120 = vmatprep.subr.mxu0 0.0
          %1121 = vmatpush1.msra.mxu0 0.0
          %1122 = vmatprep.subr.mxu0 0.0
          %1123 = vmatpush1.msra.mxu0 0.0
          %1124 = vmatprep.subr.mxu0 0.0
          %1125 = vmatpush1.msra.mxu0 0.0
          %1126 = vmatprep.subr.mxu0 0.0
          %1127 = vmatpush1.msra.mxu0 0.0
          %1128 = vmatprep.subr.mxu0 0.0
          %1129 = vmatpush1.msra.mxu0 0.0
          %1130 = vmatprep.subr.mxu0 0.0
          %1131 = vmatpush1.msra.mxu0 0.0
          %1132 = vmatprep.subr.mxu0 0.0
          %1133 = vmatpush1.msra.mxu0 0.0
          %1134 = vmatprep.mubr.f32.mxu0 0.0
          %1135 = vmatmul.mubr.f32.gmra.mrb[0].mxu0 %v1065
          %v1136 = vpop.f32.mrb[0].mxu0
          %v1137 = vadd.f32 %v1061, %v1136
          %v1138 = vpop.f32.mrb[0].mxu0
          %1139 = vmatprep.mubr.f32.mxu0 0.0
          %1140 = vmatmul.mubr.f32.gmra.mrb[0].mxu0 %v1068
          %v1141 = vpop.f32.mrb[0].mxu0
          %v1142 = vadd.f32 %v1061, %v1141
          %v1143 = vpop.f32.mrb[0].mxu0
          %1144 = vdwg.mxu0
          %v1145 = vld [vmem:[%s3] sm:$0x1]
          %vm1148 = vcmask 1040384
          %v1149 = vrot.slane %v1137, 7
          %v1150 = vrot.slane %v1142, 7
          %v1151 = vsel %vm1148, %v1149, %v1150
          %v1155 = vsel %vm1148, %v1145, %v1149
          %v1156 = vsel %vm1148, %v1150, 0.0
          %v1157 = vld [vmem:[%s4] sm:$0xff]
          %v1158 = vld [vmem:[%s4 + $0x8] sm:$0xff]
          %v1159 = vld [vmem:[%s4 + $0x10] sm:$0xff]
          %v1160 = vadd.f32 %v1155, %v1157
          %v1161 = vadd.f32 %v1151, %v1158
          %v1162 = vadd.f32 %v1156, %v1159
          %vm1163 = vcmask 523264
          %1164 = vst.msk [vmem:[#allocation2] sm:$0xff] %vm1163, %v1160
          %1165 = vst.msk [vmem:[#allocation2 + $0x8] sm:$0xff] %vm1163, %v1161
          %1166 = vst.msk [vmem:[#allocation2 + $0x10] sm:$0xff] %vm1163, %v1162
        $region124: #{vit_forward.1} parent=119 // pred_fallthru
          _
        %v1167 = vld [vmem:[#allocation2] sm:$0xff]
        %v1168 = vld [vmem:[#allocation2 + $0x8] sm:$0xff]
        %v1169 = vld [vmem:[#allocation2 + $0x10] sm:$0xff]
        %v1170 = vld [vmem:[%s982] sm:$0x1]
        %v1171 = vld [vmem:[%s985] sm:$0x1]
        %vm1172 = vcmask 523264
        %v1173 = vsel %vm1172, %v1167, 0.0
        %1174 = vadd.xlane.f32.xlu0 %v1173
        %v1175 = vpop.xlane.xlu0 %1174
        %v1176 = vsel %vm1172, %v1168, 0.0
        %1177 = vadd.xlane.f32.xlu0 %v1176
        %v1178 = vpop.xlane.xlu0 %1177
        %v1179 = vsel %vm1172, %v1169, 0.0
        %1180 = vadd.xlane.f32.xlu0 %v1179
        %v1181 = vpop.xlane.xlu0 %1180
        %v1182 = vrcp.pop 64.0
        %v1183 = vmul.f32 %v1175, %v1182
        %v1184 = vmul.f32 %v1178, %v1182
        %v1185 = vmul.f32 %v1181, %v1182
        %v1186 = vsub.f32 %v1167, %v1183
        %v1187 = vsub.f32 %v1168, %v1184
        %v1188 = vsub.f32 %v1169, %v1185
        %v1189 = vmul.f32 %v1186, %v1186
        %v1190 = vmul.f32 %v1187, %v1187
        %v1191 = vmul.f32 %v1188, %v1188
        %v1192 = vsel %vm1172, %v1189, 0.0
        %1193 = vadd.xlane.f32.xlu0 %v1192
        %v1194 = vpop.xlane.xlu0 %1193
        %v1195 = vsel %vm1172, %v1190, 0.0
        %1196 = vadd.xlane.f32.xlu0 %v1195
        %v1197 = vpop.xlane.xlu0 %1196
        %v1198 = vsel %vm1172, %v1191, 0.0
        %1199 = vadd.xlane.f32.xlu0 %v1198
        %v1200 = vpop.xlane.xlu0 %1199
        %v1201 = vmul.f32 %v1194, %v1182
        %v1202 = vmul.f32 %v1197, %v1182
        %v1203 = vmul.f32 %v1200, %v1182
        %v1204 = vadd.f32 %v1201, 1e-05
        %v1205 = vadd.f32 %v1202, 1e-05
        %v1206 = vadd.f32 %v1203, 1e-05
        %v1207 = vrsqrt.pop %v1204
        %v1208 = vrsqrt.pop %v1205
        %v1209 = vrsqrt.pop %v1206
        %v1210 = vmul.f32 %v1186, %v1207
        %v1211 = vmul.f32 %v1187, %v1208
        %v1212 = vmul.f32 %v1188, %v1209
        %v1214 = vlaneseq
        %v1215 = vshrl.u32 %v1214, 7
        %v1216 = vsub.s32 0, %v1215
        %v1217 = vrot.slane %v1170, %v1216
        %v1219 = vmul.f32 %v1210, %v1217
        %v1220 = vmul.f32 %v1211, %v1217
        %v1221 = vmul.f32 %v1212, %v1217
        %v1223 = vlaneseq
        %v1224 = vshrl.u32 %v1223, 7
        %v1225 = vsub.s32 0, %v1224
        %v1226 = vrot.slane %v1171, %v1225
        %v1228 = vadd.f32 %v1219, %v1226
        %v1229 = vadd.f32 %v1220, %v1226
        %v1230 = vadd.f32 %v1221, %v1226
        %v1231 = vpack.c.bf16 %v1229, %v1228
        %v1232 = vpack.c.bf16 %v1230, %v1230
        %v1233 = vlaneseq
        %v1234 = vand.u32 %v1233, 127
        %vm1235 = vcmp.lt.s32.totalorder %v1234, 17
        %v1236 = vsel %vm1235, 0.0, -1e+09
        %v1237 = vld [vmem:[%s1004] sm:$0xf]
        %v1238 = vld [vmem:[%s1008] sm:$0xf]
        %v1239 = vld [vmem:[%s1012] sm:$0xf]
        %v1240 = vld [vmem:[%s990] sm:$0xf]
        %v1241 = vld [vmem:[%s990 + $0x4] sm:$0xf]
        %v1242 = vld [vmem:[%s990 + $0x8] sm:$0xf]
        %v1243 = vld [vmem:[%s990 + $0xc] sm:$0xf]
        %v1244 = vld [vmem:[%s990 + $0x10] sm:$0xf]
        %v1245 = vld [vmem:[%s990 + $0x14] sm:$0xf]
        %v1246 = vld [vmem:[%s990 + $0x18] sm:$0xf]
        %v1247 = vld [vmem:[%s990 + $0x1c] sm:$0xf]
        %v1248 = vlaneseq
        %v1249 = vshrl.u32 %v1248, 7
        %v1250 = vsub.s32 0, %v1249
        %v1251 = vrot.slane %v1237, %v1250
        %v1260 = vunpack.c.l.b16 %v1240
        %v1261 = vunpack.c.l.b16 %v1241
        %v1262 = vunpack.c.l.b16 %v1242
        %v1263 = vunpack.c.l.b16 %v1243
        %v1264 = vunpack.c.l.b16 %v1244
        %v1265 = vunpack.c.l.b16 %v1245
        %v1266 = vunpack.c.l.b16 %v1246
        %v1267 = vunpack.c.l.b16 %v1247
        %v1268 = vpack.c.b16 %v1261, %v1260
        %v1269 = vpack.c.b16 %v1263, %v1262
        %v1270 = vpack.c.b16 %v1265, %v1264
        %v1271 = vpack.c.b16 %v1267, %v1266
        %v1277 = vsel %vm1172, %v1231, 0
        %v1280 = vsel %vm1172, %v1232, 0
        %1282 = vmatprep.subr.bf16.mxu0 0
        %1283 = vmatpush1.bf16.msra.mxu0 %v1268
        %1284 = vmatprep.subr.bf16.mxu0 0
        %1285 = vmatpush1.bf16.msra.mxu0 %v1269
        %1286 = vmatprep.subr.bf16.mxu0 0
        %1287 = vmatpush1.bf16.msra.mxu0 %v1270
        %1288 = vmatprep.subr.bf16.mxu0 0
        %1289 = vmatpush1.bf16.msra.mxu0 %v1271
        %1290 = vmatprep.subr.bf16.mxu0 0
        %1291 = vmatpush1.bf16.msra.mxu0 0
        %1292 = vmatprep.subr.bf16.mxu0 0
        %1293 = vmatpush1.bf16.msra.mxu0 0
        %1294 = vmatprep.subr.bf16.mxu0 0
        %1295 = vmatpush1.bf16.msra.mxu0 0
        %1296 = vmatprep.subr.bf16.mxu0 0
        %1297 = vmatpush1.bf16.msra.mxu0 0
        %1298 = vmatprep.subr.bf16.mxu0 0
        %1299 = vmatpush1.bf16.msra.mxu0 0
        %1300 = vmatprep.subr.bf16.mxu0 0
        %1301 = vmatpush1.bf16.msra.mxu0 0
        %1302 = vmatprep.subr.bf16.mxu0 0
        %1303 = vmatpush1.bf16.msra.mxu0 0
        %1304 = vmatprep.subr.bf16.mxu0 0
        %1305 = vmatpush1.bf16.msra.mxu0 0
        %1306 = vmatprep.subr.bf16.mxu0 0
        %1307 = vmatpush1.bf16.msra.mxu0 0
        %1308 = vmatprep.subr.bf16.mxu0 0
        %1309 = vmatpush1.bf16.msra.mxu0 0
        %1310 = vmatprep.subr.bf16.mxu0 0
        %1311 = vmatpush1.bf16.msra.mxu0 0
        %1312 = vmatprep.subr.bf16.mxu0 0
        %1313 = vmatpush1.bf16.msra.mxu0 0
        %1314 = vmatprep.mubr.bf16.mxu0 0
        %1315 = vmatmul.mubr.bf16.gmra.mrb[0].mxu0 %v1277
        %v1316 = vpop.f32.mrb[0].mxu0
        %v1317 = vadd.f32 %v1251, %v1316
        %v1318 = vpop.f32.mrb[0].mxu0
        %v1319 = vpop.f32.mrb[0].mxu0
        %v1320 = vadd.f32 %v1251, %v1319
        %v1321 = vpop.f32.mrb[0].mxu0
        %1322 = vmatprep.mubr.bf16.mxu0 0
        %1323 = vmatmul.mubr.bf16.gmra.mrb[0].mxu0 %v1280
        %v1324 = vpop.f32.mrb[0].mxu0
        %v1325 = vadd.f32 %v1251, %v1324
        %v1326 = vpop.f32.mrb[0].mxu0
        %v1327 = vpop.f32.mrb[0].mxu0
        %v1328 = vpop.f32.mrb[0].mxu0
        %1329 = vdwg.mxu0
        %v1330 = vld [vmem:[%s995] sm:$0xf]
        %v1331 = vld [vmem:[%s995 + $0x4] sm:$0xf]
        %v1332 = vld [vmem:[%s995 + $0x8] sm:$0xf]
        %v1333 = vld [vmem:[%s995 + $0xc] sm:$0xf]
        %v1334 = vld [vmem:[%s995 + $0x10] sm:$0xf]
        %v1335 = vld [vmem:[%s995 + $0x14] sm:$0xf]
        %v1336 = vld [vmem:[%s995 + $0x18] sm:$0xf]
        %v1337 = vld [vmem:[%s995 + $0x1c] sm:$0xf]
        %v1338 = vlaneseq
        %v1339 = vshrl.u32 %v1338, 7
        %v1340 = vsub.s32 0, %v1339
        %v1341 = vrot.slane %v1238, %v1340
        %v1350 = vunpack.c.l.b16 %v1330
        %v1351 = vunpack.c.l.b16 %v1331
        %v1352 = vunpack.c.l.b16 %v1332
        %v1353 = vunpack.c.l.b16 %v1333
        %v1354 = vunpack.c.l.b16 %v1334
        %v1355 = vunpack.c.l.b16 %v1335
        %v1356 = vunpack.c.l.b16 %v1336
        %v1357 = vunpack.c.l.b16 %v1337
        %v1358 = vpack.c.b16 %v1351, %v1350
        %v1359 = vpack.c.b16 %v1353, %v1352
        %v1360 = vpack.c.b16 %v1355, %v1354
        %v1361 = vpack.c.b16 %v1357, %v1356
        %1366 = vmatprep.subr.bf16.mxu0 0
        %1367 = vmatpush1.bf16.msra.mxu0 %v1358
        %1368 = vmatprep.subr.bf16.mxu0 0
        %1369 = vmatpush1.bf16.msra.mxu0 %v1359
        %1370 = vmatprep.subr.bf16.mxu0 0
        %1371 = vmatpush1.bf16.msra.mxu0 %v1360
        %1372 = vmatprep.subr.bf16.mxu0 0
        %1373 = vmatpush1.bf16.msra.mxu0 %v1361
        %1374 = vmatprep.subr.bf16.mxu0 0
        %1375 = vmatpush1.bf16.msra.mxu0 0
        %1376 = vmatprep.subr.bf16.mxu0 0
        %1377 = vmatpush1.bf16.msra.mxu0 0
        %1378 = vmatprep.subr.bf16.mxu0 0
        %1379 = vmatpush1.bf16.msra.mxu0 0
        %1380 = vmatprep.subr.bf16.mxu0 0
        %1381 = vmatpush1.bf16.msra.mxu0 0
        %1382 = vmatprep.subr.bf16.mxu0 0
        %1383 = vmatpush1.bf16.msra.mxu0 0
        %1384 = vmatprep.subr.bf16.mxu0 0
        %1385 = vmatpush1.bf16.msra.mxu0 0
        %1386 = vmatprep.subr.bf16.mxu0 0
        %1387 = vmatpush1.bf16.msra.mxu0 0
        %1388 = vmatprep.subr.bf16.mxu0 0
        %1389 = vmatpush1.bf16.msra.mxu0 0
        %1390 = vmatprep.subr.bf16.mxu0 0
        %1391 = vmatpush1.bf16.msra.mxu0 0
        %1392 = vmatprep.subr.bf16.mxu0 0
        %1393 = vmatpush1.bf16.msra.mxu0 0
        %1394 = vmatprep.subr.bf16.mxu0 0
        %1395 = vmatpush1.bf16.msra.mxu0 0
        %1396 = vmatprep.subr.bf16.mxu0 0
        %1397 = vmatpush1.bf16.msra.mxu0 0
        %1398 = vmatprep.mubr.bf16.mxu0 0
        %1399 = vmatmul.mubr.bf16.gmra.mrb[0].mxu0 %v1277
        %v1400 = vpop.f32.mrb[0].mxu0
        %v1401 = vadd.f32 %v1341, %v1400
        %v1402 = vpop.f32.mrb[0].mxu0
        %v1403 = vpop.f32.mrb[0].mxu0
        %v1404 = vadd.f32 %v1341, %v1403
        %v1405 = vpop.f32.mrb[0].mxu0
        %1406 = vmatprep.mubr.bf16.mxu0 0
        %1407 = vmatmul.mubr.bf16.gmra.mrb[0].mxu0 %v1280
        %v1408 = vpop.f32.mrb[0].mxu0
        %v1409 = vadd.f32 %v1341, %v1408
        %v1410 = vpop.f32.mrb[0].mxu0
        %v1411 = vpop.f32.mrb[0].mxu0
        %v1412 = vpop.f32.mrb[0].mxu0
        %1413 = vdwg.mxu0
        %v1414 = vld [vmem:[%s1000] sm:$0xf]
        %v1415 = vld [vmem:[%s1000 + $0x4] sm:$0xf]
        %v1416 = vld [vmem:[%s1000 + $0x8] sm:$0xf]
        %v1417 = vld [vmem:[%s1000 + $0xc] sm:$0xf]
        %v1418 = vld [vmem:[%s1000 + $0x10] sm:$0xf]
        %v1419 = vld [vmem:[%s1000 + $0x14] sm:$0xf]
        %v1420 = vld [vmem:[%s1000 + $0x18] sm:$0xf]
        %v1421 = vld [vmem:[%s1000 + $0x1c] sm:$0xf]
        %v1422 = vlaneseq
        %v1423 = vshrl.u32 %v1422, 7
        %v1424 = vsub.s32 0, %v1423
        %v1425 = vrot.slane %v1239, %v1424
        %v1434 = vunpack.c.l.b16 %v1414
        %v1435 = vunpack.c.l.b16 %v1415
        %v1436 = vunpack.c.l.b16 %v1416
        %v1437 = vunpack.c.l.b16 %v1417
        %v1438 = vunpack.c.l.b16 %v1418
        %v1439 = vunpack.c.l.b16 %v1419
        %v1440 = vunpack.c.l.b16 %v1420
        %v1441 = vunpack.c.l.b16 %v1421
        %v1442 = vpack.c.b16 %v1435, %v1434
        %v1443 = vpack.c.b16 %v1437, %v1436
        %v1444 = vpack.c.b16 %v1439, %v1438
        %v1445 = vpack.c.b16 %v1441, %v1440
        %1450 = vmatprep.subr.bf16.mxu0 0
        %1451 = vmatpush1.bf16.msra.mxu0 %v1442
        %1452 = vmatprep.subr.bf16.mxu0 0
        %1453 = vmatpush1.bf16.msra.mxu0 %v1443
        %1454 = vmatprep.subr.bf16.mxu0 0
        %1455 = vmatpush1.bf16.msra.mxu0 %v1444
        %1456 = vmatprep.subr.bf16.mxu0 0
        %1457 = vmatpush1.bf16.msra.mxu0 %v1445
        %1458 = vmatprep.subr.bf16.mxu0 0
        %1459 = vmatpush1.bf16.msra.mxu0 0
        %1460 = vmatprep.subr.bf16.mxu0 0
        %1461 = vmatpush1.bf16.msra.mxu0 0
        %1462 = vmatprep.subr.bf16.mxu0 0
        %1463 = vmatpush1.bf16.msra.mxu0 0
        %1464 = vmatprep.subr.bf16.mxu0 0
        %1465 = vmatpush1.bf16.msra.mxu0 0
        %1466 = vmatprep.subr.bf16.mxu0 0
        %1467 = vmatpush1.bf16.msra.mxu0 0
        %1468 = vmatprep.subr.bf16.mxu0 0
        %1469 = vmatpush1.bf16.msra.mxu0 0
        %1470 = vmatprep.subr.bf16.mxu0 0
        %1471 = vmatpush1.bf16.msra.mxu0 0
        %1472 = vmatprep.subr.bf16.mxu0 0
        %1473 = vmatpush1.bf16.msra.mxu0 0
        %1474 = vmatprep.subr.bf16.mxu0 0
        %1475 = vmatpush1.bf16.msra.mxu0 0
        %1476 = vmatprep.subr.bf16.mxu0 0
        %1477 = vmatpush1.bf16.msra.mxu0 0
        %1478 = vmatprep.subr.bf16.mxu0 0
        %1479 = vmatpush1.bf16.msra.mxu0 0
        %1480 = vmatprep.subr.bf16.mxu0 0
        %1481 = vmatpush1.bf16.msra.mxu0 0
        %1482 = vmatprep.mubr.bf16.mxu0 0
        %1483 = vmatmul.mubr.bf16.gmra.mrb[0].mxu0 %v1277
        %v1484 = vpop.f32.mrb[0].mxu0
        %v1485 = vadd.f32 %v1425, %v1484
        %v1486 = vpop.f32.mrb[0].mxu0
        %v1487 = vpop.f32.mrb[0].mxu0
        %v1488 = vadd.f32 %v1425, %v1487
        %v1489 = vpop.f32.mrb[0].mxu0
        %1490 = vmatprep.mubr.bf16.mxu0 0
        %1491 = vmatmul.mubr.bf16.gmra.mrb[0].mxu0 %v1280
        %v1492 = vpop.f32.mrb[0].mxu0
        %v1493 = vadd.f32 %v1425, %v1492
        %v1494 = vpop.f32.mrb[0].mxu0
        %v1495 = vpop.f32.mrb[0].mxu0
        %v1496 = vpop.f32.mrb[0].mxu0
        %1497 = vdwg.mxu0
        %vm1498 = vcmask 130048
        %v1500 = vsel %vm1498, %v1317, 0
        %v1503 = vsel %vm1498, %v1320, 0
        %v1506 = vsel %vm1498, %v1325, 0
        %v1509 = vsel %vm1498, %v1401, 0
        %v1512 = vsel %vm1498, %v1404, 0
        %v1515 = vsel %vm1498, %v1409, 0
        %1517 = vmatprep.subr.mxu0 0.0
        %1518 = vmatpush1.xpose.msra.mxu0 %v1509
        %1519 = vmatprep.subr.mxu0 0.0
        %1520 = vmatpush1.xpose.msra.mxu0 %v1512
        %1521 = vmatprep.subr.mxu0 0.0
        %1522 = vmatpush1.xpose.msra.mxu0 %v1515
        %1523 = vmatprep.subr.mxu0 0.0
        %1524 = vmatpush1.xpose.msra.mxu0 0.0
        %1525 = vmatprep.subr.mxu0 0.0
        %1526 = vmatpush1.xpose.msra.mxu0 0.0
        %1527 = vmatprep.subr.mxu0 0.0
        %1528 = vmatpush1.xpose.msra.mxu0 0.0
        %1529 = vmatprep.subr.mxu0 0.0
        %1530 = vmatpush1.xpose.msra.mxu0 0.0
        %1531 = vmatprep.subr.mxu0 0.0
        %1532 = vmatpush1.xpose.msra.mxu0 0.0
        %1533 = vmatprep.subr.mxu0 0.0
        %1534 = vmatpush1.xpose.msra.mxu0 0.0
        %1535 = vmatprep.subr.mxu0 0.0
        %1536 = vmatpush1.xpose.msra.mxu0 0.0
        %1537 = vmatprep.subr.mxu0 0.0
        %1538 = vmatpush1.xpose.msra.mxu0 0.0
        %1539 = vmatprep.subr.mxu0 0.0
        %1540 = vmatpush1.xpose.msra.mxu0 0.0
        %1541 = vmatprep.subr.mxu0 0.0
        %1542 = vmatpush1.xpose.msra.mxu0 0.0
        %1543 = vmatprep.subr.mxu0 0.0
        %1544 = vmatpush1.xpose.msra.mxu0 0.0
        %1545 = vmatprep.subr.mxu0 0.0
        %1546 = vmatpush1.xpose.msra.mxu0 0.0
        %1547 = vmatprep.subr.mxu0 0.0
        %1548 = vmatpush1.xpose.msra.mxu0 0.0
        %1549 = vmatprep.subr.mxu0 0.0
        %1550 = vmatpush1.xpose.msra.mxu0 0.0
        %1551 = vmatprep.subr.mxu0 0.0
        %1552 = vmatpush1.xpose.msra.mxu0 0.0
        %1553 = vmatprep.subr.mxu0 0.0
        %1554 = vmatpush1.xpose.msra.mxu0 0.0
        %1555 = vmatprep.subr.mxu0 0.0
        %1556 = vmatpush1.xpose.msra.mxu0 0.0
        %1557 = vmatprep.subr.mxu0 0.0
        %1558 = vmatpush1.xpose.msra.mxu0 0.0
        %1559 = vmatprep.subr.mxu0 0.0
        %1560 = vmatpush1.xpose.msra.mxu0 0.0
        %1561 = vmatprep.subr.mxu0 0.0
        %1562 = vmatpush1.xpose.msra.mxu0 0.0
        %1563 = vmatprep.subr.mxu0 0.0
        %1564 = vmatpush1.xpose.msra.mxu0 0.0
        %1565 = vmatprep.subr.mxu0 0.0
        %1566 = vmatpush1.xpose.msra.mxu0 0.0
        %1567 = vmatprep.subr.mxu0 0.0
        %1568 = vmatpush1.xpose.msra.mxu0 0.0
        %1569 = vmatprep.subr.mxu0 0.0
        %1570 = vmatpush1.xpose.msra.mxu0 0.0
        %1571 = vmatprep.subr.mxu0 0.0
        %1572 = vmatpush1.xpose.msra.mxu0 0.0
        %1573 = vmatprep.subr.mxu0 0.0
        %1574 = vmatpush1.xpose.msra.mxu0 0.0
        %1575 = vmatprep.subr.mxu0 0.0
        %1576 = vmatpush1.xpose.msra.mxu0 0.0
        %1577 = vmatprep.subr.mxu0 0.0
        %1578 = vmatpush1.xpose.msra.mxu0 0.0
        %1579 = vmatprep.subr.mxu0 0.0
        %1580 = vmatpush1.xpose.msra.mxu0 0.0
        %1581 = vmatprep.mubr.f32.mxu0 0.0
        %1582 = vmatmul.mubr.f32.gmra.mrb[0].mxu0 %v1500
        %v1583 = vpop.f32.mrb[0].mxu0
        %v1584 = vadd.f32 %v1236, %v1583
        %v1585 = vpop.f32.mrb[0].mxu0
        %1586 = vmatprep.mubr.f32.mxu0 0.0
        %1587 = vmatmul.mubr.f32.gmra.mrb[0].mxu0 %v1503
        %v1588 = vpop.f32.mrb[0].mxu0
        %v1589 = vadd.f32 %v1236, %v1588
        %v1590 = vpop.f32.mrb[0].mxu0
        %1591 = vmatprep.mubr.f32.mxu0 0.0
        %1592 = vmatmul.mubr.f32.gmra.mrb[0].mxu0 %v1506
        %v1593 = vpop.f32.mrb[0].mxu0
        %v1594 = vadd.f32 %v1236, %v1593
        %v1595 = vpop.f32.mrb[0].mxu0
        %1596 = vdwg.mxu0
        %vm1597 = vcmask 195584
        %v1598 = vsel %vm1597, %v1584, -inf
        %1599 = vmax.xlane.f32.xlu0 %v1598
        %v1600 = vpop.xlane.xlu0 %1599
        %v1601 = vsel %vm1597, %v1589, -inf
        %1602 = vmax.xlane.f32.xlu0 %v1601
        %v1603 = vpop.xlane.xlu0 %1602
        %v1604 = vsel %vm1597, %v1594, -inf
        %1605 = vmax.xlane.f32.xlu0 %v1604
        %v1606 = vpop.xlane.xlu0 %1605
        %v1607 = vsub.f32 %v1584, %v1600
        %v1608 = vsub.f32 %v1589, %v1603
        %v1609 = vsub.f32 %v1594, %v1606
        %v1610 = vmul.f32 %v1607, 1.442695
        %v1611 = vpow.pop %v1610
        %v1612 = vmul.f32 %v1608, 1.442695
        %v1613 = vpow.pop %v1612
        %v1614 = vmul.f32 %v1609, 1.442695
        %v1615 = vpow.pop %v1614
        %v1616 = vsel %vm1597, %v1611, 0.0
        %1617 = vadd.xlane.f32.xlu0 %v1616
        %v1618 = vpop.xlane.xlu0 %1617
        %v1619 = vsel %vm1597, %v1613, 0.0
        %1620 = vadd.xlane.f32.xlu0 %v1619
        %v1621 = vpop.xlane.xlu0 %1620
        %v1622 = vsel %vm1597, %v1615, 0.0
        %1623 = vadd.xlane.f32.xlu0 %v1622
        %v1624 = vpop.xlane.xlu0 %1623
        %v1625 = vrcp.pop %v1618
        %v1626 = vrcp.pop %v1621
        %v1627 = vrcp.pop %v1624
        %v1628 = vmul.f32 %v1611, %v1625
        %v1629 = vmul.f32 %v1613, %v1626
        %v1630 = vmul.f32 %v1615, %v1627
        %v1632 = vsel %vm1597, %v1628, 0
        %v1635 = vsel %vm1597, %v1629, 0
        %v1638 = vsel %vm1597, %v1630, 0
        %1640 = vmatprep.subr.mxu0 0.0
        %1641 = vmatpush1.msra.mxu0 %v1485
        %1642 = vmatprep.subr.mxu0 0.0
        %1643 = vmatpush1.msra.mxu0 %v1488
        %1644 = vmatprep.subr.mxu0 0.0
        %1645 = vmatpush1.msra.mxu0 %v1493
        %1646 = vmatprep.subr.mxu0 0.0
        %1647 = vmatpush1.msra.mxu0 0.0
        %1648 = vmatprep.subr.mxu0 0.0
        %1649 = vmatpush1.msra.mxu0 0.0
        %1650 = vmatprep.subr.mxu0 0.0
        %1651 = vmatpush1.msra.mxu0 0.0
        %1652 = vmatprep.subr.mxu0 0.0
        %1653 = vmatpush1.msra.mxu0 0.0
        %1654 = vmatprep.subr.mxu0 0.0
        %1655 = vmatpush1.msra.mxu0 0.0
        %1656 = vmatprep.subr.mxu0 0.0
        %1657 = vmatpush1.msra.mxu0 0.0
        %1658 = vmatprep.subr.mxu0 0.0
        %1659 = vmatpush1.msra.mxu0 0.0
        %1660 = vmatprep.subr.mxu0 0.0
        %1661 = vmatpush1.msra.mxu0 0.0
        %1662 = vmatprep.subr.mxu0 0.0
        %1663 = vmatpush1.msra.mxu0 0.0
        %1664 = vmatprep.subr.mxu0 0.0
        %1665 = vmatpush1.msra.mxu0 0.0
        %1666 = vmatprep.subr.mxu0 0.0
        %1667 = vmatpush1.msra.mxu0 0.0
        %1668 = vmatprep.subr.mxu0 0.0
        %1669 = vmatpush1.msra.mxu0 0.0
        %1670 = vmatprep.subr.mxu0 0.0
        %1671 = vmatpush1.msra.mxu0 0.0
        %1672 = vmatprep.subr.mxu0 0.0
        %1673 = vmatpush1.msra.mxu0 0.0
        %1674 = vmatprep.subr.mxu0 0.0
        %1675 = vmatpush1.msra.mxu0 0.0
        %1676 = vmatprep.subr.mxu0 0.0
        %1677 = vmatpush1.msra.mxu0 0.0
        %1678 = vmatprep.subr.mxu0 0.0
        %1679 = vmatpush1.msra.mxu0 0.0
        %1680 = vmatprep.subr.mxu0 0.0
        %1681 = vmatpush1.msra.mxu0 0.0
        %1682 = vmatprep.subr.mxu0 0.0
        %1683 = vmatpush1.msra.mxu0 0.0
        %1684 = vmatprep.subr.mxu0 0.0
        %1685 = vmatpush1.msra.mxu0 0.0
        %1686 = vmatprep.subr.mxu0 0.0
        %1687 = vmatpush1.msra.mxu0 0.0
        %1688 = vmatprep.subr.mxu0 0.0
        %1689 = vmatpush1.msra.mxu0 0.0
        %1690 = vmatprep.subr.mxu0 0.0
        %1691 = vmatpush1.msra.mxu0 0.0
        %1692 = vmatprep.subr.mxu0 0.0
        %1693 = vmatpush1.msra.mxu0 0.0
        %1694 = vmatprep.subr.mxu0 0.0
        %1695 = vmatpush1.msra.mxu0 0.0
        %1696 = vmatprep.subr.mxu0 0.0
        %1697 = vmatpush1.msra.mxu0 0.0
        %1698 = vmatprep.subr.mxu0 0.0
        %1699 = vmatpush1.msra.mxu0 0.0
        %1700 = vmatprep.subr.mxu0 0.0
        %1701 = vmatpush1.msra.mxu0 0.0
        %1702 = vmatprep.subr.mxu0 0.0
        %1703 = vmatpush1.msra.mxu0 0.0
        %1704 = vmatprep.mubr.f32.mxu0 0.0
        %1705 = vmatmul.mubr.f32.gmra.mrb[0].mxu0 %v1632
        %v1706 = vpop.f32.mrb[0].mxu0
        %v1707 = vadd.f32 0.0, %v1706
        %v1708 = vpop.f32.mrb[0].mxu0
        %1709 = vmatprep.mubr.f32.mxu0 0.0
        %1710 = vmatmul.mubr.f32.gmra.mrb[0].mxu0 %v1635
        %v1711 = vpop.f32.mrb[0].mxu0
        %v1712 = vadd.f32 0.0, %v1711
        %v1713 = vpop.f32.mrb[0].mxu0
        %1714 = vmatprep.mubr.f32.mxu0 0.0
        %1715 = vmatmul.mubr.f32.gmra.mrb[0].mxu0 %v1638
        %v1716 = vpop.f32.mrb[0].mxu0
        %v1717 = vadd.f32 0.0, %v1716
        %v1718 = vpop.f32.mrb[0].mxu0
        %1719 = vdwg.mxu0
        %s1720 = scalar_lea.vmem %s990, 32
        %v1721 = vld [vmem:[%s1720] sm:$0xf]
        %v1722 = vld [vmem:[%s1720 + $0x4] sm:$0xf]
        %v1723 = vld [vmem:[%s1720 + $0x8] sm:$0xf]
        %v1724 = vld [vmem:[%s1720 + $0xc] sm:$0xf]
        %v1725 = vld [vmem:[%s1720 + $0x10] sm:$0xf]
        %v1726 = vld [vmem:[%s1720 + $0x14] sm:$0xf]
        %v1727 = vld [vmem:[%s1720 + $0x18] sm:$0xf]
        %v1728 = vld [vmem:[%s1720 + $0x1c] sm:$0xf]
        %v1729 = vlaneseq
        %v1730 = vshrl.u32 %v1729, 7
        %v1731 = vsub.s32 1, %v1730
        %v1732 = vrot.slane %v1237, %v1731
        %v1741 = vunpack.c.l.b16 %v1721
        %v1742 = vunpack.c.l.b16 %v1722
        %v1743 = vunpack.c.l.b16 %v1723
        %v1744 = vunpack.c.l.b16 %v1724
        %v1745 = vunpack.c.l.b16 %v1725
        %v1746 = vunpack.c.l.b16 %v1726
        %v1747 = vunpack.c.l.b16 %v1727
        %v1748 = vunpack.c.l.b16 %v1728
        %v1749 = vpack.c.b16 %v1742, %v1741
        %v1750 = vpack.c.b16 %v1744, %v1743
        %v1751 = vpack.c.b16 %v1746, %v1745
        %v1752 = vpack.c.b16 %v1748, %v1747
        %1757 = vmatprep.subr.bf16.mxu0 0
        %1758 = vmatpush1.bf16.msra.mxu0 %v1749
        %1759 = vmatprep.subr.bf16.mxu0 0
        %1760 = vmatpush1.bf16.msra.mxu0 %v1750
        %1761 = vmatprep.subr.bf16.mxu0 0
        %1762 = vmatpush1.bf16.msra.mxu0 %v1751
        %1763 = vmatprep.subr.bf16.mxu0 0
        %1764 = vmatpush1.bf16.msra.mxu0 %v1752
        %1765 = vmatprep.subr.bf16.mxu0 0
        %1766 = vmatpush1.bf16.msra.mxu0 0
        %1767 = vmatprep.subr.bf16.mxu0 0
        %1768 = vmatpush1.bf16.msra.mxu0 0
        %1769 = vmatprep.subr.bf16.mxu0 0
        %1770 = vmatpush1.bf16.msra.mxu0 0
        %1771 = vmatprep.subr.bf16.mxu0 0
        %1772 = vmatpush1.bf16.msra.mxu0 0
        %1773 = vmatprep.subr.bf16.mxu0 0
        %1774 = vmatpush1.bf16.msra.mxu0 0
        %1775 = vmatprep.subr.bf16.mxu0 0
        %1776 = vmatpush1.bf16.msra.mxu0 0
        %1777 = vmatprep.subr.bf16.mxu0 0
        %1778 = vmatpush1.bf16.msra.mxu0 0
        %1779 = vmatprep.subr.bf16.mxu0 0
        %1780 = vmatpush1.bf16.msra.mxu0 0
        %1781 = vmatprep.subr.bf16.mxu0 0
        %1782 = vmatpush1.bf16.msra.mxu0 0
        %1783 = vmatprep.subr.bf16.mxu0 0
        %1784 = vmatpush1.bf16.msra.mxu0 0
        %1785 = vmatprep.subr.bf16.mxu0 0
        %1786 = vmatpush1.bf16.msra.mxu0 0
        %1787 = vmatprep.subr.bf16.mxu0 0
        %1788 = vmatpush1.bf16.msra.mxu0 0
        %1789 = vmatprep.mubr.bf16.mxu0 0
        %1790 = vmatmul.mubr.bf16.gmra.mrb[0].mxu0 %v1277
        %v1791 = vpop.f32.mrb[0].mxu0
        %v1792 = vadd.f32 %v1732, %v1791
        %v1793 = vpop.f32.mrb[0].mxu0
        %v1794 = vpop.f32.mrb[0].mxu0
        %v1795 = vadd.f32 %v1732, %v1794
        %v1796 = vpop.f32.mrb[0].mxu0
        %1797 = vmatprep.mubr.bf16.mxu0 0
        %1798 = vmatmul.mubr.bf16.gmra.mrb[0].mxu0 %v1280
        %v1799 = vpop.f32.mrb[0].mxu0
        %v1800 = vadd.f32 %v1732, %v1799
        %v1801 = vpop.f32.mrb[0].mxu0
        %v1802 = vpop.f32.mrb[0].mxu0
        %v1803 = vpop.f32.mrb[0].mxu0
        %1804 = vdwg.mxu0
        %s1805 = scalar_lea.vmem %s995, 32
        %v1806 = vld [vmem:[%s1805] sm:$0xf]
        %v1807 = vld [vmem:[%s1805 + $0x4] sm:$0xf]
        %v1808 = vld [vmem:[%s1805 + $0x8] sm:$0xf]
        %v1809 = vld [vmem:[%s1805 + $0xc] sm:$0xf]
        %v1810 = vld [vmem:[%s1805 + $0x10] sm:$0xf]
        %v1811 = vld [vmem:[%s1805 + $0x14] sm:$0xf]
        %v1812 = vld [vmem:[%s1805 + $0x18] sm:$0xf]
        %v1813 = vld [vmem:[%s1805 + $0x1c] sm:$0xf]
        %v1814 = vlaneseq
        %v1815 = vshrl.u32 %v1814, 7
        %v1816 = vsub.s32 1, %v1815
        %v1817 = vrot.slane %v1238, %v1816
        %v1826 = vunpack.c.l.b16 %v1806
        %v1827 = vunpack.c.l.b16 %v1807
        %v1828 = vunpack.c.l.b16 %v1808
        %v1829 = vunpack.c.l.b16 %v1809
        %v1830 = vunpack.c.l.b16 %v1810
        %v1831 = vunpack.c.l.b16 %v1811
        %v1832 = vunpack.c.l.b16 %v1812
        %v1833 = vunpack.c.l.b16 %v1813
        %v1834 = vpack.c.b16 %v1827, %v1826
        %v1835 = vpack.c.b16 %v1829, %v1828
        %v1836 = vpack.c.b16 %v1831, %v1830
        %v1837 = vpack.c.b16 %v1833, %v1832
        %1842 = vmatprep.subr.bf16.mxu0 0
        %1843 = vmatpush1.bf16.msra.mxu0 %v1834
        %1844 = vmatprep.subr.bf16.mxu0 0
        %1845 = vmatpush1.bf16.msra.mxu0 %v1835
        %1846 = vmatprep.subr.bf16.mxu0 0
        %1847 = vmatpush1.bf16.msra.mxu0 %v1836
        %1848 = vmatprep.subr.bf16.mxu0 0
        %1849 = vmatpush1.bf16.msra.mxu0 %v1837
        %1850 = vmatprep.subr.bf16.mxu0 0
        %1851 = vmatpush1.bf16.msra.mxu0 0
        %1852 = vmatprep.subr.bf16.mxu0 0
        %1853 = vmatpush1.bf16.msra.mxu0 0
        %1854 = vmatprep.subr.bf16.mxu0 0
        %1855 = vmatpush1.bf16.msra.mxu0 0
        %1856 = vmatprep.subr.bf16.mxu0 0
        %1857 = vmatpush1.bf16.msra.mxu0 0
        %1858 = vmatprep.subr.bf16.mxu0 0
        %1859 = vmatpush1.bf16.msra.mxu0 0
        %1860 = vmatprep.subr.bf16.mxu0 0
        %1861 = vmatpush1.bf16.msra.mxu0 0
        %1862 = vmatprep.subr.bf16.mxu0 0
        %1863 = vmatpush1.bf16.msra.mxu0 0
        %1864 = vmatprep.subr.bf16.mxu0 0
        %1865 = vmatpush1.bf16.msra.mxu0 0
        %1866 = vmatprep.subr.bf16.mxu0 0
        %1867 = vmatpush1.bf16.msra.mxu0 0
        %1868 = vmatprep.subr.bf16.mxu0 0
        %1869 = vmatpush1.bf16.msra.mxu0 0
        %1870 = vmatprep.subr.bf16.mxu0 0
        %1871 = vmatpush1.bf16.msra.mxu0 0
        %1872 = vmatprep.subr.bf16.mxu0 0
        %1873 = vmatpush1.bf16.msra.mxu0 0
        %1874 = vmatprep.mubr.bf16.mxu0 0
        %1875 = vmatmul.mubr.bf16.gmra.mrb[0].mxu0 %v1277
        %v1876 = vpop.f32.mrb[0].mxu0
        %v1877 = vadd.f32 %v1817, %v1876
        %v1878 = vpop.f32.mrb[0].mxu0
        %v1879 = vpop.f32.mrb[0].mxu0
        %v1880 = vadd.f32 %v1817, %v1879
        %v1881 = vpop.f32.mrb[0].mxu0
        %1882 = vmatprep.mubr.bf16.mxu0 0
        %1883 = vmatmul.mubr.bf16.gmra.mrb[0].mxu0 %v1280
        %v1884 = vpop.f32.mrb[0].mxu0
        %v1885 = vadd.f32 %v1817, %v1884
        %v1886 = vpop.f32.mrb[0].mxu0
        %v1887 = vpop.f32.mrb[0].mxu0
        %v1888 = vpop.f32.mrb[0].mxu0
        %1889 = vdwg.mxu0
        %s1890 = scalar_lea.vmem %s1000, 32
        %v1891 = vld [vmem:[%s1890] sm:$0xf]
        %v1892 = vld [vmem:[%s1890 + $0x4] sm:$0xf]
        %v1893 = vld [vmem:[%s1890 + $0x8] sm:$0xf]
        %v1894 = vld [vmem:[%s1890 + $0xc] sm:$0xf]
        %v1895 = vld [vmem:[%s1890 + $0x10] sm:$0xf]
        %v1896 = vld [vmem:[%s1890 + $0x14] sm:$0xf]
        %v1897 = vld [vmem:[%s1890 + $0x18] sm:$0xf]
        %v1898 = vld [vmem:[%s1890 + $0x1c] sm:$0xf]
        %v1899 = vlaneseq
        %v1900 = vshrl.u32 %v1899, 7
        %v1901 = vsub.s32 1, %v1900
        %v1902 = vrot.slane %v1239, %v1901
        %v1911 = vunpack.c.l.b16 %v1891
        %v1912 = vunpack.c.l.b16 %v1892
        %v1913 = vunpack.c.l.b16 %v1893
        %v1914 = vunpack.c.l.b16 %v1894
        %v1915 = vunpack.c.l.b16 %v1895
        %v1916 = vunpack.c.l.b16 %v1896
        %v1917 = vunpack.c.l.b16 %v1897
        %v1918 = vunpack.c.l.b16 %v1898
        %v1919 = vpack.c.b16 %v1912, %v1911
        %v1920 = vpack.c.b16 %v1914, %v1913
        %v1921 = vpack.c.b16 %v1916, %v1915
        %v1922 = vpack.c.b16 %v1918, %v1917
        %1927 = vmatprep.subr.bf16.mxu0 0
        %1928 = vmatpush1.bf16.msra.mxu0 %v1919
        %1929 = vmatprep.subr.bf16.mxu0 0
        %1930 = vmatpush1.bf16.msra.mxu0 %v1920
        %1931 = vmatprep.subr.bf16.mxu0 0
        %1932 = vmatpush1.bf16.msra.mxu0 %v1921
        %1933 = vmatprep.subr.bf16.mxu0 0
        %1934 = vmatpush1.bf16.msra.mxu0 %v1922
        %1935 = vmatprep.subr.bf16.mxu0 0
        %1936 = vmatpush1.bf16.msra.mxu0 0
        %1937 = vmatprep.subr.bf16.mxu0 0
        %1938 = vmatpush1.bf16.msra.mxu0 0
        %1939 = vmatprep.subr.bf16.mxu0 0
        %1940 = vmatpush1.bf16.msra.mxu0 0
        %1941 = vmatprep.subr.bf16.mxu0 0
        %1942 = vmatpush1.bf16.msra.mxu0 0
        %1943 = vmatprep.subr.bf16.mxu0 0
        %1944 = vmatpush1.bf16.msra.mxu0 0
        %1945 = vmatprep.subr.bf16.mxu0 0
        %1946 = vmatpush1.bf16.msra.mxu0 0
        %1947 = vmatprep.subr.bf16.mxu0 0
        %1948 = vmatpush1.bf16.msra.mxu0 0
        %1949 = vmatprep.subr.bf16.mxu0 0
        %1950 = vmatpush1.bf16.msra.mxu0 0
        %1951 = vmatprep.subr.bf16.mxu0 0
        %1952 = vmatpush1.bf16.msra.mxu0 0
        %1953 = vmatprep.subr.bf16.mxu0 0
        %1954 = vmatpush1.bf16.msra.mxu0 0
        %1955 = vmatprep.subr.bf16.mxu0 0
        %1956 = vmatpush1.bf16.msra.mxu0 0
        %1957 = vmatprep.subr.bf16.mxu0 0
        %1958 = vmatpush1.bf16.msra.mxu0 0
        %1959 = vmatprep.mubr.bf16.mxu0 0
        %1960 = vmatmul.mubr.bf16.gmra.mrb[0].mxu0 %v1277
        %v1961 = vpop.f32.mrb[0].mxu0
        %v1962 = vadd.f32 %v1902, %v1961
        %v1963 = vpop.f32.mrb[0].mxu0
        %v1964 = vpop.f32.mrb[0].mxu0
        %v1965 = vadd.f32 %v1902, %v1964
        %v1966 = vpop.f32.mrb[0].mxu0
        %1967 = vmatprep.mubr.bf16.mxu0 0
        %1968 = vmatmul.mubr.bf16.gmra.mrb[0].mxu0 %v1280
        %v1969 = vpop.f32.mrb[0].mxu0
        %v1970 = vadd.f32 %v1902, %v1969
        %v1971 = vpop.f32.mrb[0].mxu0
        %v1972 = vpop.f32.mrb[0].mxu0
        %v1973 = vpop.f32.mrb[0].mxu0
        %1974 = vdwg.mxu0
        %v1976 = vsel %vm1498, %v1792, 0
        %v1979 = vsel %vm1498, %v1795, 0
        %v1982 = vsel %vm1498, %v1800, 0
        %v1985 = vsel %vm1498, %v1877, 0
        %v1988 = vsel %vm1498, %v1880, 0
        %v1991 = vsel %vm1498, %v1885, 0
        %1993 = vmatprep.subr.mxu0 0.0
        %1994 = vmatpush1.xpose.msra.mxu0 %v1985
        %1995 = vmatprep.subr.mxu0 0.0
        %1996 = vmatpush1.xpose.msra.mxu0 %v1988
        %1997 = vmatprep.subr.mxu0 0.0
        %1998 = vmatpush1.xpose.msra.mxu0 %v1991
        %1999 = vmatprep.subr.mxu0 0.0
        %2000 = vmatpush1.xpose.msra.mxu0 0.0
        %2001 = vmatprep.subr.mxu0 0.0
        %2002 = vmatpush1.xpose.msra.mxu0 0.0
        %2003 = vmatprep.subr.mxu0 0.0
        %2004 = vmatpush1.xpose.msra.mxu0 0.0
        %2005 = vmatprep.subr.mxu0 0.0
        %2006 = vmatpush1.xpose.msra.mxu0 0.0
        %2007 = vmatprep.subr.mxu0 0.0
        %2008 = vmatpush1.xpose.msra.mxu0 0.0
        %2009 = vmatprep.subr.mxu0 0.0
        %2010 = vmatpush1.xpose.msra.mxu0 0.0
        %2011 = vmatprep.subr.mxu0 0.0
        %2012 = vmatpush1.xpose.msra.mxu0 0.0
        %2013 = vmatprep.subr.mxu0 0.0
        %2014 = vmatpush1.xpose.msra.mxu0 0.0
        %2015 = vmatprep.subr.mxu0 0.0
        %2016 = vmatpush1.xpose.msra.mxu0 0.0
        %2017 = vmatprep.subr.mxu0 0.0
        %2018 = vmatpush1.xpose.msra.mxu0 0.0
        %2019 = vmatprep.subr.mxu0 0.0
        %2020 = vmatpush1.xpose.msra.mxu0 0.0
        %2021 = vmatprep.subr.mxu0 0.0
        %2022 = vmatpush1.xpose.msra.mxu0 0.0
        %2023 = vmatprep.subr.mxu0 0.0
        %2024 = vmatpush1.xpose.msra.mxu0 0.0
        %2025 = vmatprep.subr.mxu0 0.0
        %2026 = vmatpush1.xpose.msra.mxu0 0.0
        %2027 = vmatprep.subr.mxu0 0.0
        %2028 = vmatpush1.xpose.msra.mxu0 0.0
        %2029 = vmatprep.subr.mxu0 0.0
        %2030 = vmatpush1.xpose.msra.mxu0 0.0
        %2031 = vmatprep.subr.mxu0 0.0
        %2032 = vmatpush1.xpose.msra.mxu0 0.0
        %2033 = vmatprep.subr.mxu0 0.0
        %2034 = vmatpush1.xpose.msra.mxu0 0.0
        %2035 = vmatprep.subr.mxu0 0.0
        %2036 = vmatpush1.xpose.msra.mxu0 0.0
        %2037 = vmatprep.subr.mxu0 0.0
        %2038 = vmatpush1.xpose.msra.mxu0 0.0
        %2039 = vmatprep.subr.mxu0 0.0
        %2040 = vmatpush1.xpose.msra.mxu0 0.0
        %2041 = vmatprep.subr.mxu0 0.0
        %2042 = vmatpush1.xpose.msra.mxu0 0.0
        %2043 = vmatprep.subr.mxu0 0.0
        %2044 = vmatpush1.xpose.msra.mxu0 0.0
        %2045 = vmatprep.subr.mxu0 0.0
        %2046 = vmatpush1.xpose.msra.mxu0 0.0
        %2047 = vmatprep.subr.mxu0 0.0
        %2048 = vmatpush1.xpose.msra.mxu0 0.0
        %2049 = vmatprep.subr.mxu0 0.0
        %2050 = vmatpush1.xpose.msra.mxu0 0.0
        %2051 = vmatprep.subr.mxu0 0.0
        %2052 = vmatpush1.xpose.msra.mxu0 0.0
        %2053 = vmatprep.subr.mxu0 0.0
        %2054 = vmatpush1.xpose.msra.mxu0 0.0
        %2055 = vmatprep.subr.mxu0 0.0
        %2056 = vmatpush1.xpose.msra.mxu0 0.0
        %2057 = vmatprep.mubr.f32.mxu0 0.0
        %2058 = vmatmul.mubr.f32.gmra.mrb[0].mxu0 %v1976
        %v2059 = vpop.f32.mrb[0].mxu0
        %v2060 = vadd.f32 %v1236, %v2059
        %v2061 = vpop.f32.mrb[0].mxu0
        %2062 = vmatprep.mubr.f32.mxu0 0.0
        %2063 = vmatmul.mubr.f32.gmra.mrb[0].mxu0 %v1979
        %v2064 = vpop.f32.mrb[0].mxu0
        %v2065 = vadd.f32 %v1236, %v2064
        %v2066 = vpop.f32.mrb[0].mxu0
        %2067 = vmatprep.mubr.f32.mxu0 0.0
        %2068 = vmatmul.mubr.f32.gmra.mrb[0].mxu0 %v1982
        %v2069 = vpop.f32.mrb[0].mxu0
        %v2070 = vadd.f32 %v1236, %v2069
        %v2071 = vpop.f32.mrb[0].mxu0
        %2072 = vdwg.mxu0
        %v2073 = vsel %vm1597, %v2060, -inf
        %2074 = vmax.xlane.f32.xlu0 %v2073
        %v2075 = vpop.xlane.xlu0 %2074
        %v2076 = vsel %vm1597, %v2065, -inf
        %2077 = vmax.xlane.f32.xlu0 %v2076
        %v2078 = vpop.xlane.xlu0 %2077
        %v2079 = vsel %vm1597, %v2070, -inf
        %2080 = vmax.xlane.f32.xlu0 %v2079
        %v2081 = vpop.xlane.xlu0 %2080
        %v2082 = vsub.f32 %v2060, %v2075
        %v2083 = vsub.f32 %v2065, %v2078
        %v2084 = vsub.f32 %v2070, %v2081
        %v2085 = vmul.f32 %v2082, 1.442695
        %v2086 = vpow.pop %v2085
        %v2087 = vmul.f32 %v2083, 1.442695
        %v2088 = vpow.pop %v2087
        %v2089 = vmul.f32 %v2084, 1.442695
        %v2090 = vpow.pop %v2089
        %v2091 = vsel %vm1597, %v2086, 0.0
        %2092 = vadd.xlane.f32.xlu0 %v2091
        %v2093 = vpop.xlane.xlu0 %2092
        %v2094 = vsel %vm1597, %v2088, 0.0
        %2095 = vadd.xlane.f32.xlu0 %v2094
        %v2096 = vpop.xlane.xlu0 %2095
        %v2097 = vsel %vm1597, %v2090, 0.0
        %2098 = vadd.xlane.f32.xlu0 %v2097
        %v2099 = vpop.xlane.xlu0 %2098
        %v2100 = vrcp.pop %v2093
        %v2101 = vrcp.pop %v2096
        %v2102 = vrcp.pop %v2099
        %v2103 = vmul.f32 %v2086, %v2100
        %v2104 = vmul.f32 %v2088, %v2101
        %v2105 = vmul.f32 %v2090, %v2102
        %v2107 = vsel %vm1597, %v2103, 0
        %v2110 = vsel %vm1597, %v2104, 0
        %v2113 = vsel %vm1597, %v2105, 0
        %2115 = vmatprep.subr.mxu0 0.0
        %2116 = vmatpush1.msra.mxu0 %v1962
        %2117 = vmatprep.subr.mxu0 0.0
        %2118 = vmatpush1.msra.mxu0 %v1965
        %2119 = vmatprep.subr.mxu0 0.0
        %2120 = vmatpush1.msra.mxu0 %v1970
        %2121 = vmatprep.subr.mxu0 0.0
        %2122 = vmatpush1.msra.mxu0 0.0
        %2123 = vmatprep.subr.mxu0 0.0
        %2124 = vmatpush1.msra.mxu0 0.0
        %2125 = vmatprep.subr.mxu0 0.0
        %2126 = vmatpush1.msra.mxu0 0.0
        %2127 = vmatprep.subr.mxu0 0.0
        %2128 = vmatpush1.msra.mxu0 0.0
        %2129 = vmatprep.subr.mxu0 0.0
        %2130 = vmatpush1.msra.mxu0 0.0
        %2131 = vmatprep.subr.mxu0 0.0
        %2132 = vmatpush1.msra.mxu0 0.0
        %2133 = vmatprep.subr.mxu0 0.0
        %2134 = vmatpush1.msra.mxu0 0.0
        %2135 = vmatprep.subr.mxu0 0.0
        %2136 = vmatpush1.msra.mxu0 0.0
        %2137 = vmatprep.subr.mxu0 0.0
        %2138 = vmatpush1.msra.mxu0 0.0
        %2139 = vmatprep.subr.mxu0 0.0
        %2140 = vmatpush1.msra.mxu0 0.0
        %2141 = vmatprep.subr.mxu0 0.0
        %2142 = vmatpush1.msra.mxu0 0.0
        %2143 = vmatprep.subr.mxu0 0.0
        %2144 = vmatpush1.msra.mxu0 0.0
        %2145 = vmatprep.subr.mxu0 0.0
        %2146 = vmatpush1.msra.mxu0 0.0
        %2147 = vmatprep.subr.mxu0 0.0
        %2148 = vmatpush1.msra.mxu0 0.0
        %2149 = vmatprep.subr.mxu0 0.0
        %2150 = vmatpush1.msra.mxu0 0.0
        %2151 = vmatprep.subr.mxu0 0.0
        %2152 = vmatpush1.msra.mxu0 0.0
        %2153 = vmatprep.subr.mxu0 0.0
        %2154 = vmatpush1.msra.mxu0 0.0
        %2155 = vmatprep.subr.mxu0 0.0
        %2156 = vmatpush1.msra.mxu0 0.0
        %2157 = vmatprep.subr.mxu0 0.0
        %2158 = vmatpush1.msra.mxu0 0.0
        %2159 = vmatprep.subr.mxu0 0.0
        %2160 = vmatpush1.msra.mxu0 0.0
        %2161 = vmatprep.subr.mxu0 0.0
        %2162 = vmatpush1.msra.mxu0 0.0
        %2163 = vmatprep.subr.mxu0 0.0
        %2164 = vmatpush1.msra.mxu0 0.0
        %2165 = vmatprep.subr.mxu0 0.0
        %2166 = vmatpush1.msra.mxu0 0.0
        %2167 = vmatprep.subr.mxu0 0.0
        %2168 = vmatpush1.msra.mxu0 0.0
        %2169 = vmatprep.subr.mxu0 0.0
        %2170 = vmatpush1.msra.mxu0 0.0
        %2171 = vmatprep.subr.mxu0 0.0
        %2172 = vmatpush1.msra.mxu0 0.0
        %2173 = vmatprep.subr.mxu0 0.0
        %2174 = vmatpush1.msra.mxu0 0.0
        %2175 = vmatprep.subr.mxu0 0.0
        %2176 = vmatpush1.msra.mxu0 0.0
        %2177 = vmatprep.subr.mxu0 0.0
        %2178 = vmatpush1.msra.mxu0 0.0
        %2179 = vmatprep.mubr.f32.mxu0 0.0
        %2180 = vmatmul.mubr.f32.gmra.mrb[0].mxu0 %v2107
        %v2181 = vpop.f32.mrb[0].mxu0
        %v2182 = vadd.f32 0.0, %v2181
        %v2183 = vpop.f32.mrb[0].mxu0
        %2184 = vmatprep.mubr.f32.mxu0 0.0
        %2185 = vmatmul.mubr.f32.gmra.mrb[0].mxu0 %v2110
        %v2186 = vpop.f32.mrb[0].mxu0
        %v2187 = vadd.f32 0.0, %v2186
        %v2188 = vpop.f32.mrb[0].mxu0
        %2189 = vmatprep.mubr.f32.mxu0 0.0
        %2190 = vmatmul.mubr.f32.gmra.mrb[0].mxu0 %v2113
        %v2191 = vpop.f32.mrb[0].mxu0
        %v2192 = vadd.f32 0.0, %v2191
        %v2193 = vpop.f32.mrb[0].mxu0
        %2194 = vdwg.mxu0
        %s2195 = scalar_lea.vmem %s990, 64
        %v2196 = vld [vmem:[%s2195] sm:$0xf]
        %v2197 = vld [vmem:[%s2195 + $0x4] sm:$0xf]
        %v2198 = vld [vmem:[%s2195 + $0x8] sm:$0xf]
        %v2199 = vld [vmem:[%s2195 + $0xc] sm:$0xf]
        %v2200 = vld [vmem:[%s2195 + $0x10] sm:$0xf]
        %v2201 = vld [vmem:[%s2195 + $0x14] sm:$0xf]
        %v2202 = vld [vmem:[%s2195 + $0x18] sm:$0xf]
        %v2203 = vld [vmem:[%s2195 + $0x1c] sm:$0xf]
        %v2204 = vlaneseq
        %v2205 = vshrl.u32 %v2204, 7
        %v2206 = vsub.s32 2, %v2205
        %v2207 = vrot.slane %v1237, %v2206
        %v2216 = vunpack.c.l.b16 %v2196
        %v2217 = vunpack.c.l.b16 %v2197
        %v2218 = vunpack.c.l.b16 %v2198
        %v2219 = vunpack.c.l.b16 %v2199
        %v2220 = vunpack.c.l.b16 %v2200
        %v2221 = vunpack.c.l.b16 %v2201
        %v2222 = vunpack.c.l.b16 %v2202
        %v2223 = vunpack.c.l.b16 %v2203
        %v2224 = vpack.c.b16 %v2217, %v2216
        %v2225 = vpack.c.b16 %v2219, %v2218
        %v2226 = vpack.c.b16 %v2221, %v2220
        %v2227 = vpack.c.b16 %v2223, %v2222
        %2232 = vmatprep.subr.bf16.mxu0 0
        %2233 = vmatpush1.bf16.msra.mxu0 %v2224
        %2234 = vmatprep.subr.bf16.mxu0 0
        %2235 = vmatpush1.bf16.msra.mxu0 %v2225
        %2236 = vmatprep.subr.bf16.mxu0 0
        %2237 = vmatpush1.bf16.msra.mxu0 %v2226
        %2238 = vmatprep.subr.bf16.mxu0 0
        %2239 = vmatpush1.bf16.msra.mxu0 %v2227
        %2240 = vmatprep.subr.bf16.mxu0 0
        %2241 = vmatpush1.bf16.msra.mxu0 0
        %2242 = vmatprep.subr.bf16.mxu0 0
        %2243 = vmatpush1.bf16.msra.mxu0 0
        %2244 = vmatprep.subr.bf16.mxu0 0
        %2245 = vmatpush1.bf16.msra.mxu0 0
        %2246 = vmatprep.subr.bf16.mxu0 0
        %2247 = vmatpush1.bf16.msra.mxu0 0
        %2248 = vmatprep.subr.bf16.mxu0 0
        %2249 = vmatpush1.bf16.msra.mxu0 0
        %2250 = vmatprep.subr.bf16.mxu0 0
        %2251 = vmatpush1.bf16.msra.mxu0 0
        %2252 = vmatprep.subr.bf16.mxu0 0
        %2253 = vmatpush1.bf16.msra.mxu0 0
        %2254 = vmatprep.subr.bf16.mxu0 0
        %2255 = vmatpush1.bf16.msra.mxu0 0
        %2256 = vmatprep.subr.bf16.mxu0 0
        %2257 = vmatpush1.bf16.msra.mxu0 0
        %2258 = vmatprep.subr.bf16.mxu0 0
        %2259 = vmatpush1.bf16.msra.mxu0 0
        %2260 = vmatprep.subr.bf16.mxu0 0
        %2261 = vmatpush1.bf16.msra.mxu0 0
        %2262 = vmatprep.subr.bf16.mxu0 0
        %2263 = vmatpush1.bf16.msra.mxu0 0
        %2264 = vmatprep.mubr.bf16.mxu0 0
        %2265 = vmatmul.mubr.bf16.gmra.mrb[0].mxu0 %v1277
        %v2266 = vpop.f32.mrb[0].mxu0
        %v2267 = vadd.f32 %v2207, %v2266
        %v2268 = vpop.f32.mrb[0].mxu0
        %v2269 = vpop.f32.mrb[0].mxu0
        %v2270 = vadd.f32 %v2207, %v2269
        %v2271 = vpop.f32.mrb[0].mxu0
        %2272 = vmatprep.mubr.bf16.mxu0 0
        %2273 = vmatmul.mubr.bf16.gmra.mrb[0].mxu0 %v1280
        %v2274 = vpop.f32.mrb[0].mxu0
        %v2275 = vadd.f32 %v2207, %v2274
        %v2276 = vpop.f32.mrb[0].mxu0
        %v2277 = vpop.f32.mrb[0].mxu0
        %v2278 = vpop.f32.mrb[0].mxu0
        %2279 = vdwg.mxu0
        %s2280 = scalar_lea.vmem %s995, 64
        %v2281 = vld [vmem:[%s2280] sm:$0xf]
        %v2282 = vld [vmem:[%s2280 + $0x4] sm:$0xf]
        %v2283 = vld [vmem:[%s2280 + $0x8] sm:$0xf]
        %v2284 = vld [vmem:[%s2280 + $0xc] sm:$0xf]
        %v2285 = vld [vmem:[%s2280 + $0x10] sm:$0xf]
        %v2286 = vld [vmem:[%s2280 + $0x14] sm:$0xf]
        %v2287 = vld [vmem:[%s2280 + $0x18] sm:$0xf]
        %v2288 = vld [vmem:[%s2280 + $0x1c] sm:$0xf]
        %v2289 = vlaneseq
        %v2290 = vshrl.u32 %v2289, 7
        %v2291 = vsub.s32 2, %v2290
        %v2292 = vrot.slane %v1238, %v2291
        %v2301 = vunpack.c.l.b16 %v2281
        %v2302 = vunpack.c.l.b16 %v2282
        %v2303 = vunpack.c.l.b16 %v2283
        %v2304 = vunpack.c.l.b16 %v2284
        %v2305 = vunpack.c.l.b16 %v2285
        %v2306 = vunpack.c.l.b16 %v2286
        %v2307 = vunpack.c.l.b16 %v2287
        %v2308 = vunpack.c.l.b16 %v2288
        %v2309 = vpack.c.b16 %v2302, %v2301
        %v2310 = vpack.c.b16 %v2304, %v2303
        %v2311 = vpack.c.b16 %v2306, %v2305
        %v2312 = vpack.c.b16 %v2308, %v2307
        %2317 = vmatprep.subr.bf16.mxu0 0
        %2318 = vmatpush1.bf16.msra.mxu0 %v2309
        %2319 = vmatprep.subr.bf16.mxu0 0
        %2320 = vmatpush1.bf16.msra.mxu0 %v2310
        %2321 = vmatprep.subr.bf16.mxu0 0
        %2322 = vmatpush1.bf16.msra.mxu0 %v2311
        %2323 = vmatprep.subr.bf16.mxu0 0
        %2324 = vmatpush1.bf16.msra.mxu0 %v2312
        %2325 = vmatprep.subr.bf16.mxu0 0
        %2326 = vmatpush1.bf16.msra.mxu0 0
        %2327 = vmatprep.subr.bf16.mxu0 0
        %2328 = vmatpush1.bf16.msra.mxu0 0
        %2329 = vmatprep.subr.bf16.mxu0 0
        %2330 = vmatpush1.bf16.msra.mxu0 0
        %2331 = vmatprep.subr.bf16.mxu0 0
        %2332 = vmatpush1.bf16.msra.mxu0 0
        %2333 = vmatprep.subr.bf16.mxu0 0
        %2334 = vmatpush1.bf16.msra.mxu0 0
        %2335 = vmatprep.subr.bf16.mxu0 0
        %2336 = vmatpush1.bf16.msra.mxu0 0
        %2337 = vmatprep.subr.bf16.mxu0 0
        %2338 = vmatpush1.bf16.msra.mxu0 0
        %2339 = vmatprep.subr.bf16.mxu0 0
        %2340 = vmatpush1.bf16.msra.mxu0 0
        %2341 = vmatprep.subr.bf16.mxu0 0
        %2342 = vmatpush1.bf16.msra.mxu0 0
        %2343 = vmatprep.subr.bf16.mxu0 0
        %2344 = vmatpush1.bf16.msra.mxu0 0
        %2345 = vmatprep.subr.bf16.mxu0 0
        %2346 = vmatpush1.bf16.msra.mxu0 0
        %2347 = vmatprep.subr.bf16.mxu0 0
        %2348 = vmatpush1.bf16.msra.mxu0 0
        %2349 = vmatprep.mubr.bf16.mxu0 0
        %2350 = vmatmul.mubr.bf16.gmra.mrb[0].mxu0 %v1277
        %v2351 = vpop.f32.mrb[0].mxu0
        %v2352 = vadd.f32 %v2292, %v2351
        %v2353 = vpop.f32.mrb[0].mxu0
        %v2354 = vpop.f32.mrb[0].mxu0
        %v2355 = vadd.f32 %v2292, %v2354
        %v2356 = vpop.f32.mrb[0].mxu0
        %2357 = vmatprep.mubr.bf16.mxu0 0
        %2358 = vmatmul.mubr.bf16.gmra.mrb[0].mxu0 %v1280
        %v2359 = vpop.f32.mrb[0].mxu0
        %v2360 = vadd.f32 %v2292, %v2359
        %v2361 = vpop.f32.mrb[0].mxu0
        %v2362 = vpop.f32.mrb[0].mxu0
        %v2363 = vpop.f32.mrb[0].mxu0
        %2364 = vdwg.mxu0
        %s2365 = scalar_lea.vmem %s1000, 64
        %v2366 = vld [vmem:[%s2365] sm:$0xf]
        %v2367 = vld [vmem:[%s2365 + $0x4] sm:$0xf]
        %v2368 = vld [vmem:[%s2365 + $0x8] sm:$0xf]
        %v2369 = vld [vmem:[%s2365 + $0xc] sm:$0xf]
        %v2370 = vld [vmem:[%s2365 + $0x10] sm:$0xf]
        %v2371 = vld [vmem:[%s2365 + $0x14] sm:$0xf]
        %v2372 = vld [vmem:[%s2365 + $0x18] sm:$0xf]
        %v2373 = vld [vmem:[%s2365 + $0x1c] sm:$0xf]
        %v2374 = vlaneseq
        %v2375 = vshrl.u32 %v2374, 7
        %v2376 = vsub.s32 2, %v2375
        %v2377 = vrot.slane %v1239, %v2376
        %v2386 = vunpack.c.l.b16 %v2366
        %v2387 = vunpack.c.l.b16 %v2367
        %v2388 = vunpack.c.l.b16 %v2368
        %v2389 = vunpack.c.l.b16 %v2369
        %v2390 = vunpack.c.l.b16 %v2370
        %v2391 = vunpack.c.l.b16 %v2371
        %v2392 = vunpack.c.l.b16 %v2372
        %v2393 = vunpack.c.l.b16 %v2373
        %v2394 = vpack.c.b16 %v2387, %v2386
        %v2395 = vpack.c.b16 %v2389, %v2388
        %v2396 = vpack.c.b16 %v2391, %v2390
        %v2397 = vpack.c.b16 %v2393, %v2392
        %2402 = vmatprep.subr.bf16.mxu0 0
        %2403 = vmatpush1.bf16.msra.mxu0 %v2394
        %2404 = vmatprep.subr.bf16.mxu0 0
        %2405 = vmatpush1.bf16.msra.mxu0 %v2395
        %2406 = vmatprep.subr.bf16.mxu0 0
        %2407 = vmatpush1.bf16.msra.mxu0 %v2396
        %2408 = vmatprep.subr.bf16.mxu0 0
        %2409 = vmatpush1.bf16.msra.mxu0 %v2397
        %2410 = vmatprep.subr.bf16.mxu0 0
        %2411 = vmatpush1.bf16.msra.mxu0 0
        %2412 = vmatprep.subr.bf16.mxu0 0
        %2413 = vmatpush1.bf16.msra.mxu0 0
        %2414 = vmatprep.subr.bf16.mxu0 0
        %2415 = vmatpush1.bf16.msra.mxu0 0
        %2416 = vmatprep.subr.bf16.mxu0 0
        %2417 = vmatpush1.bf16.msra.mxu0 0
        %2418 = vmatprep.subr.bf16.mxu0 0
        %2419 = vmatpush1.bf16.msra.mxu0 0
        %2420 = vmatprep.subr.bf16.mxu0 0
        %2421 = vmatpush1.bf16.msra.mxu0 0
        %2422 = vmatprep.subr.bf16.mxu0 0
        %2423 = vmatpush1.bf16.msra.mxu0 0
        %2424 = vmatprep.subr.bf16.mxu0 0
        %2425 = vmatpush1.bf16.msra.mxu0 0
        %2426 = vmatprep.subr.bf16.mxu0 0
        %2427 = vmatpush1.bf16.msra.mxu0 0
        %2428 = vmatprep.subr.bf16.mxu0 0
        %2429 = vmatpush1.bf16.msra.mxu0 0
        %2430 = vmatprep.subr.bf16.mxu0 0
        %2431 = vmatpush1.bf16.msra.mxu0 0
        %2432 = vmatprep.subr.bf16.mxu0 0
        %2433 = vmatpush1.bf16.msra.mxu0 0
        %2434 = vmatprep.mubr.bf16.mxu0 0
        %2435 = vmatmul.mubr.bf16.gmra.mrb[0].mxu0 %v1277
        %v2436 = vpop.f32.mrb[0].mxu0
        %v2437 = vadd.f32 %v2377, %v2436
        %v2438 = vpop.f32.mrb[0].mxu0
        %v2439 = vpop.f32.mrb[0].mxu0
        %v2440 = vadd.f32 %v2377, %v2439
        %v2441 = vpop.f32.mrb[0].mxu0
        %2442 = vmatprep.mubr.bf16.mxu0 0
        %2443 = vmatmul.mubr.bf16.gmra.mrb[0].mxu0 %v1280
        %v2444 = vpop.f32.mrb[0].mxu0
        %v2445 = vadd.f32 %v2377, %v2444
        %v2446 = vpop.f32.mrb[0].mxu0
        %v2447 = vpop.f32.mrb[0].mxu0
        %v2448 = vpop.f32.mrb[0].mxu0
        %2449 = vdwg.mxu0
        %v2451 = vsel %vm1498, %v2267, 0
        %v2454 = vsel %vm1498, %v2270, 0
        %v2457 = vsel %vm1498, %v2275, 0
        %v2460 = vsel %vm1498, %v2352, 0
        %v2463 = vsel %vm1498, %v2355, 0
        %v2466 = vsel %vm1498, %v2360, 0
        %2468 = vmatprep.subr.mxu0 0.0
        %2469 = vmatpush1.xpose.msra.mxu0 %v2460
        %2470 = vmatprep.subr.mxu0 0.0
        %2471 = vmatpush1.xpose.msra.mxu0 %v2463
        %2472 = vmatprep.subr.mxu0 0.0
        %2473 = vmatpush1.xpose.msra.mxu0 %v2466
        %2474 = vmatprep.subr.mxu0 0.0
        %2475 = vmatpush1.xpose.msra.mxu0 0.0
        %2476 = vmatprep.subr.mxu0 0.0
        %2477 = vmatpush1.xpose.msra.mxu0 0.0
        %2478 = vmatprep.subr.mxu0 0.0
        %2479 = vmatpush1.xpose.msra.mxu0 0.0
        %2480 = vmatprep.subr.mxu0 0.0
        %2481 = vmatpush1.xpose.msra.mxu0 0.0
        %2482 = vmatprep.subr.mxu0 0.0
        %2483 = vmatpush1.xpose.msra.mxu0 0.0
        %2484 = vmatprep.subr.mxu0 0.0
        %2485 = vmatpush1.xpose.msra.mxu0 0.0
        %2486 = vmatprep.subr.mxu0 0.0
        %2487 = vmatpush1.xpose.msra.mxu0 0.0
        %2488 = vmatprep.subr.mxu0 0.0
        %2489 = vmatpush1.xpose.msra.mxu0 0.0
        %2490 = vmatprep.subr.mxu0 0.0
        %2491 = vmatpush1.xpose.msra.mxu0 0.0
        %2492 = vmatprep.subr.mxu0 0.0
        %2493 = vmatpush1.xpose.msra.mxu0 0.0
        %2494 = vmatprep.subr.mxu0 0.0
        %2495 = vmatpush1.xpose.msra.mxu0 0.0
        %2496 = vmatprep.subr.mxu0 0.0
        %2497 = vmatpush1.xpose.msra.mxu0 0.0
        %2498 = vmatprep.subr.mxu0 0.0
        %2499 = vmatpush1.xpose.msra.mxu0 0.0
        %2500 = vmatprep.subr.mxu0 0.0
        %2501 = vmatpush1.xpose.msra.mxu0 0.0
        %2502 = vmatprep.subr.mxu0 0.0
        %2503 = vmatpush1.xpose.msra.mxu0 0.0
        %2504 = vmatprep.subr.mxu0 0.0
        %2505 = vmatpush1.xpose.msra.mxu0 0.0
        %2506 = vmatprep.subr.mxu0 0.0
        %2507 = vmatpush1.xpose.msra.mxu0 0.0
        %2508 = vmatprep.subr.mxu0 0.0
        %2509 = vmatpush1.xpose.msra.mxu0 0.0
        %2510 = vmatprep.subr.mxu0 0.0
        %2511 = vmatpush1.xpose.msra.mxu0 0.0
        %2512 = vmatprep.subr.mxu0 0.0
        %2513 = vmatpush1.xpose.msra.mxu0 0.0
        %2514 = vmatprep.subr.mxu0 0.0
        %2515 = vmatpush1.xpose.msra.mxu0 0.0
        %2516 = vmatprep.subr.mxu0 0.0
        %2517 = vmatpush1.xpose.msra.mxu0 0.0
        %2518 = vmatprep.subr.mxu0 0.0
        %2519 = vmatpush1.xpose.msra.mxu0 0.0
        %2520 = vmatprep.subr.mxu0 0.0
        %2521 = vmatpush1.xpose.msra.mxu0 0.0
        %2522 = vmatprep.subr.mxu0 0.0
        %2523 = vmatpush1.xpose.msra.mxu0 0.0
        %2524 = vmatprep.subr.mxu0 0.0
        %2525 = vmatpush1.xpose.msra.mxu0 0.0
        %2526 = vmatprep.subr.mxu0 0.0
        %2527 = vmatpush1.xpose.msra.mxu0 0.0
        %2528 = vmatprep.subr.mxu0 0.0
        %2529 = vmatpush1.xpose.msra.mxu0 0.0
        %2530 = vmatprep.subr.mxu0 0.0
        %2531 = vmatpush1.xpose.msra.mxu0 0.0
        %2532 = vmatprep.mubr.f32.mxu0 0.0
        %2533 = vmatmul.mubr.f32.gmra.mrb[0].mxu0 %v2451
        %v2534 = vpop.f32.mrb[0].mxu0
        %v2535 = vadd.f32 %v1236, %v2534
        %v2536 = vpop.f32.mrb[0].mxu0
        %2537 = vmatprep.mubr.f32.mxu0 0.0
        %2538 = vmatmul.mubr.f32.gmra.mrb[0].mxu0 %v2454
        %v2539 = vpop.f32.mrb[0].mxu0
        %v2540 = vadd.f32 %v1236, %v2539
        %v2541 = vpop.f32.mrb[0].mxu0
        %2542 = vmatprep.mubr.f32.mxu0 0.0
        %2543 = vmatmul.mubr.f32.gmra.mrb[0].mxu0 %v2457
        %v2544 = vpop.f32.mrb[0].mxu0
        %v2545 = vadd.f32 %v1236, %v2544
        %v2546 = vpop.f32.mrb[0].mxu0
        %2547 = vdwg.mxu0
        %v2548 = vsel %vm1597, %v2535, -inf
        %2549 = vmax.xlane.f32.xlu0 %v2548
        %v2550 = vpop.xlane.xlu0 %2549
        %v2551 = vsel %vm1597, %v2540, -inf
        %2552 = vmax.xlane.f32.xlu0 %v2551
        %v2553 = vpop.xlane.xlu0 %2552
        %v2554 = vsel %vm1597, %v2545, -inf
        %2555 = vmax.xlane.f32.xlu0 %v2554
        %v2556 = vpop.xlane.xlu0 %2555
        %v2557 = vsub.f32 %v2535, %v2550
        %v2558 = vsub.f32 %v2540, %v2553
        %v2559 = vsub.f32 %v2545, %v2556
        %v2560 = vmul.f32 %v2557, 1.442695
        %v2561 = vpow.pop %v2560
        %v2562 = vmul.f32 %v2558, 1.442695
        %v2563 = vpow.pop %v2562
        %v2564 = vmul.f32 %v2559, 1.442695
        %v2565 = vpow.pop %v2564
        %v2566 = vsel %vm1597, %v2561, 0.0
        %2567 = vadd.xlane.f32.xlu0 %v2566
        %v2568 = vpop.xlane.xlu0 %2567
        %v2569 = vsel %vm1597, %v2563, 0.0
        %2570 = vadd.xlane.f32.xlu0 %v2569
        %v2571 = vpop.xlane.xlu0 %2570
        %v2572 = vsel %vm1597, %v2565, 0.0
        %2573 = vadd.xlane.f32.xlu0 %v2572
        %v2574 = vpop.xlane.xlu0 %2573
        %v2575 = vrcp.pop %v2568
        %v2576 = vrcp.pop %v2571
        %v2577 = vrcp.pop %v2574
        %v2578 = vmul.f32 %v2561, %v2575
        %v2579 = vmul.f32 %v2563, %v2576
        %v2580 = vmul.f32 %v2565, %v2577
        %v2582 = vsel %vm1597, %v2578, 0
        %v2585 = vsel %vm1597, %v2579, 0
        %v2588 = vsel %vm1597, %v2580, 0
        %2590 = vmatprep.subr.mxu0 0.0
        %2591 = vmatpush1.msra.mxu0 %v2437
        %2592 = vmatprep.subr.mxu0 0.0
        %2593 = vmatpush1.msra.mxu0 %v2440
        %2594 = vmatprep.subr.mxu0 0.0
        %2595 = vmatpush1.msra.mxu0 %v2445
        %2596 = vmatprep.subr.mxu0 0.0
        %2597 = vmatpush1.msra.mxu0 0.0
        %2598 = vmatprep.subr.mxu0 0.0
        %2599 = vmatpush1.msra.mxu0 0.0
        %2600 = vmatprep.subr.mxu0 0.0
        %2601 = vmatpush1.msra.mxu0 0.0
        %2602 = vmatprep.subr.mxu0 0.0
        %2603 = vmatpush1.msra.mxu0 0.0
        %2604 = vmatprep.subr.mxu0 0.0
        %2605 = vmatpush1.msra.mxu0 0.0
        %2606 = vmatprep.subr.mxu0 0.0
        %2607 = vmatpush1.msra.mxu0 0.0
        %2608 = vmatprep.subr.mxu0 0.0
        %2609 = vmatpush1.msra.mxu0 0.0
        %2610 = vmatprep.subr.mxu0 0.0
        %2611 = vmatpush1.msra.mxu0 0.0
        %2612 = vmatprep.subr.mxu0 0.0
        %2613 = vmatpush1.msra.mxu0 0.0
        %2614 = vmatprep.subr.mxu0 0.0
        %2615 = vmatpush1.msra.mxu0 0.0
        %2616 = vmatprep.subr.mxu0 0.0
        %2617 = vmatpush1.msra.mxu0 0.0
        %2618 = vmatprep.subr.mxu0 0.0
        %2619 = vmatpush1.msra.mxu0 0.0
        %2620 = vmatprep.subr.mxu0 0.0
        %2621 = vmatpush1.msra.mxu0 0.0
        %2622 = vmatprep.subr.mxu0 0.0
        %2623 = vmatpush1.msra.mxu0 0.0
        %2624 = vmatprep.subr.mxu0 0.0
        %2625 = vmatpush1.msra.mxu0 0.0
        %2626 = vmatprep.subr.mxu0 0.0
        %2627 = vmatpush1.msra.mxu0 0.0
        %2628 = vmatprep.subr.mxu0 0.0
        %2629 = vmatpush1.msra.mxu0 0.0
        %2630 = vmatprep.subr.mxu0 0.0
        %2631 = vmatpush1.msra.mxu0 0.0
        %2632 = vmatprep.subr.mxu0 0.0
        %2633 = vmatpush1.msra.mxu0 0.0
        %2634 = vmatprep.subr.mxu0 0.0
        %2635 = vmatpush1.msra.mxu0 0.0
        %2636 = vmatprep.subr.mxu0 0.0
        %2637 = vmatpush1.msra.mxu0 0.0
        %2638 = vmatprep.subr.mxu0 0.0
        %2639 = vmatpush1.msra.mxu0 0.0
        %2640 = vmatprep.subr.mxu0 0.0
        %2641 = vmatpush1.msra.mxu0 0.0
        %2642 = vmatprep.subr.mxu0 0.0
        %2643 = vmatpush1.msra.mxu0 0.0
        %2644 = vmatprep.subr.mxu0 0.0
        %2645 = vmatpush1.msra.mxu0 0.0
        %2646 = vmatprep.subr.mxu0 0.0
        %2647 = vmatpush1.msra.mxu0 0.0
        %2648 = vmatprep.subr.mxu0 0.0
        %2649 = vmatpush1.msra.mxu0 0.0
        %2650 = vmatprep.subr.mxu0 0.0
        %2651 = vmatpush1.msra.mxu0 0.0
        %2652 = vmatprep.subr.mxu0 0.0
        %2653 = vmatpush1.msra.mxu0 0.0
        %2654 = vmatprep.mubr.f32.mxu0 0.0
        %2655 = vmatmul.mubr.f32.gmra.mrb[0].mxu0 %v2582
        %v2656 = vpop.f32.mrb[0].mxu0
        %v2657 = vadd.f32 0.0, %v2656
        %v2658 = vpop.f32.mrb[0].mxu0
        %2659 = vmatprep.mubr.f32.mxu0 0.0
        %2660 = vmatmul.mubr.f32.gmra.mrb[0].mxu0 %v2585
        %v2661 = vpop.f32.mrb[0].mxu0
        %v2662 = vadd.f32 0.0, %v2661
        %v2663 = vpop.f32.mrb[0].mxu0
        %2664 = vmatprep.mubr.f32.mxu0 0.0
        %2665 = vmatmul.mubr.f32.gmra.mrb[0].mxu0 %v2588
        %v2666 = vpop.f32.mrb[0].mxu0
        %v2667 = vadd.f32 0.0, %v2666
        %v2668 = vpop.f32.mrb[0].mxu0
        %2669 = vdwg.mxu0
        %s2670 = scalar_lea.vmem %s990, 96
        %v2671 = vld [vmem:[%s2670] sm:$0xf]
        %v2672 = vld [vmem:[%s2670 + $0x4] sm:$0xf]
        %v2673 = vld [vmem:[%s2670 + $0x8] sm:$0xf]
        %v2674 = vld [vmem:[%s2670 + $0xc] sm:$0xf]
        %v2675 = vld [vmem:[%s2670 + $0x10] sm:$0xf]
        %v2676 = vld [vmem:[%s2670 + $0x14] sm:$0xf]
        %v2677 = vld [vmem:[%s2670 + $0x18] sm:$0xf]
        %v2678 = vld [vmem:[%s2670 + $0x1c] sm:$0xf]
        %v2679 = vlaneseq
        %v2680 = vshrl.u32 %v2679, 7
        %v2681 = vsub.s32 3, %v2680
        %v2682 = vrot.slane %v1237, %v2681
        %v2691 = vunpack.c.l.b16 %v2671
        %v2692 = vunpack.c.l.b16 %v2672
        %v2693 = vunpack.c.l.b16 %v2673
        %v2694 = vunpack.c.l.b16 %v2674
        %v2695 = vunpack.c.l.b16 %v2675
        %v2696 = vunpack.c.l.b16 %v2676
        %v2697 = vunpack.c.l.b16 %v2677
        %v2698 = vunpack.c.l.b16 %v2678
        %v2699 = vpack.c.b16 %v2692, %v2691
        %v2700 = vpack.c.b16 %v2694, %v2693
        %v2701 = vpack.c.b16 %v2696, %v2695
        %v2702 = vpack.c.b16 %v2698, %v2697
        %2707 = vmatprep.subr.bf16.mxu0 0
        %2708 = vmatpush1.bf16.msra.mxu0 %v2699
        %2709 = vmatprep.subr.bf16.mxu0 0
        %2710 = vmatpush1.bf16.msra.mxu0 %v2700
        %2711 = vmatprep.subr.bf16.mxu0 0
        %2712 = vmatpush1.bf16.msra.mxu0 %v2701
        %2713 = vmatprep.subr.bf16.mxu0 0
        %2714 = vmatpush1.bf16.msra.mxu0 %v2702
        %2715 = vmatprep.subr.bf16.mxu0 0
        %2716 = vmatpush1.bf16.msra.mxu0 0
        %2717 = vmatprep.subr.bf16.mxu0 0
        %2718 = vmatpush1.bf16.msra.mxu0 0
        %2719 = vmatprep.subr.bf16.mxu0 0
        %2720 = vmatpush1.bf16.msra.mxu0 0
        %2721 = vmatprep.subr.bf16.mxu0 0
        %2722 = vmatpush1.bf16.msra.mxu0 0
        %2723 = vmatprep.subr.bf16.mxu0 0
        %2724 = vmatpush1.bf16.msra.mxu0 0
        %2725 = vmatprep.subr.bf16.mxu0 0
        %2726 = vmatpush1.bf16.msra.mxu0 0
        %2727 = vmatprep.subr.bf16.mxu0 0
        %2728 = vmatpush1.bf16.msra.mxu0 0
        %2729 = vmatprep.subr.bf16.mxu0 0
        %2730 = vmatpush1.bf16.msra.mxu0 0
        %2731 = vmatprep.subr.bf16.mxu0 0
        %2732 = vmatpush1.bf16.msra.mxu0 0
        %2733 = vmatprep.subr.bf16.mxu0 0
        %2734 = vmatpush1.bf16.msra.mxu0 0
        %2735 = vmatprep.subr.bf16.mxu0 0
        %2736 = vmatpush1.bf16.msra.mxu0 0
        %2737 = vmatprep.subr.bf16.mxu0 0
        %2738 = vmatpush1.bf16.msra.mxu0 0
        %2739 = vmatprep.mubr.bf16.mxu0 0
        %2740 = vmatmul.mubr.bf16.gmra.mrb[0].mxu0 %v1277
        %v2741 = vpop.f32.mrb[0].mxu0
        %v2742 = vadd.f32 %v2682, %v2741
        %v2743 = vpop.f32.mrb[0].mxu0
        %v2744 = vpop.f32.mrb[0].mxu0
        %v2745 = vadd.f32 %v2682, %v2744
        %v2746 = vpop.f32.mrb[0].mxu0
        %2747 = vmatprep.mubr.bf16.mxu0 0
        %2748 = vmatmul.mubr.bf16.gmra.mrb[0].mxu0 %v1280
        %v2749 = vpop.f32.mrb[0].mxu0
        %v2750 = vadd.f32 %v2682, %v2749
        %v2751 = vpop.f32.mrb[0].mxu0
        %v2752 = vpop.f32.mrb[0].mxu0
        %v2753 = vpop.f32.mrb[0].mxu0
        %2754 = vdwg.mxu0
        %s2755 = scalar_lea.vmem %s995, 96
        %v2756 = vld [vmem:[%s2755] sm:$0xf]
        %v2757 = vld [vmem:[%s2755 + $0x4] sm:$0xf]
        %v2758 = vld [vmem:[%s2755 + $0x8] sm:$0xf]
        %v2759 = vld [vmem:[%s2755 + $0xc] sm:$0xf]
        %v2760 = vld [vmem:[%s2755 + $0x10] sm:$0xf]
        %v2761 = vld [vmem:[%s2755 + $0x14] sm:$0xf]
        %v2762 = vld [vmem:[%s2755 + $0x18] sm:$0xf]
        %v2763 = vld [vmem:[%s2755 + $0x1c] sm:$0xf]
        %v2764 = vlaneseq
        %v2765 = vshrl.u32 %v2764, 7
        %v2766 = vsub.s32 3, %v2765
        %v2767 = vrot.slane %v1238, %v2766
        %v2776 = vunpack.c.l.b16 %v2756
        %v2777 = vunpack.c.l.b16 %v2757
        %v2778 = vunpack.c.l.b16 %v2758
        %v2779 = vunpack.c.l.b16 %v2759
        %v2780 = vunpack.c.l.b16 %v2760
        %v2781 = vunpack.c.l.b16 %v2761
        %v2782 = vunpack.c.l.b16 %v2762
        %v2783 = vunpack.c.l.b16 %v2763
        %v2784 = vpack.c.b16 %v2777, %v2776
        %v2785 = vpack.c.b16 %v2779, %v2778
        %v2786 = vpack.c.b16 %v2781, %v2780
        %v2787 = vpack.c.b16 %v2783, %v2782
        %2792 = vmatprep.subr.bf16.mxu0 0
        %2793 = vmatpush1.bf16.msra.mxu0 %v2784
        %2794 = vmatprep.subr.bf16.mxu0 0
        %2795 = vmatpush1.bf16.msra.mxu0 %v2785
        %2796 = vmatprep.subr.bf16.mxu0 0
        %2797 = vmatpush1.bf16.msra.mxu0 %v2786
        %2798 = vmatprep.subr.bf16.mxu0 0
        %2799 = vmatpush1.bf16.msra.mxu0 %v2787
        %2800 = vmatprep.subr.bf16.mxu0 0
        %2801 = vmatpush1.bf16.msra.mxu0 0
        %2802 = vmatprep.subr.bf16.mxu0 0
        %2803 = vmatpush1.bf16.msra.mxu0 0
        %2804 = vmatprep.subr.bf16.mxu0 0
        %2805 = vmatpush1.bf16.msra.mxu0 0
        %2806 = vmatprep.subr.bf16.mxu0 0
        %2807 = vmatpush1.bf16.msra.mxu0 0
        %2808 = vmatprep.subr.bf16.mxu0 0
        %2809 = vmatpush1.bf16.msra.mxu0 0
        %2810 = vmatprep.subr.bf16.mxu0 0
        %2811 = vmatpush1.bf16.msra.mxu0 0
        %2812 = vmatprep.subr.bf16.mxu0 0
        %2813 = vmatpush1.bf16.msra.mxu0 0
        %2814 = vmatprep.subr.bf16.mxu0 0
        %2815 = vmatpush1.bf16.msra.mxu0 0
        %2816 = vmatprep.subr.bf16.mxu0 0
        %2817 = vmatpush1.bf16.msra.mxu0 0
        %2818 = vmatprep.subr.bf16.mxu0 0
        %2819 = vmatpush1.bf16.msra.mxu0 0
        %2820 = vmatprep.subr.bf16.mxu0 0
        %2821 = vmatpush1.bf16.msra.mxu0 0
        %2822 = vmatprep.subr.bf16.mxu0 0
        %2823 = vmatpush1.bf16.msra.mxu0 0
        %2824 = vmatprep.mubr.bf16.mxu0 0
        %2825 = vmatmul.mubr.bf16.gmra.mrb[0].mxu0 %v1277
        %v2826 = vpop.f32.mrb[0].mxu0
        %v2827 = vadd.f32 %v2767, %v2826
        %v2828 = vpop.f32.mrb[0].mxu0
        %v2829 = vpop.f32.mrb[0].mxu0
        %v2830 = vadd.f32 %v2767, %v2829
        %v2831 = vpop.f32.mrb[0].mxu0
        %2832 = vmatprep.mubr.bf16.mxu0 0
        %2833 = vmatmul.mubr.bf16.gmra.mrb[0].mxu0 %v1280
        %v2834 = vpop.f32.mrb[0].mxu0
        %v2835 = vadd.f32 %v2767, %v2834
        %v2836 = vpop.f32.mrb[0].mxu0
        %v2837 = vpop.f32.mrb[0].mxu0
        %v2838 = vpop.f32.mrb[0].mxu0
        %2839 = vdwg.mxu0
        %s2840 = scalar_lea.vmem %s1000, 96
        %v2841 = vld [vmem:[%s2840] sm:$0xf]
        %v2842 = vld [vmem:[%s2840 + $0x4] sm:$0xf]
        %v2843 = vld [vmem:[%s2840 + $0x8] sm:$0xf]
        %v2844 = vld [vmem:[%s2840 + $0xc] sm:$0xf]
        %v2845 = vld [vmem:[%s2840 + $0x10] sm:$0xf]
        %v2846 = vld [vmem:[%s2840 + $0x14] sm:$0xf]
        %v2847 = vld [vmem:[%s2840 + $0x18] sm:$0xf]
        %v2848 = vld [vmem:[%s2840 + $0x1c] sm:$0xf]
        %v2849 = vlaneseq
        %v2850 = vshrl.u32 %v2849, 7
        %v2851 = vsub.s32 3, %v2850
        %v2852 = vrot.slane %v1239, %v2851
        %v2861 = vunpack.c.l.b16 %v2841
        %v2862 = vunpack.c.l.b16 %v2842
        %v2863 = vunpack.c.l.b16 %v2843
        %v2864 = vunpack.c.l.b16 %v2844
        %v2865 = vunpack.c.l.b16 %v2845
        %v2866 = vunpack.c.l.b16 %v2846
        %v2867 = vunpack.c.l.b16 %v2847
        %v2868 = vunpack.c.l.b16 %v2848
        %v2869 = vpack.c.b16 %v2862, %v2861
        %v2870 = vpack.c.b16 %v2864, %v2863
        %v2871 = vpack.c.b16 %v2866, %v2865
        %v2872 = vpack.c.b16 %v2868, %v2867
        %2877 = vmatprep.subr.bf16.mxu0 0
        %2878 = vmatpush1.bf16.msra.mxu0 %v2869
        %2879 = vmatprep.subr.bf16.mxu0 0
        %2880 = vmatpush1.bf16.msra.mxu0 %v2870
        %2881 = vmatprep.subr.bf16.mxu0 0
        %2882 = vmatpush1.bf16.msra.mxu0 %v2871
        %2883 = vmatprep.subr.bf16.mxu0 0
        %2884 = vmatpush1.bf16.msra.mxu0 %v2872
        %2885 = vmatprep.subr.bf16.mxu0 0
        %2886 = vmatpush1.bf16.msra.mxu0 0
        %2887 = vmatprep.subr.bf16.mxu0 0
        %2888 = vmatpush1.bf16.msra.mxu0 0
        %2889 = vmatprep.subr.bf16.mxu0 0
        %2890 = vmatpush1.bf16.msra.mxu0 0
        %2891 = vmatprep.subr.bf16.mxu0 0
        %2892 = vmatpush1.bf16.msra.mxu0 0
        %2893 = vmatprep.subr.bf16.mxu0 0
        %2894 = vmatpush1.bf16.msra.mxu0 0
        %2895 = vmatprep.subr.bf16.mxu0 0
        %2896 = vmatpush1.bf16.msra.mxu0 0
        %2897 = vmatprep.subr.bf16.mxu0 0
        %2898 = vmatpush1.bf16.msra.mxu0 0
        %2899 = vmatprep.subr.bf16.mxu0 0
        %2900 = vmatpush1.bf16.msra.mxu0 0
        %2901 = vmatprep.subr.bf16.mxu0 0
        %2902 = vmatpush1.bf16.msra.mxu0 0
        %2903 = vmatprep.subr.bf16.mxu0 0
        %2904 = vmatpush1.bf16.msra.mxu0 0
        %2905 = vmatprep.subr.bf16.mxu0 0
        %2906 = vmatpush1.bf16.msra.mxu0 0
        %2907 = vmatprep.subr.bf16.mxu0 0
        %2908 = vmatpush1.bf16.msra.mxu0 0
        %2909 = vmatprep.mubr.bf16.mxu0 0
        %2910 = vmatmul.mubr.bf16.gmra.mrb[0].mxu0 %v1277
        %v2911 = vpop.f32.mrb[0].mxu0
        %v2912 = vadd.f32 %v2852, %v2911
        %v2913 = vpop.f32.mrb[0].mxu0
        %v2914 = vpop.f32.mrb[0].mxu0
        %v2915 = vadd.f32 %v2852, %v2914
        %v2916 = vpop.f32.mrb[0].mxu0
        %2917 = vmatprep.mubr.bf16.mxu0 0
        %2918 = vmatmul.mubr.bf16.gmra.mrb[0].mxu0 %v1280
        %v2919 = vpop.f32.mrb[0].mxu0
        %v2920 = vadd.f32 %v2852, %v2919
        %v2921 = vpop.f32.mrb[0].mxu0
        %v2922 = vpop.f32.mrb[0].mxu0
        %v2923 = vpop.f32.mrb[0].mxu0
        %2924 = vdwg.mxu0
        %v2926 = vsel %vm1498, %v2742, 0
        %v2929 = vsel %vm1498, %v2745, 0
        %v2932 = vsel %vm1498, %v2750, 0
        %v2935 = vsel %vm1498, %v2827, 0
        %v2938 = vsel %vm1498, %v2830, 0
        %v2941 = vsel %vm1498, %v2835, 0
        %2943 = vmatprep.subr.mxu0 0.0
        %2944 = vmatpush1.xpose.msra.mxu0 %v2935
        %2945 = vmatprep.subr.mxu0 0.0
        %2946 = vmatpush1.xpose.msra.mxu0 %v2938
        %2947 = vmatprep.subr.mxu0 0.0
        %2948 = vmatpush1.xpose.msra.mxu0 %v2941
        %2949 = vmatprep.subr.mxu0 0.0
        %2950 = vmatpush1.xpose.msra.mxu0 0.0
        %2951 = vmatprep.subr.mxu0 0.0
        %2952 = vmatpush1.xpose.msra.mxu0 0.0
        %2953 = vmatprep.subr.mxu0 0.0
        %2954 = vmatpush1.xpose.msra.mxu0 0.0
        %2955 = vmatprep.subr.mxu0 0.0
        %2956 = vmatpush1.xpose.msra.mxu0 0.0
        %2957 = vmatprep.subr.mxu0 0.0
        %2958 = vmatpush1.xpose.msra.mxu0 0.0
        %2959 = vmatprep.subr.mxu0 0.0
        %2960 = vmatpush1.xpose.msra.mxu0 0.0
        %2961 = vmatprep.subr.mxu0 0.0
        %2962 = vmatpush1.xpose.msra.mxu0 0.0
        %2963 = vmatprep.subr.mxu0 0.0
        %2964 = vmatpush1.xpose.msra.mxu0 0.0
        %2965 = vmatprep.subr.mxu0 0.0
        %2966 = vmatpush1.xpose.msra.mxu0 0.0
        %2967 = vmatprep.subr.mxu0 0.0
        %2968 = vmatpush1.xpose.msra.mxu0 0.0
        %2969 = vmatprep.subr.mxu0 0.0
        %2970 = vmatpush1.xpose.msra.mxu0 0.0
        %2971 = vmatprep.subr.mxu0 0.0
        %2972 = vmatpush1.xpose.msra.mxu0 0.0
        %2973 = vmatprep.subr.mxu0 0.0
        %2974 = vmatpush1.xpose.msra.mxu0 0.0
        %2975 = vmatprep.subr.mxu0 0.0
        %2976 = vmatpush1.xpose.msra.mxu0 0.0
        %2977 = vmatprep.subr.mxu0 0.0
        %2978 = vmatpush1.xpose.msra.mxu0 0.0
        %2979 = vmatprep.subr.mxu0 0.0
        %2980 = vmatpush1.xpose.msra.mxu0 0.0
        %2981 = vmatprep.subr.mxu0 0.0
        %2982 = vmatpush1.xpose.msra.mxu0 0.0
        %2983 = vmatprep.subr.mxu0 0.0
        %2984 = vmatpush1.xpose.msra.mxu0 0.0
        %2985 = vmatprep.subr.mxu0 0.0
        %2986 = vmatpush1.xpose.msra.mxu0 0.0
        %2987 = vmatprep.subr.mxu0 0.0
        %2988 = vmatpush1.xpose.msra.mxu0 0.0
        %2989 = vmatprep.subr.mxu0 0.0
        %2990 = vmatpush1.xpose.msra.mxu0 0.0
        %2991 = vmatprep.subr.mxu0 0.0
        %2992 = vmatpush1.xpose.msra.mxu0 0.0
        %2993 = vmatprep.subr.mxu0 0.0
        %2994 = vmatpush1.xpose.msra.mxu0 0.0
        %2995 = vmatprep.subr.mxu0 0.0
        %2996 = vmatpush1.xpose.msra.mxu0 0.0
        %2997 = vmatprep.subr.mxu0 0.0
        %2998 = vmatpush1.xpose.msra.mxu0 0.0
        %2999 = vmatprep.subr.mxu0 0.0
        %3000 = vmatpush1.xpose.msra.mxu0 0.0
        %3001 = vmatprep.subr.mxu0 0.0
        %3002 = vmatpush1.xpose.msra.mxu0 0.0
        %3003 = vmatprep.subr.mxu0 0.0
        %3004 = vmatpush1.xpose.msra.mxu0 0.0
        %3005 = vmatprep.subr.mxu0 0.0
        %3006 = vmatpush1.xpose.msra.mxu0 0.0
        %3007 = vmatprep.mubr.f32.mxu0 0.0
        %3008 = vmatmul.mubr.f32.gmra.mrb[0].mxu0 %v2926
        %v3009 = vpop.f32.mrb[0].mxu0
        %v3010 = vadd.f32 %v1236, %v3009
        %v3011 = vpop.f32.mrb[0].mxu0
        %3012 = vmatprep.mubr.f32.mxu0 0.0
        %3013 = vmatmul.mubr.f32.gmra.mrb[0].mxu0 %v2929
        %v3014 = vpop.f32.mrb[0].mxu0
        %v3015 = vadd.f32 %v1236, %v3014
        %v3016 = vpop.f32.mrb[0].mxu0
        %3017 = vmatprep.mubr.f32.mxu0 0.0
        %3018 = vmatmul.mubr.f32.gmra.mrb[0].mxu0 %v2932
        %v3019 = vpop.f32.mrb[0].mxu0
        %v3020 = vadd.f32 %v1236, %v3019
        %v3021 = vpop.f32.mrb[0].mxu0
        %3022 = vdwg.mxu0
        %v3023 = vsel %vm1597, %v3010, -inf
        %3024 = vmax.xlane.f32.xlu0 %v3023
        %v3025 = vpop.xlane.xlu0 %3024
        %v3026 = vsel %vm1597, %v3015, -inf
        %3027 = vmax.xlane.f32.xlu0 %v3026
        %v3028 = vpop.xlane.xlu0 %3027
        %v3029 = vsel %vm1597, %v3020, -inf
        %3030 = vmax.xlane.f32.xlu0 %v3029
        %v3031 = vpop.xlane.xlu0 %3030
        %v3032 = vsub.f32 %v3010, %v3025
        %v3033 = vsub.f32 %v3015, %v3028
        %v3034 = vsub.f32 %v3020, %v3031
        %v3035 = vmul.f32 %v3032, 1.442695
        %v3036 = vpow.pop %v3035
        %v3037 = vmul.f32 %v3033, 1.442695
        %v3038 = vpow.pop %v3037
        %v3039 = vmul.f32 %v3034, 1.442695
        %v3040 = vpow.pop %v3039
        %v3041 = vsel %vm1597, %v3036, 0.0
        %3042 = vadd.xlane.f32.xlu0 %v3041
        %v3043 = vpop.xlane.xlu0 %3042
        %v3044 = vsel %vm1597, %v3038, 0.0
        %3045 = vadd.xlane.f32.xlu0 %v3044
        %v3046 = vpop.xlane.xlu0 %3045
        %v3047 = vsel %vm1597, %v3040, 0.0
        %3048 = vadd.xlane.f32.xlu0 %v3047
        %v3049 = vpop.xlane.xlu0 %3048
        %v3050 = vrcp.pop %v3043
        %v3051 = vrcp.pop %v3046
        %v3052 = vrcp.pop %v3049
        %v3053 = vmul.f32 %v3036, %v3050
        %v3054 = vmul.f32 %v3038, %v3051
        %v3055 = vmul.f32 %v3040, %v3052
        %v3057 = vsel %vm1597, %v3053, 0
        %v3060 = vsel %vm1597, %v3054, 0
        %v3063 = vsel %vm1597, %v3055, 0
        %3065 = vmatprep.subr.mxu0 0.0
        %3066 = vmatpush1.msra.mxu0 %v2912
        %3067 = vmatprep.subr.mxu0 0.0
        %3068 = vmatpush1.msra.mxu0 %v2915
        %3069 = vmatprep.subr.mxu0 0.0
        %3070 = vmatpush1.msra.mxu0 %v2920
        %3071 = vmatprep.subr.mxu0 0.0
        %3072 = vmatpush1.msra.mxu0 0.0
        %3073 = vmatprep.subr.mxu0 0.0
        %3074 = vmatpush1.msra.mxu0 0.0
        %3075 = vmatprep.subr.mxu0 0.0
        %3076 = vmatpush1.msra.mxu0 0.0
        %3077 = vmatprep.subr.mxu0 0.0
        %3078 = vmatpush1.msra.mxu0 0.0
        %3079 = vmatprep.subr.mxu0 0.0
        %3080 = vmatpush1.msra.mxu0 0.0
        %3081 = vmatprep.subr.mxu0 0.0
        %3082 = vmatpush1.msra.mxu0 0.0
        %3083 = vmatprep.subr.mxu0 0.0
        %3084 = vmatpush1.msra.mxu0 0.0
        %3085 = vmatprep.subr.mxu0 0.0
        %3086 = vmatpush1.msra.mxu0 0.0
        %3087 = vmatprep.subr.mxu0 0.0
        %3088 = vmatpush1.msra.mxu0 0.0
        %3089 = vmatprep.subr.mxu0 0.0
        %3090 = vmatpush1.msra.mxu0 0.0
        %3091 = vmatprep.subr.mxu0 0.0
        %3092 = vmatpush1.msra.mxu0 0.0
        %3093 = vmatprep.subr.mxu0 0.0
        %3094 = vmatpush1.msra.mxu0 0.0
        %3095 = vmatprep.subr.mxu0 0.0
        %3096 = vmatpush1.msra.mxu0 0.0
        %3097 = vmatprep.subr.mxu0 0.0
        %3098 = vmatpush1.msra.mxu0 0.0
        %3099 = vmatprep.subr.mxu0 0.0
        %3100 = vmatpush1.msra.mxu0 0.0
        %3101 = vmatprep.subr.mxu0 0.0
        %3102 = vmatpush1.msra.mxu0 0.0
        %3103 = vmatprep.subr.mxu0 0.0
        %3104 = vmatpush1.msra.mxu0 0.0
        %3105 = vmatprep.subr.mxu0 0.0
        %3106 = vmatpush1.msra.mxu0 0.0
        %3107 = vmatprep.subr.mxu0 0.0
        %3108 = vmatpush1.msra.mxu0 0.0
        %3109 = vmatprep.subr.mxu0 0.0
        %3110 = vmatpush1.msra.mxu0 0.0
        %3111 = vmatprep.subr.mxu0 0.0
        %3112 = vmatpush1.msra.mxu0 0.0
        %3113 = vmatprep.subr.mxu0 0.0
        %3114 = vmatpush1.msra.mxu0 0.0
        %3115 = vmatprep.subr.mxu0 0.0
        %3116 = vmatpush1.msra.mxu0 0.0
        %3117 = vmatprep.subr.mxu0 0.0
        %3118 = vmatpush1.msra.mxu0 0.0
        %3119 = vmatprep.subr.mxu0 0.0
        %3120 = vmatpush1.msra.mxu0 0.0
        %3121 = vmatprep.subr.mxu0 0.0
        %3122 = vmatpush1.msra.mxu0 0.0
        %3123 = vmatprep.subr.mxu0 0.0
        %3124 = vmatpush1.msra.mxu0 0.0
        %3125 = vmatprep.subr.mxu0 0.0
        %3126 = vmatpush1.msra.mxu0 0.0
        %3127 = vmatprep.subr.mxu0 0.0
        %3128 = vmatpush1.msra.mxu0 0.0
        %3129 = vmatprep.mubr.f32.mxu0 0.0
        %3130 = vmatmul.mubr.f32.gmra.mrb[0].mxu0 %v3057
        %v3131 = vpop.f32.mrb[0].mxu0
        %v3132 = vadd.f32 0.0, %v3131
        %v3133 = vpop.f32.mrb[0].mxu0
        %3134 = vmatprep.mubr.f32.mxu0 0.0
        %3135 = vmatmul.mubr.f32.gmra.mrb[0].mxu0 %v3060
        %v3136 = vpop.f32.mrb[0].mxu0
        %v3137 = vadd.f32 0.0, %v3136
        %v3138 = vpop.f32.mrb[0].mxu0
        %3139 = vmatprep.mubr.f32.mxu0 0.0
        %3140 = vmatmul.mubr.f32.gmra.mrb[0].mxu0 %v3063
        %v3141 = vpop.f32.mrb[0].mxu0
        %v3142 = vadd.f32 0.0, %v3141
        %v3143 = vpop.f32.mrb[0].mxu0
        %3144 = vdwg.mxu0
        %3148 = vrot.lane.b32.xlu0 %v2182, 16
        %v3149 = vpop.permute.xlu0 %3148
        %3150 = vrot.lane.b32.xlu0 %v2187, 16
        %v3151 = vpop.permute.xlu0 %3150
        %3152 = vrot.lane.b32.xlu0 %v2192, 16
        %v3153 = vpop.permute.xlu0 %3152
        %3160 = vrot.lane.b32.xlu0 %v2657, 32
        %v3161 = vpop.permute.xlu0 %3160
        %3162 = vrot.lane.b32.xlu0 %v2662, 32
        %v3163 = vpop.permute.xlu0 %3162
        %3164 = vrot.lane.b32.xlu0 %v2667, 32
        %v3165 = vpop.permute.xlu0 %3164
        %3172 = vrot.lane.b32.xlu0 %v3132, 48
        %v3173 = vpop.permute.xlu0 %3172
        %3174 = vrot.lane.b32.xlu0 %v3137, 48
        %v3175 = vpop.permute.xlu0 %3174
        %3176 = vrot.lane.b32.xlu0 %v3142, 48
        %v3177 = vpop.permute.xlu0 %3176
        %v3181 = vsel %vm1498, %v1707, %v3149
        %v3182 = vsel %vm1498, %v1712, %v3151
        %v3183 = vsel %vm1498, %v1717, %v3153
        %vm3184 = vcmask 261120
        %v3185 = vsel %vm3184, %v3181, %v3161
        %v3186 = vsel %vm3184, %v3182, %v3163
        %v3187 = vsel %vm3184, %v3183, %v3165
        %vm3188 = vcmask 392192
        %v3189 = vsel %vm3188, %v3185, %v3173
        %v3190 = vsel %vm3188, %v3186, %v3175
        %v3191 = vsel %vm3188, %v3187, %v3177
        %v3192 = vpack.c.bf16 %v3190, %v3189
        %v3193 = vpack.c.bf16 %v3191, %v3191
        %v3194 = vld [vmem:[%s1017] sm:$0xf]
        %v3195 = vld [vmem:[%s1017 + $0x4] sm:$0xf]
        %v3196 = vld [vmem:[%s1017 + $0x8] sm:$0xf]
        %v3197 = vld [vmem:[%s1017 + $0xc] sm:$0xf]
        %v3198 = vld [vmem:[%s1017 + $0x10] sm:$0xf]
        %v3199 = vld [vmem:[%s1017 + $0x14] sm:$0xf]
        %v3200 = vld [vmem:[%s1017 + $0x18] sm:$0xf]
        %v3201 = vld [vmem:[%s1017 + $0x1c] sm:$0xf]
        %v3202 = vld [vmem:[%s1020] sm:$0x1]
        %v3204 = vlaneseq
        %v3205 = vshrl.u32 %v3204, 7
        %v3206 = vsub.s32 0, %v3205
        %v3207 = vrot.slane %v3202, %v3206
        %v3217 = vunpack.c.l.b16 %v3194
        %v3218 = vunpack.c.l.b16 %v3195
        %v3219 = vunpack.c.l.b16 %v3196
        %v3220 = vunpack.c.l.b16 %v3197
        %v3221 = vunpack.c.l.b16 %v3198
        %v3222 = vunpack.c.l.b16 %v3199
        %v3223 = vunpack.c.l.b16 %v3200
        %v3224 = vunpack.c.l.b16 %v3201
        %v3225 = vpack.c.b16 %v3218, %v3217
        %v3226 = vpack.c.b16 %v3220, %v3219
        %v3227 = vpack.c.b16 %v3222, %v3221
        %v3228 = vpack.c.b16 %v3224, %v3223
        %v3234 = vsel %vm1172, %v3192, 0
        %v3237 = vsel %vm1172, %v3193, 0
        %3239 = vmatprep.subr.bf16.mxu0 0
        %3240 = vmatpush1.bf16.msra.mxu0 %v3225
        %3241 = vmatprep.subr.bf16.mxu0 0
        %3242 = vmatpush1.bf16.msra.mxu0 %v3226
        %3243 = vmatprep.subr.bf16.mxu0 0
        %3244 = vmatpush1.bf16.msra.mxu0 %v3227
        %3245 = vmatprep.subr.bf16.mxu0 0
        %3246 = vmatpush1.bf16.msra.mxu0 %v3228
        %3247 = vmatprep.subr.bf16.mxu0 0
        %3248 = vmatpush1.bf16.msra.mxu0 0
        %3249 = vmatprep.subr.bf16.mxu0 0
        %3250 = vmatpush1.bf16.msra.mxu0 0
        %3251 = vmatprep.subr.bf16.mxu0 0
        %3252 = vmatpush1.bf16.msra.mxu0 0
        %3253 = vmatprep.subr.bf16.mxu0 0
        %3254 = vmatpush1.bf16.msra.mxu0 0
        %3255 = vmatprep.subr.bf16.mxu0 0
        %3256 = vmatpush1.bf16.msra.mxu0 0
        %3257 = vmatprep.subr.bf16.mxu0 0
        %3258 = vmatpush1.bf16.msra.mxu0 0
        %3259 = vmatprep.subr.bf16.mxu0 0
        %3260 = vmatpush1.bf16.msra.mxu0 0
        %3261 = vmatprep.subr.bf16.mxu0 0
        %3262 = vmatpush1.bf16.msra.mxu0 0
        %3263 = vmatprep.subr.bf16.mxu0 0
        %3264 = vmatpush1.bf16.msra.mxu0 0
        %3265 = vmatprep.subr.bf16.mxu0 0
        %3266 = vmatpush1.bf16.msra.mxu0 0
        %3267 = vmatprep.subr.bf16.mxu0 0
        %3268 = vmatpush1.bf16.msra.mxu0 0
        %3269 = vmatprep.subr.bf16.mxu0 0
        %3270 = vmatpush1.bf16.msra.mxu0 0
        %3271 = vmatprep.mubr.bf16.mxu0 0
        %3272 = vmatmul.mubr.bf16.gmra.mrb[0].mxu0 %v3234
        %v3273 = vpop.f32.mrb[0].mxu0
        %v3274 = vadd.f32 %v3207, %v3273
        %v3275 = vpop.f32.mrb[0].mxu0
        %v3276 = vpop.f32.mrb[0].mxu0
        %v3277 = vadd.f32 %v3207, %v3276
        %v3278 = vpop.f32.mrb[0].mxu0
        %3279 = vmatprep.mubr.bf16.mxu0 0
        %3280 = vmatmul.mubr.bf16.gmra.mrb[0].mxu0 %v3237
        %v3281 = vpop.f32.mrb[0].mxu0
        %v3282 = vadd.f32 %v3207, %v3281
        %v3283 = vpop.f32.mrb[0].mxu0
        %v3284 = vpop.f32.mrb[0].mxu0
        %v3285 = vpop.f32.mrb[0].mxu0
        %3286 = vdwg.mxu0
        %v3287 = vadd.f32 %v3274, %v1167
        %v3288 = vadd.f32 %v3277, %v1168
        %v3289 = vadd.f32 %v3282, %v1169
        %v3290 = vld [vmem:[%s1023] sm:$0x1]
        %v3291 = vld [vmem:[%s1026] sm:$0x1]
        %v3292 = vsel %vm1172, %v3287, 0.0
        %3293 = vadd.xlane.f32.xlu0 %v3292
        %v3294 = vpop.xlane.xlu0 %3293
        %v3295 = vsel %vm1172, %v3288, 0.0
        %3296 = vadd.xlane.f32.xlu0 %v3295
        %v3297 = vpop.xlane.xlu0 %3296
        %v3298 = vsel %vm1172, %v3289, 0.0
        %3299 = vadd.xlane.f32.xlu0 %v3298
        %v3300 = vpop.xlane.xlu0 %3299
        %v3301 = vmul.f32 %v3294, %v1182
        %v3302 = vmul.f32 %v3297, %v1182
        %v3303 = vmul.f32 %v3300, %v1182
        %v3304 = vsub.f32 %v3287, %v3301
        %v3305 = vsub.f32 %v3288, %v3302
        %v3306 = vsub.f32 %v3289, %v3303
        %v3307 = vmul.f32 %v3304, %v3304
        %v3308 = vmul.f32 %v3305, %v3305
        %v3309 = vmul.f32 %v3306, %v3306
        %v3310 = vsel %vm1172, %v3307, 0.0
        %3311 = vadd.xlane.f32.xlu0 %v3310
        %v3312 = vpop.xlane.xlu0 %3311
        %v3313 = vsel %vm1172, %v3308, 0.0
        %3314 = vadd.xlane.f32.xlu0 %v3313
        %v3315 = vpop.xlane.xlu0 %3314
        %v3316 = vsel %vm1172, %v3309, 0.0
        %3317 = vadd.xlane.f32.xlu0 %v3316
        %v3318 = vpop.xlane.xlu0 %3317
        %v3319 = vmul.f32 %v3312, %v1182
        %v3320 = vmul.f32 %v3315, %v1182
        %v3321 = vmul.f32 %v3318, %v1182
        %v3322 = vadd.f32 %v3319, 1e-05
        %v3323 = vadd.f32 %v3320, 1e-05
        %v3324 = vadd.f32 %v3321, 1e-05
        %v3325 = vrsqrt.pop %v3322
        %v3326 = vrsqrt.pop %v3323
        %v3327 = vrsqrt.pop %v3324
        %v3328 = vmul.f32 %v3304, %v3325
        %v3329 = vmul.f32 %v3305, %v3326
        %v3330 = vmul.f32 %v3306, %v3327
        %v3332 = vlaneseq
        %v3333 = vshrl.u32 %v3332, 7
        %v3334 = vsub.s32 0, %v3333
        %v3335 = vrot.slane %v3290, %v3334
        %v3337 = vmul.f32 %v3328, %v3335
        %v3338 = vmul.f32 %v3329, %v3335
        %v3339 = vmul.f32 %v3330, %v3335
        %v3341 = vlaneseq
        %v3342 = vshrl.u32 %v3341, 7
        %v3343 = vsub.s32 0, %v3342
        %v3344 = vrot.slane %v3291, %v3343
        %v3346 = vadd.f32 %v3337, %v3344
        %v3347 = vadd.f32 %v3338, %v3344
        %v3348 = vadd.f32 %v3339, %v3344
        %v3349 = vpack.c.bf16 %v3347, %v3346
        %v3350 = vpack.c.bf16 %v3348, %v3348
        %v3351 = vld [vmem:[%s1031] sm:$0xf]
        %v3352 = vld [vmem:[%s1031 + $0x4] sm:$0xf]
        %v3353 = vld [vmem:[%s1031 + $0x8] sm:$0xf]
        %v3354 = vld [vmem:[%s1031 + $0xc] sm:$0xf]
        %v3355 = vld [vmem:[%s1031 + $0x10] sm:$0xf]
        %v3356 = vld [vmem:[%s1031 + $0x14] sm:$0xf]
        %v3357 = vld [vmem:[%s1031 + $0x18] sm:$0xf]
        %v3358 = vld [vmem:[%s1031 + $0x1c] sm:$0xf]
        %v3359 = vld [vmem:[%s1034] sm:$0x1]
        %v3361 = vlaneseq
        %v3362 = vshrl.u32 %v3361, 7
        %v3363 = vsub.s32 0, %v3362
        %v3364 = vrot.slane %v3359, %v3363
        %v3374 = vunpack.c.l.b16 %v3351
        %v3375 = vunpack.c.l.b16 %v3352
        %v3376 = vunpack.c.l.b16 %v3353
        %v3377 = vunpack.c.l.b16 %v3354
        %v3378 = vunpack.c.l.b16 %v3355
        %v3379 = vunpack.c.l.b16 %v3356
        %v3380 = vunpack.c.l.b16 %v3357
        %v3381 = vunpack.c.l.b16 %v3358
        %v3382 = vpack.c.b16 %v3375, %v3374
        %v3383 = vpack.c.b16 %v3377, %v3376
        %v3384 = vpack.c.b16 %v3379, %v3378
        %v3385 = vpack.c.b16 %v3381, %v3380
        %v3391 = vsel %vm1172, %v3349, 0
        %v3394 = vsel %vm1172, %v3350, 0
        %3396 = vmatprep.subr.bf16.mxu0 0
        %3397 = vmatpush1.bf16.msra.mxu0 %v3382
        %3398 = vmatprep.subr.bf16.mxu0 0
        %3399 = vmatpush1.bf16.msra.mxu0 %v3383
        %3400 = vmatprep.subr.bf16.mxu0 0
        %3401 = vmatpush1.bf16.msra.mxu0 %v3384
        %3402 = vmatprep.subr.bf16.mxu0 0
        %3403 = vmatpush1.bf16.msra.mxu0 %v3385
        %3404 = vmatprep.subr.bf16.mxu0 0
        %3405 = vmatpush1.bf16.msra.mxu0 0
        %3406 = vmatprep.subr.bf16.mxu0 0
        %3407 = vmatpush1.bf16.msra.mxu0 0
        %3408 = vmatprep.subr.bf16.mxu0 0
        %3409 = vmatpush1.bf16.msra.mxu0 0
        %3410 = vmatprep.subr.bf16.mxu0 0
        %3411 = vmatpush1.bf16.msra.mxu0 0
        %3412 = vmatprep.subr.bf16.mxu0 0
        %3413 = vmatpush1.bf16.msra.mxu0 0
        %3414 = vmatprep.subr.bf16.mxu0 0
        %3415 = vmatpush1.bf16.msra.mxu0 0
        %3416 = vmatprep.subr.bf16.mxu0 0
        %3417 = vmatpush1.bf16.msra.mxu0 0
        %3418 = vmatprep.subr.bf16.mxu0 0
        %3419 = vmatpush1.bf16.msra.mxu0 0
        %3420 = vmatprep.subr.bf16.mxu0 0
        %3421 = vmatpush1.bf16.msra.mxu0 0
        %3422 = vmatprep.subr.bf16.mxu0 0
        %3423 = vmatpush1.bf16.msra.mxu0 0
        %3424 = vmatprep.subr.bf16.mxu0 0
        %3425 = vmatpush1.bf16.msra.mxu0 0
        %3426 = vmatprep.subr.bf16.mxu0 0
        %3427 = vmatpush1.bf16.msra.mxu0 0
        %3428 = vmatprep.mubr.bf16.mxu0 0
        %3429 = vmatmul.mubr.bf16.gmra.mrb[0].mxu0 %v3391
        %v3430 = vpop.f32.mrb[0].mxu0
        %v3431 = vadd.f32 %v3364, %v3430
        %v3432 = vpop.f32.mrb[0].mxu0
        %v3433 = vpop.f32.mrb[0].mxu0
        %v3434 = vadd.f32 %v3364, %v3433
        %v3435 = vpop.f32.mrb[0].mxu0
        %3436 = vmatprep.mubr.bf16.mxu0 0
        %3437 = vmatmul.mubr.bf16.gmra.mrb[0].mxu0 %v3394
        %v3438 = vpop.f32.mrb[0].mxu0
        %v3439 = vadd.f32 %v3364, %v3438
        %v3440 = vpop.f32.mrb[0].mxu0
        %v3441 = vpop.f32.mrb[0].mxu0
        %v3442 = vpop.f32.mrb[0].mxu0
        %3443 = vdwg.mxu0
        %v3444 = vmul.f32 %v3431, 0.5
        %v3445 = vmul.f32 %v3434, 0.5
        %v3446 = vmul.f32 %v3439, 0.5
        %v3447 = vmul.f32 %v3431, 0.044715
        %v3448 = vmul.f32 %v3434, 0.044715
        %v3449 = vmul.f32 %v3439, 0.044715
        %v3450 = vmul.f32 %v3447, %v3431
        %v3451 = vmul.f32 %v3448, %v3434
        %v3452 = vmul.f32 %v3449, %v3439
        %v3453 = vmul.f32 %v3450, %v3431
        %v3454 = vmul.f32 %v3451, %v3434
        %v3455 = vmul.f32 %v3452, %v3439
        %v3456 = vadd.f32 %v3431, %v3453
        %v3457 = vadd.f32 %v3434, %v3454
        %v3458 = vadd.f32 %v3439, %v3455
        %v3459 = vmul.f32 %v3456, 0.7978846
        %v3460 = vmul.f32 %v3457, 0.7978846
        %v3461 = vmul.f32 %v3458, 0.7978846
        %v3462 = vtanh.pop %v3459
        %v3463 = vtanh.pop %v3460
        %v3464 = vtanh.pop %v3461
        %v3465 = vadd.f32 %v3462, 1.0
        %v3466 = vadd.f32 %v3463, 1.0
        %v3467 = vadd.f32 %v3464, 1.0
        %v3468 = vmul.f32 %v3444, %v3465
        %v3469 = vmul.f32 %v3445, %v3466
        %v3470 = vmul.f32 %v3446, %v3467
        %v3471 = vpack.c.bf16 %v3469, %v3468
        %v3472 = vpack.c.bf16 %v3470, %v3470
        %v3473 = vld [vmem:[%s1039] sm:$0xf]
        %v3474 = vld [vmem:[%s1039 + $0x4] sm:$0xf]
        %v3475 = vld [vmem:[%s1039 + $0x8] sm:$0xf]
        %v3476 = vld [vmem:[%s1039 + $0xc] sm:$0xf]
        %v3477 = vld [vmem:[%s1039 + $0x10] sm:$0xf]
        %v3478 = vld [vmem:[%s1039 + $0x14] sm:$0xf]
        %v3479 = vld [vmem:[%s1039 + $0x18] sm:$0xf]
        %v3480 = vld [vmem:[%s1039 + $0x1c] sm:$0xf]
        %v3481 = vld [vmem:[%s1039 + $0x20] sm:$0xf]
        %v3482 = vld [vmem:[%s1039 + $0x24] sm:$0xf]
        %v3483 = vld [vmem:[%s1039 + $0x28] sm:$0xf]
        %v3484 = vld [vmem:[%s1039 + $0x2c] sm:$0xf]
        %v3485 = vld [vmem:[%s1039 + $0x30] sm:$0xf]
        %v3486 = vld [vmem:[%s1039 + $0x34] sm:$0xf]
        %v3487 = vld [vmem:[%s1039 + $0x38] sm:$0xf]
        %v3488 = vld [vmem:[%s1039 + $0x3c] sm:$0xf]
        %v3489 = vld [vmem:[%s1042] sm:$0x1]
        %v3491 = vlaneseq
        %v3492 = vshrl.u32 %v3491, 7
        %v3493 = vsub.s32 0, %v3492
        %v3494 = vrot.slane %v3489, %v3493
        %v3512 = vunpack.c.l.b16 %v3473
        %v3513 = vunpack.c.l.b16 %v3474
        %v3514 = vunpack.c.l.b16 %v3475
        %v3515 = vunpack.c.l.b16 %v3476
        %v3516 = vunpack.c.l.b16 %v3477
        %v3517 = vunpack.c.l.b16 %v3478
        %v3518 = vunpack.c.l.b16 %v3479
        %v3519 = vunpack.c.l.b16 %v3480
        %v3520 = vunpack.c.l.b16 %v3481
        %v3521 = vunpack.c.l.b16 %v3482
        %v3522 = vunpack.c.l.b16 %v3483
        %v3523 = vunpack.c.l.b16 %v3484
        %v3524 = vunpack.c.l.b16 %v3485
        %v3525 = vunpack.c.l.b16 %v3486
        %v3526 = vunpack.c.l.b16 %v3487
        %v3527 = vunpack.c.l.b16 %v3488
        %v3528 = vpack.c.b16 %v3513, %v3512
        %v3529 = vpack.c.b16 %v3515, %v3514
        %v3530 = vpack.c.b16 %v3517, %v3516
        %v3531 = vpack.c.b16 %v3519, %v3518
        %v3532 = vpack.c.b16 %v3521, %v3520
        %v3533 = vpack.c.b16 %v3523, %v3522
        %v3534 = vpack.c.b16 %v3525, %v3524
        %v3535 = vpack.c.b16 %v3527, %v3526
        %3544 = vmatprep.subr.bf16.mxu0 0
        %3545 = vmatpush1.bf16.msra.mxu0 %v3528
        %3546 = vmatprep.subr.bf16.mxu0 0
        %3547 = vmatpush1.bf16.msra.mxu0 %v3529
        %3548 = vmatprep.subr.bf16.mxu0 0
        %3549 = vmatpush1.bf16.msra.mxu0 %v3530
        %3550 = vmatprep.subr.bf16.mxu0 0
        %3551 = vmatpush1.bf16.msra.mxu0 %v3531
        %3552 = vmatprep.subr.bf16.mxu0 0
        %3553 = vmatpush1.bf16.msra.mxu0 %v3532
        %3554 = vmatprep.subr.bf16.mxu0 0
        %3555 = vmatpush1.bf16.msra.mxu0 %v3533
        %3556 = vmatprep.subr.bf16.mxu0 0
        %3557 = vmatpush1.bf16.msra.mxu0 %v3534
        %3558 = vmatprep.subr.bf16.mxu0 0
        %3559 = vmatpush1.bf16.msra.mxu0 %v3535
        %3560 = vmatprep.subr.bf16.mxu0 0
        %3561 = vmatpush1.bf16.msra.mxu0 0
        %3562 = vmatprep.subr.bf16.mxu0 0
        %3563 = vmatpush1.bf16.msra.mxu0 0
        %3564 = vmatprep.subr.bf16.mxu0 0
        %3565 = vmatpush1.bf16.msra.mxu0 0
        %3566 = vmatprep.subr.bf16.mxu0 0
        %3567 = vmatpush1.bf16.msra.mxu0 0
        %3568 = vmatprep.subr.bf16.mxu0 0
        %3569 = vmatpush1.bf16.msra.mxu0 0
        %3570 = vmatprep.subr.bf16.mxu0 0
        %3571 = vmatpush1.bf16.msra.mxu0 0
        %3572 = vmatprep.subr.bf16.mxu0 0
        %3573 = vmatpush1.bf16.msra.mxu0 0
        %3574 = vmatprep.subr.bf16.mxu0 0
        %3575 = vmatpush1.bf16.msra.mxu0 0
        %3576 = vmatprep.mubr.bf16.mxu0 0
        %3577 = vmatmul.mubr.bf16.gmra.mrb[0].mxu0 %v3471
        %v3578 = vpop.f32.mrb[0].mxu0
        %v3579 = vadd.f32 %v3494, %v3578
        %v3580 = vpop.f32.mrb[0].mxu0
        %v3581 = vpop.f32.mrb[0].mxu0
        %v3582 = vadd.f32 %v3494, %v3581
        %v3583 = vpop.f32.mrb[0].mxu0
        %3584 = vmatprep.mubr.bf16.mxu0 0
        %3585 = vmatmul.mubr.bf16.gmra.mrb[0].mxu0 %v3472
        %v3586 = vpop.f32.mrb[0].mxu0
        %v3587 = vadd.f32 %v3494, %v3586
        %v3588 = vpop.f32.mrb[0].mxu0
        %v3589 = vpop.f32.mrb[0].mxu0
        %v3590 = vpop.f32.mrb[0].mxu0
        %3591 = vdwg.mxu0
        %v3592 = vmul.f32 %v3579, 0.5
        %v3593 = vmul.f32 %v3582, 0.5
        %v3594 = vmul.f32 %v3587, 0.5
        %v3595 = vmul.f32 %v3579, 0.044715
        %v3596 = vmul.f32 %v3582, 0.044715
        %v3597 = vmul.f32 %v3587, 0.044715
        %v3598 = vmul.f32 %v3595, %v3579
        %v3599 = vmul.f32 %v3596, %v3582
        %v3600 = vmul.f32 %v3597, %v3587
        %v3601 = vmul.f32 %v3598, %v3579
        %v3602 = vmul.f32 %v3599, %v3582
        %v3603 = vmul.f32 %v3600, %v3587
        %v3604 = vadd.f32 %v3579, %v3601
        %v3605 = vadd.f32 %v3582, %v3602
        %v3606 = vadd.f32 %v3587, %v3603
        %v3607 = vmul.f32 %v3604, 0.7978846
        %v3608 = vmul.f32 %v3605, 0.7978846
        %v3609 = vmul.f32 %v3606, 0.7978846
        %v3610 = vtanh.pop %v3607
        %v3611 = vtanh.pop %v3608
        %v3612 = vtanh.pop %v3609
        %v3613 = vadd.f32 %v3610, 1.0
        %v3614 = vadd.f32 %v3611, 1.0
        %v3615 = vadd.f32 %v3612, 1.0
        %v3616 = vmul.f32 %v3592, %v3613
        %v3617 = vmul.f32 %v3593, %v3614
        %v3618 = vmul.f32 %v3594, %v3615
        %v3619 = vadd.f32 %v3616, %v3287
        %v3620 = vadd.f32 %v3617, %v3288
        %v3621 = vadd.f32 %v3618, %v3289
        %3622 = vst.msk [vmem:[#allocation2] sm:$0xff] %vm1172, %v3619
        %3623 = vst.msk [vmem:[#allocation2 + $0x8] sm:$0xff] %vm1172, %v3620
        %3624 = vst.msk [vmem:[#allocation2 + $0x10] sm:$0xff] %vm1172, %v3621
        %p3625 = scmp.eq.s32.totalorder %s44, 1
        // Predicated region
        $region125: #{vit_forward.1} parent=119 // pred_check
          %p3626 = pneg %p3625
        $region126: #{vit_forward.1} parent=119 // pred_check_branch
          %3628 = sbr.rel (%p3626) target = $region128
        $region127: #{vit_forward.1} parent=119 // pred_region
          %v3629 = vld [vmem:[%s21] sm:$0x1]
          %v3630 = vld [vmem:[%s22] sm:$0x1]
          %vm3631 = vcmask 516096
          %v3632 = vsel %vm3631, %v3619, 0.0
          %3633 = vadd.xlane.f32.xlu0 %v3632
          %v3634 = vpop.xlane.xlu0 %3633
          %v3635 = vmul.f32 %v3634, %v1182
          %v3636 = vsub.f32 %v3619, %v3635
          %v3637 = vmul.f32 %v3636, %v3636
          %v3638 = vsel %vm3631, %v3637, 0.0
          %3639 = vadd.xlane.f32.xlu0 %v3638
          %v3640 = vpop.xlane.xlu0 %3639
          %v3641 = vmul.f32 %v3640, %v1182
          %v3642 = vadd.f32 %v3641, 1e-05
          %v3643 = vrsqrt.pop %v3642
          %v3644 = vmul.f32 %v3636, %v3643
          %v3645 = vmul.f32 %v3644, %v3629
          %v3646 = vadd.f32 %v3645, %v3630
          %v3647 = vld [vmem:[%s23] sm:$0xff]
          %v3648 = vld [vmem:[%s23 + $0x8] sm:$0xff]
          %v3649 = vld [vmem:[%s23 + $0x10] sm:$0xff]
          %v3650 = vld [vmem:[%s23 + $0x18] sm:$0xff]
          %v3651 = vld [vmem:[%s23 + $0x20] sm:$0xff]
          %v3652 = vld [vmem:[%s23 + $0x28] sm:$0xff]
          %v3653 = vld [vmem:[%s23 + $0x30] sm:$0xff]
          %v3654 = vld [vmem:[%s23 + $0x38] sm:$0xff]
          %v3655 = vld [vmem:[%s24] sm:$0x1]
          %v3657 = vsel %vm1172, %v3646, 0
          %3659 = vmatprep.subr.mxu0 0.0
          %3660 = vmatpush1.msra.mxu0 %v3647
          %3661 = vmatprep.subr.mxu0 0.0
          %3662 = vmatpush1.msra.mxu0 %v3648
          %3663 = vmatprep.subr.mxu0 0.0
          %3664 = vmatpush1.msra.mxu0 %v3649
          %3665 = vmatprep.subr.mxu0 0.0
          %3666 = vmatpush1.msra.mxu0 %v3650
          %3667 = vmatprep.subr.mxu0 0.0
          %3668 = vmatpush1.msra.mxu0 %v3651
          %3669 = vmatprep.subr.mxu0 0.0
          %3670 = vmatpush1.msra.mxu0 %v3652
          %3671 = vmatprep.subr.mxu0 0.0
          %3672 = vmatpush1.msra.mxu0 %v3653
          %3673 = vmatprep.subr.mxu0 0.0
          %3674 = vmatpush1.msra.mxu0 %v3654
          %3675 = vmatprep.subr.mxu0 0.0
          %3676 = vmatpush1.msra.mxu0 0.0
          %3677 = vmatprep.subr.mxu0 0.0
          %3678 = vmatpush1.msra.mxu0 0.0
          %3679 = vmatprep.subr.mxu0 0.0
          %3680 = vmatpush1.msra.mxu0 0.0
          %3681 = vmatprep.subr.mxu0 0.0
          %3682 = vmatpush1.msra.mxu0 0.0
          %3683 = vmatprep.subr.mxu0 0.0
          %3684 = vmatpush1.msra.mxu0 0.0
          %3685 = vmatprep.subr.mxu0 0.0
          %3686 = vmatpush1.msra.mxu0 0.0
          %3687 = vmatprep.subr.mxu0 0.0
          %3688 = vmatpush1.msra.mxu0 0.0
          %3689 = vmatprep.subr.mxu0 0.0
          %3690 = vmatpush1.msra.mxu0 0.0
          %3691 = vmatprep.subr.mxu0 0.0
          %3692 = vmatpush1.msra.mxu0 0.0
          %3693 = vmatprep.subr.mxu0 0.0
          %3694 = vmatpush1.msra.mxu0 0.0
          %3695 = vmatprep.subr.mxu0 0.0
          %3696 = vmatpush1.msra.mxu0 0.0
          %3697 = vmatprep.subr.mxu0 0.0
          %3698 = vmatpush1.msra.mxu0 0.0
          %3699 = vmatprep.subr.mxu0 0.0
          %3700 = vmatpush1.msra.mxu0 0.0
          %3701 = vmatprep.subr.mxu0 0.0
          %3702 = vmatpush1.msra.mxu0 0.0
          %3703 = vmatprep.subr.mxu0 0.0
          %3704 = vmatpush1.msra.mxu0 0.0
          %3705 = vmatprep.subr.mxu0 0.0
          %3706 = vmatpush1.msra.mxu0 0.0
          %3707 = vmatprep.subr.mxu0 0.0
          %3708 = vmatpush1.msra.mxu0 0.0
          %3709 = vmatprep.subr.mxu0 0.0
          %3710 = vmatpush1.msra.mxu0 0.0
          %3711 = vmatprep.subr.mxu0 0.0
          %3712 = vmatpush1.msra.mxu0 0.0
          %3713 = vmatprep.subr.mxu0 0.0
          %3714 = vmatpush1.msra.mxu0 0.0
          %3715 = vmatprep.subr.mxu0 0.0
          %3716 = vmatpush1.msra.mxu0 0.0
          %3717 = vmatprep.subr.mxu0 0.0
          %3718 = vmatpush1.msra.mxu0 0.0
          %3719 = vmatprep.subr.mxu0 0.0
          %3720 = vmatpush1.msra.mxu0 0.0
          %3721 = vmatprep.subr.mxu0 0.0
          %3722 = vmatpush1.msra.mxu0 0.0
          %3723 = vmatprep.mubr.f32.mxu0 0.0
          %3724 = vmatmul.mubr.f32.gmra.mrb[0].mxu0 %v3657
          %v3725 = vpop.f32.mrb[0].mxu0
          %v3726 = vadd.f32 %v3655, %v3725
          %v3727 = vpop.f32.mrb[0].mxu0
          %3728 = vdwg.mxu0
          %3729 = vst [vmem:[%s974] sm:$0x1] %v3726
        $region128: #{vit_forward.1} parent=119 // pred_fallthru
          _
        %s3730 = sand.u32 %s669, 1
        %s3731 = scalar_lea.sflag [#allocation4], %s3730
        %s3732 = sand.u32 %s669, 1
        %s3733 = scalar_lea.vmem [#allocation3], %s3732
        // Predicated region
        $region129: #{vit_forward.1} parent=119 // pred_check
          %p3734 = pneg %p679
        $region130: #{vit_forward.1} parent=119 // pred_check_branch
          %3736 = sbr.rel (%p3734) target = $region132
        $region131: #{vit_forward.1} parent=119 // pred_region
          %s3738 = ssub.s32 16, 16
          %3739 = vsyncadd %s3731, %s3738
          %s3740 = smul.addr %s43, 16
          %s3741 = scalar_lea.hbm %s25, %s3740
          %s3743 = sshll.u32 %s3733, 4
          %s3744 = int_to_ptr.vmem [resolvable:$true] %s3743
          %3746 = dma.vmem_to_hbm [thread:$0]  %s3744, 16, %s3741, %s3731
        $region132: #{vit_forward.1} parent=119 // pred_fallthru
          _
      $region120: #{vit_forward.1} parent=5 // pred_fallthru
        _
      %p3747 = scmp.le.s32.totalorder 2, %s34
      // Predicated region
      $region133: #{vit_forward.1} parent=5 // pred_check
        %p3748 = pneg %p3747
      $region134: #{vit_forward.1} parent=5 // pred_check_branch
        %3750 = sbr.rel (%p3748) target = $region136
      $region135: #{vit_forward.1} parent=5 // pred_region
        %s3751 = ssub.s32 %s34, 2
        // Predicated region
        $region137: #{vit_forward.1} parent=135 // pred_check
          %p3752 = pneg %p685
        $region138: #{vit_forward.1} parent=135 // pred_check_branch
          %3754 = sbr.rel (%p3752) target = $region140
        $region139: #{vit_forward.1} parent=135 // pred_region
          %s3755 = sand.u32 %s670, 1
          %s3756 = scalar_lea.sflag [#allocation4], %s3755
          %s3757 = sand.u32 %s670, 1
          %s3758 = scalar_lea.vmem [#allocation3], %s3757
          %3759 = dma.done %s3756, 16
        $region140: #{vit_forward.1} parent=135 // pred_fallthru
          _
      $region136: #{vit_forward.1} parent=5 // pred_fallthru
        _
    $region6: #{vit_forward.1} parent=1 // loop_footer
      %s38 = sadd.s32 1, %s34
    $region7: #{vit_forward.1} parent=1 // loop_footer_branch
      %33 = sbr.rel target = $region3
    $region8: #{vit_forward.1} parent=1 // loop_exit
      _
    %3760 = vsyncpa [#allocation4], 1
    %s3761 = scalar_lea.sflag [#allocation4], 1
    %3762 = vsyncpa %s3761, 1

</llo_original>
